<compile_context>
chip_gen: v5e
topology: v5e:2x2
jax: 0.10.0
libtpu: 0.0.40
codegen_flags: <defaults>
</compile_context>

<pallas_src>
import functools

import jax
import jax.numpy as jnp
from jax import lax
from jax.experimental import pallas as pl
from jax.experimental.pallas import tpu as pltpu


# ----------------------------- helpers ---------------------------------------

def _round_up(x, m):
    return ((x + m - 1) // m) * m


def _choose_tm(m):
    """M tile: multiple of 128 (lane/sublane + bf16 packing friendly), capped at
    512, small enough that the M grid has >=2 steps when possible (v7x: 2 TCs)."""
    tm = _round_up(max(1, (m + 1) // 2), 128)
    return max(128, min(512, tm))


@functools.lru_cache(maxsize=None)
def _vmem_limit_bytes():
    # ~half of physical VMEM: ample for these kernels, safe on v7x (64 MiB per TC).
    try:
        cap = int(pltpu.get_tpu_info().vmem_capacity_bytes)
        return max(32 * 2**20, min(96 * 2**20, cap // 2))
    except Exception:
        return 48 * 2**20


def _mosaic_params():
    return pltpu.CompilerParams(
        dimension_semantics=("parallel",),
        vmem_limit_bytes=_vmem_limit_bytes(),
    )


def _vmem_whole():
    # Whole-array operand pinned in VMEM: loaded once, single buffer (no pipeline).
    return pl.BlockSpec(memory_space=pltpu.MemorySpace.VMEM)


# ----------------------------- Pallas kernels --------------------------------

def _conv3x3_tap_kernel(*refs, tm, row_len, win_rows, apply_relu, res_mode):
    """One (TM, C_pad) output tile of a stride-1 3x3 conv via in-kernel 9-tap
    reduction over the flattened zero-padded NHWC activation.

    Layout: activation row p = n*Hp*Wp + h*Wp + w holds x_pad[n, h, w, :] and
    output row q uses the same indexing for (n, ho, wo); rows with ho >= Hp-2 or
    wo >= Wp-2 are garbage and sliced off by the caller.  Tap (kh, kw) reads
    activation row q + kh*Wp + kw -- a constant offset -- so a single aligned
    window load per tile feeds all 9 MXU matmuls.
    """
    x_ref, w_ref, shift_ref = refs[:3]
    rest = refs[3:]

    base = pl.multiple_of(pl.program_id(0) * tm, 128)
    win = x_ref[pl.ds(base, win_rows), :]                 # (TM + halo, Cin_pad) bf16

    c_out = w_ref.shape[2]
    acc = jnp.zeros((tm, c_out), jnp.float32)
    for t in range(9):                                    # static unroll: 9 matmuls
        off = (t // 3) * row_len + (t % 3)                # kh*row_len + kw (static)
        acc = acc + jnp.dot(win[off:off + tm, :], w_ref[t],
                            preferred_element_type=jnp.float32)

    y = acc + shift_ref[...]                              # folded conv-bias + BN shift
    if res_mode == "add":
        res_ref, o_ref = rest
        y = y + res_ref[...].astype(jnp.float32)          # bf16 identity residual
    elif res_mode == "matmul":
        ra_ref, rw_ref, o_ref = rest                      # fused 1x1 stride-2 conv
        y = y + jnp.dot(ra_ref[...], rw_ref[...], preferred_element_type=jnp.float32)
    else:
        (o_ref,) = rest
    if apply_relu:
        y = jnp.maximum(y, 0.0)
    o_ref[...] = y.astype(o_ref.dtype)


def _gemm_bias_act_kernel(a_ref, w_ref, shift_ref, o_ref, *, apply_relu):
    y = jnp.dot(a_ref[...], w_ref[...], preferred_element_type=jnp.float32)
    y = y + shift_ref[...]
    if apply_relu:
        y = jnp.maximum(y, 0.0)
    o_ref[...] = y.astype(o_ref.dtype)


# ----------------------------- kernel wrappers --------------------------------

def conv3x3_s1_bn_act(x_pad, w9, shift, *, residual=None, res_a=None, res_w=None,
                      apply_relu=True, out_dtype=jnp.bfloat16):
    """Fused stride-1 3x3 conv (+folded bias/BN) [+ residual | + fused 1x1 conv] + ReLU.

    x_pad:    (N, Hp, Wp, Cin_pad) bf16, zero-padded by 1 spatially, channels padded
              to a multiple of 128.
    w9:       (9, Cin_pad, C_pad) conv weight (tap = kh*3+kw) with BN scale folded.
    shift:    (1, C_pad) f32 folded conv-bias + BN shift.
    residual: optional (N, Hp, Wp, C_pad) tensor in the same row layout as the output.
    res_a/res_w: optional (N, Hp, Wp, Kr) / (Kr, C_pad) fused 1x1-conv identity.
    Returns (N, Hp, Wp, C_pad); valid region is [:, :Hp-2, :Wp-2, :].
    """
    N, Hp, Wp, Cin_pad = x_pad.shape
    C_pad = w9.shape[-1]
    M = N * Hp * Wp
    TM = _choose_tm(M)
    M_pad = _round_up(M, TM)
    halo = _round_up(2 * Wp + 2, 16)                      # rows past the tile a tap reads
    win_rows = TM + halo

    x_rows = jnp.pad(x_pad.astype(jnp.bfloat16).reshape(M, Cin_pad),
                     ((0, M_pad - M + halo), (0, 0)))

    inputs = [x_rows, w9.astype(jnp.bfloat16), shift.astype(jnp.float32)]
    in_specs = [_vmem_whole(), _vmem_whole(), _vmem_whole()]
    flops = 2 * M_pad * (9 * Cin_pad) * C_pad

    if residual is not None:
        res_mode = "add"
        r = residual.astype(jnp.bfloat16).reshape(-1, C_pad)
        inputs.append(jnp.pad(r, ((0, M_pad - r.shape[0]), (0, 0))))
        in_specs.append(pl.BlockSpec((TM, C_pad), lambda i: (i, 0)))
    elif res_a is not None:
        res_mode = "matmul"
        Kr = res_w.shape[0]
        ra = res_a.astype(jnp.bfloat16).reshape(-1, Kr)
        inputs.append(jnp.pad(ra, ((0, M_pad - ra.shape[0]), (0, 0))))
        inputs.append(res_w.astype(jnp.bfloat16))
        in_specs.append(pl.BlockSpec((TM, Kr), lambda i: (i, 0)))
        in_specs.append(_vmem_whole())
        flops += 2 * M_pad * Kr * C_pad
    else:
        res_mode = "none"

    out_bytes = M_pad * C_pad * jnp.dtype(out_dtype).itemsize
    bytes_accessed = out_bytes + sum(int(a.size) * a.dtype.itemsize for a in inputs)

    kernel = functools.partial(_conv3x3_tap_kernel, tm=TM, row_len=Wp,
                               win_rows=win_rows, apply_relu=apply_relu,
                               res_mode=res_mode)

    out = pl.pallas_call(
        kernel,
        out_shape=jax.ShapeDtypeStruct((M_pad, C_pad), out_dtype),
        grid=(M_pad // TM,),
        in_specs=in_specs,
        out_specs=pl.BlockSpec((TM, C_pad), lambda i: (i, 0)),
        compiler_params=_mosaic_params(),
        cost_estimate=pl.CostEstimate(flops=int(flops), transcendentals=0,
                                      bytes_accessed=int(bytes_accessed)),
    )(*inputs)
    return out[:M].reshape(N, Hp, Wp, C_pad)


def gemm_bias_act(a, w, shift, *, apply_relu=True, out_dtype=jnp.bfloat16):
    """relu?(a @ w + shift).  a: (M, K) im2col rows, w: (K, C_pad), shift: (1, C_pad)."""
    M, K = a.shape
    C_pad = w.shape[1]
    TM = _choose_tm(M)
    M_pad = _round_up(M, TM)
    a_p = jnp.pad(a.astype(jnp.bfloat16), ((0, M_pad - M), (0, 0)))
    w_p = w.astype(jnp.bfloat16)
    sh = shift.astype(jnp.float32)

    bytes_accessed = (int(a_p.size) * 2 + int(w_p.size) * 2 + int(sh.size) * 4
                      + M_pad * C_pad * jnp.dtype(out_dtype).itemsize)
    out = pl.pallas_call(
        functools.partial(_gemm_bias_act_kernel, apply_relu=apply_relu),
        out_shape=jax.ShapeDtypeStruct((M_pad, C_pad), out_dtype),
        grid=(M_pad // TM,),
        in_specs=[pl.BlockSpec((TM, K), lambda i: (i, 0)),   # im2col rows (pipelined)
                  _vmem_whole(), _vmem_whole()],             # weight + shift (1 buffer)
        out_specs=pl.BlockSpec((TM, C_pad), lambda i: (i, 0)),
        compiler_params=_mosaic_params(),
        cost_estimate=pl.CostEstimate(flops=2 * M_pad * K * C_pad, transcendentals=0,
                                      bytes_accessed=int(bytes_accessed)),
    )(a_p, w_p, sh)
    return out[:M]


# ------------------------------ JAX glue --------------------------------------

def _fold_bn(gamma, beta, mean, var, eps=1e-5):
    scale = gamma / jnp.sqrt(var + eps)
    return scale, beta - mean * scale


def _w9(w, scale, cin_pad, c_pad):
    """PyTorch (Cout, Cin, 3, 3) -> (9, Cin_pad, C_pad) with BN scale folded on Cout."""
    cout, cin = w.shape[0], w.shape[1]
    w9 = jnp.transpose(w, (2, 3, 1, 0)).reshape(9, cin, cout) * scale[None, None, :]
    return jnp.pad(w9, ((0, 0), (0, cin_pad - cin), (0, c_pad - cout)))


def _shift(b, scale, t, c_pad):
    s = (b * scale + t).reshape(1, -1)
    return jnp.pad(s, ((0, 0), (0, c_pad - s.shape[1])))


def _im2col_s2(x_pad):
    """Stride-2 3x3 patches of an already zero-padded NHWC tensor; (kh, kw, c) cols."""
    N, Hp, Wp, C = x_pad.shape
    Ho, Wo = (Hp - 3) // 2 + 1, (Wp - 3) // 2 + 1
    cols = [x_pad[:, kh:kh + 2 * Ho:2, kw:kw + 2 * Wo:2, :]
            for kh in range(3) for kw in range(3)]
    col = jnp.concatenate(cols, axis=-1)
    return col.reshape(N * Ho * Wo, 9 * C), Ho, Wo


def residual_block_forward(x_nchw, p, *, stride, downsample):
    x = jnp.transpose(x_nchw, (0, 2, 3, 1))                      # NCHW -> NHWC
    N, H, W, Cin = x.shape
    Cout = p["w1"].shape[0]
    Cin_pad, C_pad = _round_up(Cin, 128), _round_up(Cout, 128)

    # Fold conv bias + eval-mode BN into the conv weight / a single per-channel shift.
    s1, t1 = _fold_bn(p["gamma1"], p["beta1"], p["mean1"], p["var1"])
    s2, t2 = _fold_bn(p["gamma2"], p["beta2"], p["mean2"], p["var2"])
    w1 = _w9(p["w1"], s1, Cin_pad, C_pad)
    w2 = _w9(p["w2"], s2, C_pad, C_pad)
    sh1 = _shift(p["b1"], s1, t1, C_pad)
    sh2 = _shift(p["b2"], s2, t2, C_pad)

    # Channel-pad once on the 1x NHWC activation (bf16); never pad amplified tensors.
    x_cp = jnp.pad(x.astype(jnp.bfloat16), ((0, 0), (0, 0), (0, 0), (0, Cin_pad - Cin)))
    x_sp = jnp.pad(x_cp, ((0, 0), (1, 1), (1, 1), (0, 0)))       # zero ring (pad=1)

    if stride == 1:
        # conv1 + BN + ReLU: in-kernel 9-tap reduction, bf16 intermediate.
        y1_full = conv3x3_s1_bn_act(x_sp, w1, sh1, apply_relu=True,
                                    out_dtype=jnp.bfloat16)
        Ho, Wo = H, W
        y1 = y1_full[:, :Ho, :Wo, :]
    elif stride == 2:
        # TODO(synk): strided first conv still uses an im2col GEMM (2.25x read
        # amplification of x); a phase-decomposed in-kernel tap reduction would
        # remove it.
        assert H % 2 == 0 and W % 2 == 0
        a1, Ho, Wo = _im2col_s2(x_sp)
        y1 = gemm_bias_act(a1, w1.reshape(9 * Cin_pad, C_pad), sh1,
                           apply_relu=True, out_dtype=jnp.bfloat16)
        y1 = y1.reshape(N, Ho, Wo, C_pad)
    else:
        raise ValueError("stride must be 1 or 2")

    # conv2 input: y1 with a zero ring, in the padded row layout the kernel expects.
    y1_sp = jnp.pad(y1, ((0, 0), (1, 1), (1, 1), (0, 0)))

    if downsample:
        # Identity path = 1x1 conv, stride 2, no bias/BN (matches the PyTorch module),
        # fused into the conv2 kernel as a second MXU matmul.
        assert stride == 2
        ra = jnp.pad(x_cp[:, ::2, ::2, :], ((0, 0), (0, 2), (0, 2), (0, 0)))
        rw = jnp.pad(jnp.transpose(p["wd"][:, :, 0, 0]),
                     ((0, Cin_pad - Cin), (0, C_pad - Cout)))
        y2_full = conv3x3_s1_bn_act(y1_sp, w2, sh2, res_a=ra, res_w=rw,
                                    apply_relu=True, out_dtype=jnp.float32)
    else:
        assert stride == 1 and Cin == Cout, \
            "identity path requires stride==1 and Cin==Cout when downsample=False"
        res = jnp.pad(x_cp, ((0, 0), (0, 2), (0, 2), (0, 0)))    # bf16 residual stream
        y2_full = conv3x3_s1_bn_act(y1_sp, w2, sh2, residual=res,
                                    apply_relu=True, out_dtype=jnp.float32)

    out = y2_full[:, :Ho, :Wo, :Cout]
    return jnp.transpose(out, (0, 3, 1, 2))                      # NHWC -> NCHW


# --------------------------- Pure-JAX reference --------------------------------

def _bn_eval(x, gamma, beta, mean, var, eps=1e-5):
    inv = gamma / jnp.sqrt(var + eps)
    return x * inv[None, :, None, None] + (beta - mean * inv)[None, :, None, None]


def reference_forward(x, p, *, stride, downsample):
    dn = ("NCHW", "OIHW", "NCHW")
    hi = lax.Precision.HIGHEST
    y = lax.conv_general_dilated(x, p["w1"], (stride, stride), ((1, 1), (1, 1)),
                                 dimension_numbers=dn, precision=hi)
    y = y + p["b1"][None, :, None, None]
    y = _bn_eval(y, p["gamma1"], p["beta1"], p["mean1"], p["var1"])
    y = jnp.maximum(y, 0.0)
    y = lax.conv_general_dilated(y, p["w2"], (1, 1), ((1, 1), (1, 1)),
                                 dimension_numbers=dn, precision=hi)
    y = y + p["b2"][None, :, None, None]
    y = _bn_eval(y, p["gamma2"], p["beta2"], p["mean2"], p["var2"])
    if downsample:
        idn = lax.conv_general_dilated(x, p["wd"], (2, 2), ((0, 0), (0, 0)),
                                       dimension_numbers=dn, precision=hi)
    else:
        idn = x
    return jnp.maximum(y + idn, 0.0)


# --------------------------------- main -----------------------------------------

if __name__ == "__main__":
    def make_params(key, cin, cout):
        ks = jax.random.split(key, 13)
        return dict(
            w1=0.1 * jax.random.normal(ks[0], (cout, cin, 3, 3), jnp.float32),
            b1=0.1 * jax.random.normal(ks[1], (cout,), jnp.float32),
            gamma1=1.0 + 0.1 * jax.random.normal(ks[2], (cout,), jnp.float32),
            beta1=0.1 * jax.random.normal(ks[3], (cout,), jnp.float32),
            mean1=0.1 * jax.random.normal(ks[4], (cout,), jnp.float32),
            var1=0.5 + jnp.abs(jax.random.normal(ks[5], (cout,), jnp.float32)),
            w2=0.1 * jax.random.normal(ks[6], (cout, cout, 3, 3), jnp.float32),
            b2=0.1 * jax.random.normal(ks[7], (cout,), jnp.float32),
            gamma2=1.0 + 0.1 * jax.random.normal(ks[8], (cout,), jnp.float32),
            beta2=0.1 * jax.random.normal(ks[9], (cout,), jnp.float32),
            mean2=0.1 * jax.random.normal(ks[10], (cout,), jnp.float32),
            var2=0.5 + jnp.abs(jax.random.normal(ks[11], (cout,), jnp.float32)),
            wd=0.1 * jax.random.normal(ks[12], (cout, cin, 1, 1), jnp.float32),
        )

    root = jax.random.PRNGKey(0)
    kp1, kx1, kp2, kx2 = jax.random.split(root, 4)

    # Config 1: stride-2 block with the fused 1x1-stride-2 downsample identity.
    N, Cin, Cout, H, W = 2, 4, 8, 16, 16
    p = make_params(kp1, Cin, Cout)
    x = jax.random.normal(kx1, (N, Cin, H, W), jnp.float32)
    fwd = jax.jit(functools.partial(residual_block_forward, stride=2, downsample=True))
    out = jax.block_until_ready(fwd(x, p))
    ref = reference_forward(x, p, stride=2, downsample=True)
    assert out.shape == ref.shape, (out.shape, ref.shape)
    err = float(jnp.max(jnp.abs(out - ref)))
    # Tolerance accounts for intentional bf16 MXU operands / bf16 intermediate.
    assert jnp.allclose(out, ref, atol=3e-2, rtol=3e-2), f"downsample block max_err={err}"

    # Config 2: stride-1 block with a plain identity residual.
    N, Cin, Cout, H, W = 2, 8, 8, 16, 16
    p = make_params(kp2, Cin, Cout)
    x = jax.random.normal(kx2, (N, Cin, H, W), jnp.float32)
    fwd = jax.jit(functools.partial(residual_block_forward, stride=1, downsample=False))
    out = jax.block_until_ready(fwd(x, p))
    ref = reference_forward(x, p, stride=1, downsample=False)
    assert out.shape == ref.shape, (out.shape, ref.shape)
    err = float(jnp.max(jnp.abs(out - ref)))
    assert jnp.allclose(out, ref, atol=3e-2, rtol=3e-2), f"identity block max_err={err}"

    print("KERNEL_OK")
</pallas_src>

<mosaic_0001>
module attributes {stable_mosaic.version = 11 : i64} {
  func.func @_gemm_bias_act_kernel(%arg0: i32, %arg1: memref<128x1152xbf16, #tpu.memory_space<vmem>>, %arg2: memref<1152x128xbf16, #tpu.memory_space<vmem>>, %arg3: memref<1x128xf32, #tpu.memory_space<vmem>>, %arg4: memref<128x128xbf16, #tpu.memory_space<vmem>>) attributes {dimension_semantics = [#tpu.dimension_semantics<parallel>], iteration_bounds = array<i64: 1>, scalar_prefetch = 0 : i64, scratch_operands = 0 : i64, tpu.core_type = #tpu.core_type<tc>, window_params = [{transform_indices = @transform_0, window_bounds = array<i64: 128, 1152>}, {pipeline_mode = #tpu.pipeline_mode<synchronous>, transform_indices = @transform_1, window_bounds = array<i64: 1152, 128>}, {pipeline_mode = #tpu.pipeline_mode<synchronous>, transform_indices = @transform_2, window_bounds = array<i64: 1, 128>}, {transform_indices = @transform_3, window_bounds = array<i64: 128, 128>}]} {
    %c0 = arith.constant 0 : index
    %c0_0 = arith.constant 0 : index
    %0 = vector.load %arg1[%c0, %c0_0] : memref<128x1152xbf16, #tpu.memory_space<vmem>>, vector<128x1152xbf16>
    %c0_1 = arith.constant 0 : index
    %c0_2 = arith.constant 0 : index
    %1 = vector.load %arg2[%c0_1, %c0_2] : memref<1152x128xbf16, #tpu.memory_space<vmem>>, vector<1152x128xbf16>
    %cst = arith.constant dense<0.000000e+00> : vector<128x128xf32>
    %2 = tpu.matmul %0, %1, %cst {dimension_numbers = #tpu.dot_dimension_numbers<[1], [0], [0], [1], [0, 0, 1, 1], [], []>} : vector<128x1152xbf16>, vector<1152x128xbf16>, vector<128x128xf32> -> vector<128x128xf32>
    %c0_3 = arith.constant 0 : index
    %c0_4 = arith.constant 0 : index
    %3 = vector.load %arg3[%c0_3, %c0_4] : memref<1x128xf32, #tpu.memory_space<vmem>>, vector<1x128xf32>
    %4 = vector.broadcast %3 : vector<1x128xf32> to vector<128x128xf32>
    %5 = arith.addf %2, %4 : vector<128x128xf32>
    %cst_5 = arith.constant 0.000000e+00 : f32
    %6 = vector.broadcast %cst_5 : f32 to vector<128x128xf32>
    %7 = arith.maximumf %5, %6 : vector<128x128xf32>
    %8 = arith.truncf %7 : vector<128x128xf32> to vector<128x128xbf16>
    %c0_6 = arith.constant 0 : index
    %c0_7 = arith.constant 0 : index
    %9 = vector.load %arg4[%c0_6, %c0_7] : memref<128x128xbf16, #tpu.memory_space<vmem>>, vector<128x128xbf16>
    tpu.vector_store %arg4[%c0_6, %c0_7], %8 {strides = array<i32>} : memref<128x128xbf16, #tpu.memory_space<vmem>>, vector<128x128xbf16>,
    return
  }
  func.func @transform_0(%arg0: i32) -> (i32, i32) {
    %c0_i32 = arith.constant 0 : i32
    %c0_i32_0 = arith.constant 0 : i32
    return %arg0, %c0_i32 : i32, i32
  }
  func.func @transform_1(%arg0: i32) -> (i32, i32) {
    %c0_i32 = arith.constant 0 : i32
    %c0_i32_0 = arith.constant 0 : i32
    %c0_i32_1 = arith.constant 0 : i32
    return %c0_i32, %c0_i32_0 : i32, i32
  }
  func.func @transform_2(%arg0: i32) -> (i32, i32) {
    %c0_i32 = arith.constant 0 : i32
    %c0_i32_0 = arith.constant 0 : i32
    %c0_i32_1 = arith.constant 0 : i32
    return %c0_i32, %c0_i32_0 : i32, i32
  }
  func.func @transform_3(%arg0: i32) -> (i32, i32) {
    %c0_i32 = arith.constant 0 : i32
    %c0_i32_0 = arith.constant 0 : i32
    return %arg0, %c0_i32 : i32, i32
  }
}

module attributes {stable_mosaic.version = 11 : i64} {
  func.func @_conv3x3_tap_kernel(%arg0: i32, %arg1: memref<288x128xbf16, #tpu.memory_space<vmem>>, %arg2: memref<9x128x128xbf16, #tpu.memory_space<vmem>>, %arg3: memref<1x128xf32, #tpu.memory_space<vmem>>, %arg4: memref<128x128xbf16, #tpu.memory_space<vmem>>, %arg5: memref<128x128xbf16, #tpu.memory_space<vmem>>, %arg6: memref<128x128xf32, #tpu.memory_space<vmem>>) attributes {dimension_semantics = [#tpu.dimension_semantics<parallel>], iteration_bounds = array<i64: 2>, scalar_prefetch = 0 : i64, scratch_operands = 0 : i64, tpu.core_type = #tpu.core_type<tc>, window_params = [{pipeline_mode = #tpu.pipeline_mode<synchronous>, transform_indices = @transform_0, window_bounds = array<i64: 288, 128>}, {pipeline_mode = #tpu.pipeline_mode<synchronous>, transform_indices = @transform_1, window_bounds = array<i64: 9, 128, 128>}, {pipeline_mode = #tpu.pipeline_mode<synchronous>, transform_indices = @transform_2, window_bounds = array<i64: 1, 128>}, {transform_indices = @transform_3, window_bounds = array<i64: 128, 128>}, {pipeline_mode = #tpu.pipeline_mode<synchronous>, transform_indices = @transform_4, window_bounds = array<i64: 128, 128>}, {transform_indices = @transform_5, window_bounds = array<i64: 128, 128>}]} {
    %c128_i32 = arith.constant 128 : i32
    %0 = arith.muli %arg0, %c128_i32 : i32
    %1 = tpu.assume_multiple %0, 128 : i32
    %2 = arith.index_cast %1 : i32 to index
    %c0 = arith.constant 0 : index
    %3 = vector.load %arg1[%2, %c0] : memref<288x128xbf16, #tpu.memory_space<vmem>>, vector<160x128xbf16>
    %cst = arith.constant 0.000000e+00 : f32
    %4 = vector.broadcast %cst : f32 to vector<128x128xf32>
    %5 = vector.extract_strided_slice %3 {offsets = [0, 0], sizes = [128, 128], strides = [1, 1]} : vector<160x128xbf16> to vector<128x128xbf16>
    %c0_0 = arith.constant 0 : index
    %c0_1 = arith.constant 0 : index
    %c0_2 = arith.constant 0 : index
    %6 = vector.load %arg2[%c0_0, %c0_1, %c0_2] : memref<9x128x128xbf16, #tpu.memory_space<vmem>>, vector<1x128x128xbf16>
    %7 = vector.shape_cast %6 : vector<1x128x128xbf16> to vector<128x128xbf16>
    %cst_3 = arith.constant dense<0.000000e+00> : vector<128x128xf32>
    %8 = tpu.matmul %5, %7, %cst_3 {dimension_numbers = #tpu.dot_dimension_numbers<[1], [0], [0], [1], [0, 0, 1, 1], [], []>} : vector<128x128xbf16>, vector<128x128xbf16>, vector<128x128xf32> -> vector<128x128xf32>
    %9 = arith.addf %4, %8 : vector<128x128xf32>
    %10 = vector.extract_strided_slice %3 {offsets = [1, 0], sizes = [128, 128], strides = [1, 1]} : vector<160x128xbf16> to vector<128x128xbf16>
    %c1 = arith.constant 1 : index
    %c0_4 = arith.constant 0 : index
    %c0_5 = arith.constant 0 : index
    %11 = vector.load %arg2[%c1, %c0_4, %c0_5] : memref<9x128x128xbf16, #tpu.memory_space<vmem>>, vector<1x128x128xbf16>
    %12 = vector.shape_cast %11 : vector<1x128x128xbf16> to vector<128x128xbf16>
    %cst_6 = arith.constant dense<0.000000e+00> : vector<128x128xf32>
    %13 = tpu.matmul %10, %12, %cst_6 {dimension_numbers = #tpu.dot_dimension_numbers<[1], [0], [0], [1], [0, 0, 1, 1], [], []>} : vector<128x128xbf16>, vector<128x128xbf16>, vector<128x128xf32> -> vector<128x128xf32>
    %14 = arith.addf %9, %13 : vector<128x128xf32>
    %15 = vector.extract_strided_slice %3 {offsets = [2, 0], sizes = [128, 128], strides = [1, 1]} : vector<160x128xbf16> to vector<128x128xbf16>
    %c2 = arith.constant 2 : index
    %c0_7 = arith.constant 0 : index
    %c0_8 = arith.constant 0 : index
    %16 = vector.load %arg2[%c2, %c0_7, %c0_8] : memref<9x128x128xbf16, #tpu.memory_space<vmem>>, vector<1x128x128xbf16>
    %17 = vector.shape_cast %16 : vector<1x128x128xbf16> to vector<128x128xbf16>
    %cst_9 = arith.constant dense<0.000000e+00> : vector<128x128xf32>
    %18 = tpu.matmul %15, %17, %cst_9 {dimension_numbers = #tpu.dot_dimension_numbers<[1], [0], [0], [1], [0, 0, 1, 1], [], []>} : vector<128x128xbf16>, vector<128x128xbf16>, vector<128x128xf32> -> vector<128x128xf32>
    %19 = arith.addf %14, %18 : vector<128x128xf32>
    %20 = vector.extract_strided_slice %3 {offsets = [10, 0], sizes = [128, 128], strides = [1, 1]} : vector<160x128xbf16> to vector<128x128xbf16>
    %c3 = arith.constant 3 : index
    %c0_10 = arith.constant 0 : index
    %c0_11 = arith.constant 0 : index
    %21 = vector.load %arg2[%c3, %c0_10, %c0_11] : memref<9x128x128xbf16, #tpu.memory_space<vmem>>, vector<1x128x128xbf16>
    %22 = vector.shape_cast %21 : vector<1x128x128xbf16> to vector<128x128xbf16>
    %cst_12 = arith.constant dense<0.000000e+00> : vector<128x128xf32>
    %23 = tpu.matmul %20, %22, %cst_12 {dimension_numbers = #tpu.dot_dimension_numbers<[1], [0], [0], [1], [0, 0, 1, 1], [], []>} : vector<128x128xbf16>, vector<128x128xbf16>, vector<128x128xf32> -> vector<128x128xf32>
    %24 = arith.addf %19, %23 : vector<128x128xf32>
    %25 = vector.extract_strided_slice %3 {offsets = [11, 0], sizes = [128, 128], strides = [1, 1]} : vector<160x128xbf16> to vector<128x128xbf16>
    %c4 = arith.constant 4 : index
    %c0_13 = arith.constant 0 : index
    %c0_14 = arith.constant 0 : index
    %26 = vector.load %arg2[%c4, %c0_13, %c0_14] : memref<9x128x128xbf16, #tpu.memory_space<vmem>>, vector<1x128x128xbf16>
    %27 = vector.shape_cast %26 : vector<1x128x128xbf16> to vector<128x128xbf16>
    %cst_15 = arith.constant dense<0.000000e+00> : vector<128x128xf32>
    %28 = tpu.matmul %25, %27, %cst_15 {dimension_numbers = #tpu.dot_dimension_numbers<[1], [0], [0], [1], [0, 0, 1, 1], [], []>} : vector<128x128xbf16>, vector<128x128xbf16>, vector<128x128xf32> -> vector<128x128xf32>
    %29 = arith.addf %24, %28 : vector<128x128xf32>
    %30 = vector.extract_strided_slice %3 {offsets = [12, 0], sizes = [128, 128], strides = [1, 1]} : vector<160x128xbf16> to vector<128x128xbf16>
    %c5 = arith.constant 5 : index
    %c0_16 = arith.constant 0 : index
    %c0_17 = arith.constant 0 : index
    %31 = vector.load %arg2[%c5, %c0_16, %c0_17] : memref<9x128x128xbf16, #tpu.memory_space<vmem>>, vector<1x128x128xbf16>
    %32 = vector.shape_cast %31 : vector<1x128x128xbf16> to vector<128x128xbf16>
    %cst_18 = arith.constant dense<0.000000e+00> : vector<128x128xf32>
    %33 = tpu.matmul %30, %32, %cst_18 {dimension_numbers = #tpu.dot_dimension_numbers<[1], [0], [0], [1], [0, 0, 1, 1], [], []>} : vector<128x128xbf16>, vector<128x128xbf16>, vector<128x128xf32> -> vector<128x128xf32>
    %34 = arith.addf %29, %33 : vector<128x128xf32>
    %35 = vector.extract_strided_slice %3 {offsets = [20, 0], sizes = [128, 128], strides = [1, 1]} : vector<160x128xbf16> to vector<128x128xbf16>
    %c6 = arith.constant 6 : index
    %c0_19 = arith.constant 0 : index
    %c0_20 = arith.constant 0 : index
    %36 = vector.load %arg2[%c6, %c0_19, %c0_20] : memref<9x128x128xbf16, #tpu.memory_space<vmem>>, vector<1x128x128xbf16>
    %37 = vector.shape_cast %36 : vector<1x128x128xbf16> to vector<128x128xbf16>
    %cst_21 = arith.constant dense<0.000000e+00> : vector<128x128xf32>
    %38 = tpu.matmul %35, %37, %cst_21 {dimension_numbers = #tpu.dot_dimension_numbers<[1], [0], [0], [1], [0, 0, 1, 1], [], []>} : vector<128x128xbf16>, vector<128x128xbf16>, vector<128x128xf32> -> vector<128x128xf32>
    %39 = arith.addf %34, %38 : vector<128x128xf32>
    %40 = vector.extract_strided_slice %3 {offsets = [21, 0], sizes = [128, 128], strides = [1, 1]} : vector<160x128xbf16> to vector<128x128xbf16>
    %c7 = arith.constant 7 : index
    %c0_22 = arith.constant 0 : index
    %c0_23 = arith.constant 0 : index
    %41 = vector.load %arg2[%c7, %c0_22, %c0_23] : memref<9x128x128xbf16, #tpu.memory_space<vmem>>, vector<1x128x128xbf16>
    %42 = vector.shape_cast %41 : vector<1x128x128xbf16> to vector<128x128xbf16>
    %cst_24 = arith.constant dense<0.000000e+00> : vector<128x128xf32>
    %43 = tpu.matmul %40, %42, %cst_24 {dimension_numbers = #tpu.dot_dimension_numbers<[1], [0], [0], [1], [0, 0, 1, 1], [], []>} : vector<128x128xbf16>, vector<128x128xbf16>, vector<128x128xf32> -> vector<128x128xf32>
    %44 = arith.addf %39, %43 : vector<128x128xf32>
    %45 = vector.extract_strided_slice %3 {offsets = [22, 0], sizes = [128, 128], strides = [1, 1]} : vector<160x128xbf16> to vector<128x128xbf16>
    %c8 = arith.constant 8 : index
    %c0_25 = arith.constant 0 : index
    %c0_26 = arith.constant 0 : index
    %46 = vector.load %arg2[%c8, %c0_25, %c0_26] : memref<9x128x128xbf16, #tpu.memory_space<vmem>>, vector<1x128x128xbf16>
    %47 = vector.shape_cast %46 : vector<1x128x128xbf16> to vector<128x128xbf16>
    %cst_27 = arith.constant dense<0.000000e+00> : vector<128x128xf32>
    %48 = tpu.matmul %45, %47, %cst_27 {dimension_numbers = #tpu.dot_dimension_numbers<[1], [0], [0], [1], [0, 0, 1, 1], [], []>} : vector<128x128xbf16>, vector<128x128xbf16>, vector<128x128xf32> -> vector<128x128xf32>
    %49 = arith.addf %44, %48 : vector<128x128xf32>
    %c0_28 = arith.constant 0 : index
    %c0_29 = arith.constant 0 : index
    %50 = vector.load %arg3[%c0_28, %c0_29] : memref<1x128xf32, #tpu.memory_space<vmem>>, vector<1x128xf32>
    %51 = vector.broadcast %50 : vector<1x128xf32> to vector<128x128xf32>
    %52 = arith.addf %49, %51 : vector<128x128xf32>
    %c0_30 = arith.constant 0 : index
    %c0_31 = arith.constant 0 : index
    %53 = vector.load %arg4[%c0_30, %c0_31] : memref<128x128xbf16, #tpu.memory_space<vmem>>, vector<128x128xbf16>
    %c0_32 = arith.constant 0 : index
    %c0_33 = arith.constant 0 : index
    %54 = vector.load %arg5[%c0_32, %c0_33] : memref<128x128xbf16, #tpu.memory_space<vmem>>, vector<128x128xbf16>
    %cst_34 = arith.constant dense<0.000000e+00> : vector<128x128xf32>
    %55 = tpu.matmul %53, %54, %cst_34 {dimension_numbers = #tpu.dot_dimension_numbers<[1], [0], [0], [1], [0, 0, 1, 1], [], []>} : vector<128x128xbf16>, vector<128x128xbf16>, vector<128x128xf32> -> vector<128x128xf32>
    %56 = arith.addf %52, %55 : vector<128x128xf32>
    %cst_35 = arith.constant 0.000000e+00 : f32
    %57 = vector.broadcast %cst_35 : f32 to vector<128x128xf32>
    %58 = arith.maximumf %56, %57 : vector<128x128xf32>
    %c0_36 = arith.constant 0 : index
    %c0_37 = arith.constant 0 : index
    %59 = vector.load %arg6[%c0_36, %c0_37] : memref<128x128xf32, #tpu.memory_space<vmem>>, vector<128x128xf32>
    tpu.vector_store %arg6[%c0_36, %c0_37], %58 {strides = array<i32>} : memref<128x128xf32, #tpu.memory_space<vmem>>, vector<128x128xf32>,
    return
  }
  func.func @transform_0(%arg0: i32) -> (i32, i32) {
    %c0_i32 = arith.constant 0 : i32
    %c0_i32_0 = arith.constant 0 : i32
    %c0_i32_1 = arith.constant 0 : i32
    return %c0_i32, %c0_i32_0 : i32, i32
  }
  func.func @transform_1(%arg0: i32) -> (i32, i32, i32) {
    %c0_i32 = arith.constant 0 : i32
    %c0_i32_0 = arith.constant 0 : i32
    %c0_i32_1 = arith.constant 0 : i32
    %c0_i32_2 = arith.constant 0 : i32
    return %c0_i32, %c0_i32_0, %c0_i32_1 : i32, i32, i32
  }
  func.func @transform_2(%arg0: i32) -> (i32, i32) {
    %c0_i32 = arith.constant 0 : i32
    %c0_i32_0 = arith.constant 0 : i32
    %c0_i32_1 = arith.constant 0 : i32
    return %c0_i32, %c0_i32_0 : i32, i32
  }
  func.func @transform_3(%arg0: i32) -> (i32, i32) {
    %c0_i32 = arith.constant 0 : i32
    %c0_i32_0 = arith.constant 0 : i32
    return %arg0, %c0_i32 : i32, i32
  }
  func.func @transform_4(%arg0: i32) -> (i32, i32) {
    %c0_i32 = arith.constant 0 : i32
    %c0_i32_0 = arith.constant 0 : i32
    %c0_i32_1 = arith.constant 0 : i32
    return %c0_i32, %c0_i32_0 : i32, i32
  }
  func.func @transform_5(%arg0: i32) -> (i32, i32) {
    %c0_i32 = arith.constant 0 : i32
    %c0_i32_0 = arith.constant 0 : i32
    return %arg0, %c0_i32 : i32, i32
  }
}

</mosaic_0001>

<llo_original>
// kernel: residual_block_forward.2
$region0: #{residual_block_forward.2}
  #allocation0 [shape = 'u32[]', space=smem, size = 0x4, offset = 0x4, fixed_abs, tag = 'smem constant byte address 0x4 - core index']
  #allocation1 [shape = 'u32[72,128]{1,0:T(1,128)}', space=vmem, size = 0x9000, scoped, tag = 'internal scratch']
  %s0 = inlined_call_operand.vmem [shape: bf16[128,1152], index: 0, kind: input, shape index: {}]
  %s1 = inlined_call_operand.vmem [shape: bf16[1152,128], index: 1, kind: input, shape index: {}]
  %s2 = inlined_call_operand.vmem [shape: f32[1,128], index: 2, kind: input, shape index: {}]
  %s3 = inlined_call_operand.vmem [shape: bf16[128,128], index: 3, kind: output, shape index: {}]
  %s4 = sld [smem:[#allocation0]]
  $region22: #{residual_block_forward.2} parent=0
    _
  %s6 = ssub.s32 1, %s4
  %s7 = scalar_select 0, %s6, %s4
  // Predicated region
  $region2: #{residual_block_forward.2} parent=0 // pred_check
    _
  $region3: #{residual_block_forward.2} parent=0 // pred_check_branch
    %9 = sbr.rel (0) target = $region5
  $region4: #{residual_block_forward.2} parent=0 // pred_region
    _
  $region5: #{residual_block_forward.2} parent=0 // pred_fallthru
    _
  // Predicated region
  $region6: #{residual_block_forward.2} parent=0 // pred_check
    _
  $region7: #{residual_block_forward.2} parent=0 // pred_check_branch
    %11 = sbr.rel (0) target = $region9
  $region8: #{residual_block_forward.2} parent=0 // pred_region
    _
  $region9: #{residual_block_forward.2} parent=0 // pred_fallthru
    _
  // Predicated region
  $region10: #{residual_block_forward.2} parent=0 // pred_check
    _
  $region11: #{residual_block_forward.2} parent=0 // pred_check_branch
    %13 = sbr.rel (0) target = $region13
  $region12: #{residual_block_forward.2} parent=0 // pred_region
    _
  $region13: #{residual_block_forward.2} parent=0 // pred_fallthru
    _
  %v14 = vld [vmem:[%s0] sm:$0xff]
  %v15 = vld [vmem:[%s0 + $0x8] sm:$0xff]
  %v16 = vld [vmem:[%s0 + $0x10] sm:$0xff]
  %v17 = vld [vmem:[%s0 + $0x18] sm:$0xff]
  %v18 = vld [vmem:[%s0 + $0x20] sm:$0xf]
  %v19 = vld [vmem:[%s0 + $0x24] sm:$0xff]
  %v20 = vld [vmem:[%s0 + $0x2c] sm:$0xff]
  %v21 = vld [vmem:[%s0 + $0x34] sm:$0xff]
  %v22 = vld [vmem:[%s0 + $0x3c] sm:$0xff]
  %v23 = vld [vmem:[%s0 + $0x44] sm:$0xf]
  %v24 = vld [vmem:[%s0 + $0x48] sm:$0xff]
  %v25 = vld [vmem:[%s0 + $0x50] sm:$0xff]
  %v26 = vld [vmem:[%s0 + $0x58] sm:$0xff]
  %v27 = vld [vmem:[%s0 + $0x60] sm:$0xff]
  %v28 = vld [vmem:[%s0 + $0x68] sm:$0xf]
  %v29 = vld [vmem:[%s0 + $0x6c] sm:$0xff]
  %v30 = vld [vmem:[%s0 + $0x74] sm:$0xff]
  %v31 = vld [vmem:[%s0 + $0x7c] sm:$0xff]
  %v32 = vld [vmem:[%s0 + $0x84] sm:$0xff]
  %v33 = vld [vmem:[%s0 + $0x8c] sm:$0xf]
  %v34 = vld [vmem:[%s0 + $0x90] sm:$0xff]
  %v35 = vld [vmem:[%s0 + $0x98] sm:$0xff]
  %v36 = vld [vmem:[%s0 + $0xa0] sm:$0xff]
  %v37 = vld [vmem:[%s0 + $0xa8] sm:$0xff]
  %v38 = vld [vmem:[%s0 + $0xb0] sm:$0xf]
  %v39 = vld [vmem:[%s0 + $0xb4] sm:$0xff]
  %v40 = vld [vmem:[%s0 + $0xbc] sm:$0xff]
  %v41 = vld [vmem:[%s0 + $0xc4] sm:$0xff]
  %v42 = vld [vmem:[%s0 + $0xcc] sm:$0xff]
  %v43 = vld [vmem:[%s0 + $0xd4] sm:$0xf]
  %v44 = vld [vmem:[%s0 + $0xd8] sm:$0xff]
  %v45 = vld [vmem:[%s0 + $0xe0] sm:$0xff]
  %v46 = vld [vmem:[%s0 + $0xe8] sm:$0xff]
  %v47 = vld [vmem:[%s0 + $0xf0] sm:$0xff]
  %v48 = vld [vmem:[%s0 + $0xf8] sm:$0xf]
  %v49 = vld [vmem:[%s0 + $0xfc] sm:$0xff]
  %v50 = vld [vmem:[%s0 + $0x104] sm:$0xff]
  %v51 = vld [vmem:[%s0 + $0x10c] sm:$0xff]
  %v52 = vld [vmem:[%s0 + $0x114] sm:$0xff]
  %v53 = vld [vmem:[%s0 + $0x11c] sm:$0xf]
  %v54 = vld [vmem:[%s0 + $0x120] sm:$0xff]
  %v55 = vld [vmem:[%s0 + $0x128] sm:$0xff]
  %v56 = vld [vmem:[%s0 + $0x130] sm:$0xff]
  %v57 = vld [vmem:[%s0 + $0x138] sm:$0xff]
  %v58 = vld [vmem:[%s0 + $0x140] sm:$0xf]
  %v59 = vld [vmem:[%s0 + $0x144] sm:$0xff]
  %v60 = vld [vmem:[%s0 + $0x14c] sm:$0xff]
  %v61 = vld [vmem:[%s0 + $0x154] sm:$0xff]
  %v62 = vld [vmem:[%s0 + $0x15c] sm:$0xff]
  %v63 = vld [vmem:[%s0 + $0x164] sm:$0xf]
  %v64 = vld [vmem:[%s0 + $0x168] sm:$0xff]
  %v65 = vld [vmem:[%s0 + $0x170] sm:$0xff]
  %v66 = vld [vmem:[%s0 + $0x178] sm:$0xff]
  %v67 = vld [vmem:[%s0 + $0x180] sm:$0xff]
  %v68 = vld [vmem:[%s0 + $0x188] sm:$0xf]
  %v69 = vld [vmem:[%s0 + $0x18c] sm:$0xff]
  %v70 = vld [vmem:[%s0 + $0x194] sm:$0xff]
  %v71 = vld [vmem:[%s0 + $0x19c] sm:$0xff]
  %v72 = vld [vmem:[%s0 + $0x1a4] sm:$0xff]
  %v73 = vld [vmem:[%s0 + $0x1ac] sm:$0xf]
  %v74 = vld [vmem:[%s0 + $0x1b0] sm:$0xff]
  %v75 = vld [vmem:[%s0 + $0x1b8] sm:$0xff]
  %v76 = vld [vmem:[%s0 + $0x1c0] sm:$0xff]
  %v77 = vld [vmem:[%s0 + $0x1c8] sm:$0xff]
  %v78 = vld [vmem:[%s0 + $0x1d0] sm:$0xf]
  %v79 = vld [vmem:[%s0 + $0x1d4] sm:$0xff]
  %v80 = vld [vmem:[%s0 + $0x1dc] sm:$0xff]
  %v81 = vld [vmem:[%s0 + $0x1e4] sm:$0xff]
  %v82 = vld [vmem:[%s0 + $0x1ec] sm:$0xff]
  %v83 = vld [vmem:[%s0 + $0x1f4] sm:$0xf]
  %v84 = vld [vmem:[%s0 + $0x1f8] sm:$0xff]
  %v85 = vld [vmem:[%s0 + $0x200] sm:$0xff]
  %v86 = vld [vmem:[%s0 + $0x208] sm:$0xff]
  %v87 = vld [vmem:[%s0 + $0x210] sm:$0xff]
  %v88 = vld [vmem:[%s0 + $0x218] sm:$0xf]
  %v89 = vld [vmem:[%s0 + $0x21c] sm:$0xff]
  %v90 = vld [vmem:[%s0 + $0x224] sm:$0xff]
  %v91 = vld [vmem:[%s0 + $0x22c] sm:$0xff]
  %v92 = vld [vmem:[%s0 + $0x234] sm:$0xff]
  %v93 = vld [vmem:[%s0 + $0x23c] sm:$0xf]
  %v94 = vld [vmem:[%s1] sm:$0xf]
  %v95 = vld [vmem:[%s1 + $0x4] sm:$0xf]
  %v96 = vld [vmem:[%s1 + $0x8] sm:$0xf]
  %v97 = vld [vmem:[%s1 + $0xc] sm:$0xf]
  %v98 = vld [vmem:[%s1 + $0x10] sm:$0xf]
  %v99 = vld [vmem:[%s1 + $0x14] sm:$0xf]
  %v100 = vld [vmem:[%s1 + $0x18] sm:$0xf]
  %v101 = vld [vmem:[%s1 + $0x1c] sm:$0xf]
  %v102 = vld [vmem:[%s1 + $0x20] sm:$0xf]
  %v103 = vld [vmem:[%s1 + $0x24] sm:$0xf]
  %v104 = vld [vmem:[%s1 + $0x28] sm:$0xf]
  %v105 = vld [vmem:[%s1 + $0x2c] sm:$0xf]
  %v106 = vld [vmem:[%s1 + $0x30] sm:$0xf]
  %v107 = vld [vmem:[%s1 + $0x34] sm:$0xf]
  %v108 = vld [vmem:[%s1 + $0x38] sm:$0xf]
  %v109 = vld [vmem:[%s1 + $0x3c] sm:$0xf]
  %v110 = vld [vmem:[%s1 + $0x40] sm:$0xf]
  %v111 = vld [vmem:[%s1 + $0x44] sm:$0xf]
  %v112 = vld [vmem:[%s1 + $0x48] sm:$0xf]
  %v113 = vld [vmem:[%s1 + $0x4c] sm:$0xf]
  %v114 = vld [vmem:[%s1 + $0x50] sm:$0xf]
  %v115 = vld [vmem:[%s1 + $0x54] sm:$0xf]
  %v116 = vld [vmem:[%s1 + $0x58] sm:$0xf]
  %v117 = vld [vmem:[%s1 + $0x5c] sm:$0xf]
  %v118 = vld [vmem:[%s1 + $0x60] sm:$0xf]
  %v119 = vld [vmem:[%s1 + $0x64] sm:$0xf]
  %v120 = vld [vmem:[%s1 + $0x68] sm:$0xf]
  %v121 = vld [vmem:[%s1 + $0x6c] sm:$0xf]
  %v122 = vld [vmem:[%s1 + $0x70] sm:$0xf]
  %v123 = vld [vmem:[%s1 + $0x74] sm:$0xf]
  %v124 = vld [vmem:[%s1 + $0x78] sm:$0xf]
  %v125 = vld [vmem:[%s1 + $0x7c] sm:$0xf]
  %v126 = vld [vmem:[%s1 + $0x80] sm:$0xf]
  %v127 = vld [vmem:[%s1 + $0x84] sm:$0xf]
  %v128 = vld [vmem:[%s1 + $0x88] sm:$0xf]
  %v129 = vld [vmem:[%s1 + $0x8c] sm:$0xf]
  %v130 = vld [vmem:[%s1 + $0x90] sm:$0xf]
  %v131 = vld [vmem:[%s1 + $0x94] sm:$0xf]
  %v132 = vld [vmem:[%s1 + $0x98] sm:$0xf]
  %v133 = vld [vmem:[%s1 + $0x9c] sm:$0xf]
  %v134 = vld [vmem:[%s1 + $0xa0] sm:$0xf]
  %v135 = vld [vmem:[%s1 + $0xa4] sm:$0xf]
  %v136 = vld [vmem:[%s1 + $0xa8] sm:$0xf]
  %v137 = vld [vmem:[%s1 + $0xac] sm:$0xf]
  %v138 = vld [vmem:[%s1 + $0xb0] sm:$0xf]
  %v139 = vld [vmem:[%s1 + $0xb4] sm:$0xf]
  %v140 = vld [vmem:[%s1 + $0xb8] sm:$0xf]
  %v141 = vld [vmem:[%s1 + $0xbc] sm:$0xf]
  %v142 = vld [vmem:[%s1 + $0xc0] sm:$0xf]
  %v143 = vld [vmem:[%s1 + $0xc4] sm:$0xf]
  %v144 = vld [vmem:[%s1 + $0xc8] sm:$0xf]
  %v145 = vld [vmem:[%s1 + $0xcc] sm:$0xf]
  %v146 = vld [vmem:[%s1 + $0xd0] sm:$0xf]
  %v147 = vld [vmem:[%s1 + $0xd4] sm:$0xf]
  %v148 = vld [vmem:[%s1 + $0xd8] sm:$0xf]
  %v149 = vld [vmem:[%s1 + $0xdc] sm:$0xf]
  %v150 = vld [vmem:[%s1 + $0xe0] sm:$0xf]
  %v151 = vld [vmem:[%s1 + $0xe4] sm:$0xf]
  %v152 = vld [vmem:[%s1 + $0xe8] sm:$0xf]
  %v153 = vld [vmem:[%s1 + $0xec] sm:$0xf]
  %v154 = vld [vmem:[%s1 + $0xf0] sm:$0xf]
  %v155 = vld [vmem:[%s1 + $0xf4] sm:$0xf]
  %v156 = vld [vmem:[%s1 + $0xf8] sm:$0xf]
  %v157 = vld [vmem:[%s1 + $0xfc] sm:$0xf]
  %v158 = vld [vmem:[%s1 + $0x100] sm:$0xf]
  %v159 = vld [vmem:[%s1 + $0x104] sm:$0xf]
  %v160 = vld [vmem:[%s1 + $0x108] sm:$0xf]
  %v161 = vld [vmem:[%s1 + $0x10c] sm:$0xf]
  %v162 = vld [vmem:[%s1 + $0x110] sm:$0xf]
  %v163 = vld [vmem:[%s1 + $0x114] sm:$0xf]
  %v164 = vld [vmem:[%s1 + $0x118] sm:$0xf]
  %v165 = vld [vmem:[%s1 + $0x11c] sm:$0xf]
  %v166 = vld [vmem:[%s1 + $0x120] sm:$0xf]
  %v167 = vld [vmem:[%s1 + $0x124] sm:$0xf]
  %v168 = vld [vmem:[%s1 + $0x128] sm:$0xf]
  %v169 = vld [vmem:[%s1 + $0x12c] sm:$0xf]
  %v170 = vld [vmem:[%s1 + $0x130] sm:$0xf]
  %v171 = vld [vmem:[%s1 + $0x134] sm:$0xf]
  %v172 = vld [vmem:[%s1 + $0x138] sm:$0xf]
  %v173 = vld [vmem:[%s1 + $0x13c] sm:$0xf]
  %v174 = vld [vmem:[%s1 + $0x140] sm:$0xf]
  %v175 = vld [vmem:[%s1 + $0x144] sm:$0xf]
  %v176 = vld [vmem:[%s1 + $0x148] sm:$0xf]
  %v177 = vld [vmem:[%s1 + $0x14c] sm:$0xf]
  %v178 = vld [vmem:[%s1 + $0x150] sm:$0xf]
  %v179 = vld [vmem:[%s1 + $0x154] sm:$0xf]
  %v180 = vld [vmem:[%s1 + $0x158] sm:$0xf]
  %v181 = vld [vmem:[%s1 + $0x15c] sm:$0xf]
  %v182 = vld [vmem:[%s1 + $0x160] sm:$0xf]
  %v183 = vld [vmem:[%s1 + $0x164] sm:$0xf]
  %v184 = vld [vmem:[%s1 + $0x168] sm:$0xf]
  %v185 = vld [vmem:[%s1 + $0x16c] sm:$0xf]
  %v186 = vld [vmem:[%s1 + $0x170] sm:$0xf]
  %v187 = vld [vmem:[%s1 + $0x174] sm:$0xf]
  %v188 = vld [vmem:[%s1 + $0x178] sm:$0xf]
  %v189 = vld [vmem:[%s1 + $0x17c] sm:$0xf]
  %v190 = vld [vmem:[%s1 + $0x180] sm:$0xf]
  %v191 = vld [vmem:[%s1 + $0x184] sm:$0xf]
  %v192 = vld [vmem:[%s1 + $0x188] sm:$0xf]
  %v193 = vld [vmem:[%s1 + $0x18c] sm:$0xf]
  %v194 = vld [vmem:[%s1 + $0x190] sm:$0xf]
  %v195 = vld [vmem:[%s1 + $0x194] sm:$0xf]
  %v196 = vld [vmem:[%s1 + $0x198] sm:$0xf]
  %v197 = vld [vmem:[%s1 + $0x19c] sm:$0xf]
  %v198 = vld [vmem:[%s1 + $0x1a0] sm:$0xf]
  %v199 = vld [vmem:[%s1 + $0x1a4] sm:$0xf]
  %v200 = vld [vmem:[%s1 + $0x1a8] sm:$0xf]
  %v201 = vld [vmem:[%s1 + $0x1ac] sm:$0xf]
  %v202 = vld [vmem:[%s1 + $0x1b0] sm:$0xf]
  %v203 = vld [vmem:[%s1 + $0x1b4] sm:$0xf]
  %v204 = vld [vmem:[%s1 + $0x1b8] sm:$0xf]
  %v205 = vld [vmem:[%s1 + $0x1bc] sm:$0xf]
  %v206 = vld [vmem:[%s1 + $0x1c0] sm:$0xf]
  %v207 = vld [vmem:[%s1 + $0x1c4] sm:$0xf]
  %v208 = vld [vmem:[%s1 + $0x1c8] sm:$0xf]
  %v209 = vld [vmem:[%s1 + $0x1cc] sm:$0xf]
  %v210 = vld [vmem:[%s1 + $0x1d0] sm:$0xf]
  %v211 = vld [vmem:[%s1 + $0x1d4] sm:$0xf]
  %v212 = vld [vmem:[%s1 + $0x1d8] sm:$0xf]
  %v213 = vld [vmem:[%s1 + $0x1dc] sm:$0xf]
  %v214 = vld [vmem:[%s1 + $0x1e0] sm:$0xf]
  %v215 = vld [vmem:[%s1 + $0x1e4] sm:$0xf]
  %v216 = vld [vmem:[%s1 + $0x1e8] sm:$0xf]
  %v217 = vld [vmem:[%s1 + $0x1ec] sm:$0xf]
  %v218 = vld [vmem:[%s1 + $0x1f0] sm:$0xf]
  %v219 = vld [vmem:[%s1 + $0x1f4] sm:$0xf]
  %v220 = vld [vmem:[%s1 + $0x1f8] sm:$0xf]
  %v221 = vld [vmem:[%s1 + $0x1fc] sm:$0xf]
  %v222 = vld [vmem:[%s1 + $0x200] sm:$0xf]
  %v223 = vld [vmem:[%s1 + $0x204] sm:$0xf]
  %v224 = vld [vmem:[%s1 + $0x208] sm:$0xf]
  %v225 = vld [vmem:[%s1 + $0x20c] sm:$0xf]
  %v226 = vld [vmem:[%s1 + $0x210] sm:$0xf]
  %v227 = vld [vmem:[%s1 + $0x214] sm:$0xf]
  %v228 = vld [vmem:[%s1 + $0x218] sm:$0xf]
  %v229 = vld [vmem:[%s1 + $0x21c] sm:$0xf]
  %v230 = vld [vmem:[%s1 + $0x220] sm:$0xf]
  %v231 = vld [vmem:[%s1 + $0x224] sm:$0xf]
  %v232 = vld [vmem:[%s1 + $0x228] sm:$0xf]
  %v233 = vld [vmem:[%s1 + $0x22c] sm:$0xf]
  %v234 = vld [vmem:[%s1 + $0x230] sm:$0xf]
  %v235 = vld [vmem:[%s1 + $0x234] sm:$0xf]
  %v236 = vld [vmem:[%s1 + $0x238] sm:$0xf]
  %v237 = vld [vmem:[%s1 + $0x23c] sm:$0xf]
  %v238 = vld [vmem:[%s2] sm:$0x1]
  %v240 = vperm.slane %v238, 0
  %v322 = vunpack.c.l.b16 %v14
  %v323 = vunpack.c.h.b16 %v14
  %v324 = vunpack.c.l.b16 %v15
  %v325 = vunpack.c.h.b16 %v15
  %v326 = vunpack.c.l.b16 %v16
  %v327 = vunpack.c.h.b16 %v16
  %v328 = vunpack.c.l.b16 %v17
  %v329 = vunpack.c.h.b16 %v17
  %v330 = vunpack.c.l.b16 %v18
  %v331 = vunpack.c.l.b16 %v19
  %v332 = vunpack.c.h.b16 %v19
  %v333 = vunpack.c.l.b16 %v20
  %v334 = vunpack.c.h.b16 %v20
  %v335 = vunpack.c.l.b16 %v21
  %v336 = vunpack.c.h.b16 %v21
  %v337 = vunpack.c.l.b16 %v22
  %v338 = vunpack.c.h.b16 %v22
  %v339 = vunpack.c.l.b16 %v23
  %v340 = vunpack.c.l.b16 %v24
  %v341 = vunpack.c.h.b16 %v24
  %v342 = vunpack.c.l.b16 %v25
  %v343 = vunpack.c.h.b16 %v25
  %v344 = vunpack.c.l.b16 %v26
  %v345 = vunpack.c.h.b16 %v26
  %v346 = vunpack.c.l.b16 %v27
  %v347 = vunpack.c.h.b16 %v27
  %v348 = vunpack.c.l.b16 %v28
  %v349 = vunpack.c.l.b16 %v29
  %v350 = vunpack.c.h.b16 %v29
  %v351 = vunpack.c.l.b16 %v30
  %v352 = vunpack.c.h.b16 %v30
  %v353 = vunpack.c.l.b16 %v31
  %v354 = vunpack.c.h.b16 %v31
  %v355 = vunpack.c.l.b16 %v32
  %v356 = vunpack.c.h.b16 %v32
  %v357 = vunpack.c.l.b16 %v33
  %v358 = vunpack.c.l.b16 %v34
  %v359 = vunpack.c.h.b16 %v34
  %v360 = vunpack.c.l.b16 %v35
  %v361 = vunpack.c.h.b16 %v35
  %v362 = vunpack.c.l.b16 %v36
  %v363 = vunpack.c.h.b16 %v36
  %v364 = vunpack.c.l.b16 %v37
  %v365 = vunpack.c.h.b16 %v37
  %v366 = vunpack.c.l.b16 %v38
  %v367 = vunpack.c.l.b16 %v39
  %v368 = vunpack.c.h.b16 %v39
  %v369 = vunpack.c.l.b16 %v40
  %v370 = vunpack.c.h.b16 %v40
  %v371 = vunpack.c.l.b16 %v41
  %v372 = vunpack.c.h.b16 %v41
  %v373 = vunpack.c.l.b16 %v42
  %v374 = vunpack.c.h.b16 %v42
  %v375 = vunpack.c.l.b16 %v43
  %v376 = vunpack.c.l.b16 %v44
  %v377 = vunpack.c.h.b16 %v44
  %v378 = vunpack.c.l.b16 %v45
  %v379 = vunpack.c.h.b16 %v45
  %v380 = vunpack.c.l.b16 %v46
  %v381 = vunpack.c.h.b16 %v46
  %v382 = vunpack.c.l.b16 %v47
  %v383 = vunpack.c.h.b16 %v47
  %v384 = vunpack.c.l.b16 %v48
  %v385 = vunpack.c.l.b16 %v49
  %v386 = vunpack.c.h.b16 %v49
  %v387 = vunpack.c.l.b16 %v50
  %v388 = vunpack.c.h.b16 %v50
  %v389 = vunpack.c.l.b16 %v51
  %v390 = vunpack.c.h.b16 %v51
  %v391 = vunpack.c.l.b16 %v52
  %v392 = vunpack.c.h.b16 %v52
  %v393 = vunpack.c.l.b16 %v53
  %v394 = vunpack.c.l.b16 %v54
  %v395 = vunpack.c.h.b16 %v54
  %v396 = vunpack.c.l.b16 %v55
  %v397 = vunpack.c.h.b16 %v55
  %v398 = vunpack.c.l.b16 %v56
  %v399 = vunpack.c.h.b16 %v56
  %v400 = vunpack.c.l.b16 %v57
  %v401 = vunpack.c.h.b16 %v57
  %v402 = vunpack.c.l.b16 %v58
  %v403 = vunpack.c.l.b16 %v59
  %v404 = vunpack.c.h.b16 %v59
  %v405 = vunpack.c.l.b16 %v60
  %v406 = vunpack.c.h.b16 %v60
  %v407 = vunpack.c.l.b16 %v61
  %v408 = vunpack.c.h.b16 %v61
  %v409 = vunpack.c.l.b16 %v62
  %v410 = vunpack.c.h.b16 %v62
  %v411 = vunpack.c.l.b16 %v63
  %v412 = vunpack.c.l.b16 %v64
  %v413 = vunpack.c.h.b16 %v64
  %v414 = vunpack.c.l.b16 %v65
  %v415 = vunpack.c.h.b16 %v65
  %v416 = vunpack.c.l.b16 %v66
  %v417 = vunpack.c.h.b16 %v66
  %v418 = vunpack.c.l.b16 %v67
  %v419 = vunpack.c.h.b16 %v67
  %v420 = vunpack.c.l.b16 %v68
  %v421 = vunpack.c.l.b16 %v69
  %v422 = vunpack.c.h.b16 %v69
  %v423 = vunpack.c.l.b16 %v70
  %v424 = vunpack.c.h.b16 %v70
  %v425 = vunpack.c.l.b16 %v71
  %v426 = vunpack.c.h.b16 %v71
  %v427 = vunpack.c.l.b16 %v72
  %v428 = vunpack.c.h.b16 %v72
  %v429 = vunpack.c.l.b16 %v73
  %v430 = vunpack.c.l.b16 %v74
  %v431 = vunpack.c.h.b16 %v74
  %v432 = vunpack.c.l.b16 %v75
  %v433 = vunpack.c.h.b16 %v75
  %v434 = vunpack.c.l.b16 %v76
  %v435 = vunpack.c.h.b16 %v76
  %v436 = vunpack.c.l.b16 %v77
  %v437 = vunpack.c.h.b16 %v77
  %v438 = vunpack.c.l.b16 %v78
  %v439 = vunpack.c.l.b16 %v79
  %v440 = vunpack.c.h.b16 %v79
  %v441 = vunpack.c.l.b16 %v80
  %v442 = vunpack.c.h.b16 %v80
  %v443 = vunpack.c.l.b16 %v81
  %v444 = vunpack.c.h.b16 %v81
  %v445 = vunpack.c.l.b16 %v82
  %v446 = vunpack.c.h.b16 %v82
  %v447 = vunpack.c.l.b16 %v83
  %v448 = vunpack.c.l.b16 %v84
  %v449 = vunpack.c.h.b16 %v84
  %v450 = vunpack.c.l.b16 %v85
  %v451 = vunpack.c.h.b16 %v85
  %v452 = vunpack.c.l.b16 %v86
  %v453 = vunpack.c.h.b16 %v86
  %v454 = vunpack.c.l.b16 %v87
  %v455 = vunpack.c.h.b16 %v87
  %v456 = vunpack.c.l.b16 %v88
  %v457 = vunpack.c.l.b16 %v89
  %v458 = vunpack.c.h.b16 %v89
  %v459 = vunpack.c.l.b16 %v90
  %v460 = vunpack.c.h.b16 %v90
  %v461 = vunpack.c.l.b16 %v91
  %v462 = vunpack.c.h.b16 %v91
  %v463 = vunpack.c.l.b16 %v92
  %v464 = vunpack.c.h.b16 %v92
  %v465 = vunpack.c.l.b16 %v93
  %v466 = vpack.c.b16 %v331, %v322
  %v467 = vpack.c.b16 %v332, %v323
  %v468 = vpack.c.b16 %v333, %v324
  %v469 = vpack.c.b16 %v334, %v325
  %v470 = vpack.c.b16 %v335, %v326
  %v471 = vpack.c.b16 %v336, %v327
  %v472 = vpack.c.b16 %v337, %v328
  %v473 = vpack.c.b16 %v338, %v329
  %v474 = vpack.c.b16 %v339, %v330
  %v475 = vpack.c.b16 %v349, %v340
  %v476 = vpack.c.b16 %v350, %v341
  %v477 = vpack.c.b16 %v351, %v342
  %v478 = vpack.c.b16 %v352, %v343
  %v479 = vpack.c.b16 %v353, %v344
  %v480 = vpack.c.b16 %v354, %v345
  %v481 = vpack.c.b16 %v355, %v346
  %v482 = vpack.c.b16 %v356, %v347
  %v483 = vpack.c.b16 %v357, %v348
  %v484 = vpack.c.b16 %v367, %v358
  %v485 = vpack.c.b16 %v368, %v359
  %v486 = vpack.c.b16 %v369, %v360
  %v487 = vpack.c.b16 %v370, %v361
  %v488 = vpack.c.b16 %v371, %v362
  %v489 = vpack.c.b16 %v372, %v363
  %v490 = vpack.c.b16 %v373, %v364
  %v491 = vpack.c.b16 %v374, %v365
  %v492 = vpack.c.b16 %v375, %v366
  %v493 = vpack.c.b16 %v385, %v376
  %v494 = vpack.c.b16 %v386, %v377
  %v495 = vpack.c.b16 %v387, %v378
  %v496 = vpack.c.b16 %v388, %v379
  %v497 = vpack.c.b16 %v389, %v380
  %v498 = vpack.c.b16 %v390, %v381
  %v499 = vpack.c.b16 %v391, %v382
  %v500 = vpack.c.b16 %v392, %v383
  %v501 = vpack.c.b16 %v393, %v384
  %v502 = vpack.c.b16 %v403, %v394
  %v503 = vpack.c.b16 %v404, %v395
  %v504 = vpack.c.b16 %v405, %v396
  %v505 = vpack.c.b16 %v406, %v397
  %v506 = vpack.c.b16 %v407, %v398
  %v507 = vpack.c.b16 %v408, %v399
  %v508 = vpack.c.b16 %v409, %v400
  %v509 = vpack.c.b16 %v410, %v401
  %v510 = vpack.c.b16 %v411, %v402
  %v511 = vpack.c.b16 %v421, %v412
  %v512 = vpack.c.b16 %v422, %v413
  %v513 = vpack.c.b16 %v423, %v414
  %v514 = vpack.c.b16 %v424, %v415
  %v515 = vpack.c.b16 %v425, %v416
  %v516 = vpack.c.b16 %v426, %v417
  %v517 = vpack.c.b16 %v427, %v418
  %v518 = vpack.c.b16 %v428, %v419
  %v519 = vpack.c.b16 %v429, %v420
  %v520 = vpack.c.b16 %v439, %v430
  %v521 = vpack.c.b16 %v440, %v431
  %v522 = vpack.c.b16 %v441, %v432
  %v523 = vpack.c.b16 %v442, %v433
  %v524 = vpack.c.b16 %v443, %v434
  %v525 = vpack.c.b16 %v444, %v435
  %v526 = vpack.c.b16 %v445, %v436
  %v527 = vpack.c.b16 %v446, %v437
  %v528 = vpack.c.b16 %v447, %v438
  %v529 = vpack.c.b16 %v457, %v448
  %v530 = vpack.c.b16 %v458, %v449
  %v531 = vpack.c.b16 %v459, %v450
  %v532 = vpack.c.b16 %v460, %v451
  %v533 = vpack.c.b16 %v461, %v452
  %v534 = vpack.c.b16 %v462, %v453
  %v535 = vpack.c.b16 %v463, %v454
  %v536 = vpack.c.b16 %v464, %v455
  %v537 = vpack.c.b16 %v465, %v456
  %v754 = vunpack.c.l.b16 %v94
  %v755 = vunpack.c.l.b16 %v95
  %v756 = vunpack.c.l.b16 %v96
  %v757 = vunpack.c.l.b16 %v97
  %v758 = vunpack.c.l.b16 %v98
  %v759 = vunpack.c.l.b16 %v99
  %v760 = vunpack.c.l.b16 %v100
  %v761 = vunpack.c.l.b16 %v101
  %v762 = vunpack.c.l.b16 %v102
  %v763 = vunpack.c.l.b16 %v103
  %v764 = vunpack.c.l.b16 %v104
  %v765 = vunpack.c.l.b16 %v105
  %v766 = vunpack.c.l.b16 %v106
  %v767 = vunpack.c.l.b16 %v107
  %v768 = vunpack.c.l.b16 %v108
  %v769 = vunpack.c.l.b16 %v109
  %v770 = vunpack.c.l.b16 %v110
  %v771 = vunpack.c.l.b16 %v111
  %v772 = vunpack.c.l.b16 %v112
  %v773 = vunpack.c.l.b16 %v113
  %v774 = vunpack.c.l.b16 %v114
  %v775 = vunpack.c.l.b16 %v115
  %v776 = vunpack.c.l.b16 %v116
  %v777 = vunpack.c.l.b16 %v117
  %v778 = vunpack.c.l.b16 %v118
  %v779 = vunpack.c.l.b16 %v119
  %v780 = vunpack.c.l.b16 %v120
  %v781 = vunpack.c.l.b16 %v121
  %v782 = vunpack.c.l.b16 %v122
  %v783 = vunpack.c.l.b16 %v123
  %v784 = vunpack.c.l.b16 %v124
  %v785 = vunpack.c.l.b16 %v125
  %v786 = vunpack.c.l.b16 %v126
  %v787 = vunpack.c.l.b16 %v127
  %v788 = vunpack.c.l.b16 %v128
  %v789 = vunpack.c.l.b16 %v129
  %v790 = vunpack.c.l.b16 %v130
  %v791 = vunpack.c.l.b16 %v131
  %v792 = vunpack.c.l.b16 %v132
  %v793 = vunpack.c.l.b16 %v133
  %v794 = vunpack.c.l.b16 %v134
  %v795 = vunpack.c.l.b16 %v135
  %v796 = vunpack.c.l.b16 %v136
  %v797 = vunpack.c.l.b16 %v137
  %v798 = vunpack.c.l.b16 %v138
  %v799 = vunpack.c.l.b16 %v139
  %v800 = vunpack.c.l.b16 %v140
  %v801 = vunpack.c.l.b16 %v141
  %v802 = vunpack.c.l.b16 %v142
  %v803 = vunpack.c.l.b16 %v143
  %v804 = vunpack.c.l.b16 %v144
  %v805 = vunpack.c.l.b16 %v145
  %v806 = vunpack.c.l.b16 %v146
  %v807 = vunpack.c.l.b16 %v147
  %v808 = vunpack.c.l.b16 %v148
  %v809 = vunpack.c.l.b16 %v149
  %v810 = vunpack.c.l.b16 %v150
  %v811 = vunpack.c.l.b16 %v151
  %v812 = vunpack.c.l.b16 %v152
  %v813 = vunpack.c.l.b16 %v153
  %v814 = vunpack.c.l.b16 %v154
  %v815 = vunpack.c.l.b16 %v155
  %v816 = vunpack.c.l.b16 %v156
  %v817 = vunpack.c.l.b16 %v157
  %v818 = vunpack.c.l.b16 %v158
  %v819 = vunpack.c.l.b16 %v159
  %v820 = vunpack.c.l.b16 %v160
  %v821 = vunpack.c.l.b16 %v161
  %v822 = vunpack.c.l.b16 %v162
  %v823 = vunpack.c.l.b16 %v163
  %v824 = vunpack.c.l.b16 %v164
  %v825 = vunpack.c.l.b16 %v165
  %v826 = vunpack.c.l.b16 %v166
  %v827 = vunpack.c.l.b16 %v167
  %v828 = vunpack.c.l.b16 %v168
  %v829 = vunpack.c.l.b16 %v169
  %v830 = vunpack.c.l.b16 %v170
  %v831 = vunpack.c.l.b16 %v171
  %v832 = vunpack.c.l.b16 %v172
  %v833 = vunpack.c.l.b16 %v173
  %v834 = vunpack.c.l.b16 %v174
  %v835 = vunpack.c.l.b16 %v175
  %v836 = vunpack.c.l.b16 %v176
  %v837 = vunpack.c.l.b16 %v177
  %v838 = vunpack.c.l.b16 %v178
  %v839 = vunpack.c.l.b16 %v179
  %v840 = vunpack.c.l.b16 %v180
  %v841 = vunpack.c.l.b16 %v181
  %v842 = vunpack.c.l.b16 %v182
  %v843 = vunpack.c.l.b16 %v183
  %v844 = vunpack.c.l.b16 %v184
  %v845 = vunpack.c.l.b16 %v185
  %v846 = vunpack.c.l.b16 %v186
  %v847 = vunpack.c.l.b16 %v187
  %v848 = vunpack.c.l.b16 %v188
  %v849 = vunpack.c.l.b16 %v189
  %v850 = vunpack.c.l.b16 %v190
  %v851 = vunpack.c.l.b16 %v191
  %v852 = vunpack.c.l.b16 %v192
  %v853 = vunpack.c.l.b16 %v193
  %v854 = vunpack.c.l.b16 %v194
  %v855 = vunpack.c.l.b16 %v195
  %v856 = vunpack.c.l.b16 %v196
  %v857 = vunpack.c.l.b16 %v197
  %v858 = vunpack.c.l.b16 %v198
  %v859 = vunpack.c.l.b16 %v199
  %v860 = vunpack.c.l.b16 %v200
  %v861 = vunpack.c.l.b16 %v201
  %v862 = vunpack.c.l.b16 %v202
  %v863 = vunpack.c.l.b16 %v203
  %v864 = vunpack.c.l.b16 %v204
  %v865 = vunpack.c.l.b16 %v205
  %v866 = vunpack.c.l.b16 %v206
  %v867 = vunpack.c.l.b16 %v207
  %v868 = vunpack.c.l.b16 %v208
  %v869 = vunpack.c.l.b16 %v209
  %v870 = vunpack.c.l.b16 %v210
  %v871 = vunpack.c.l.b16 %v211
  %v872 = vunpack.c.l.b16 %v212
  %v873 = vunpack.c.l.b16 %v213
  %v874 = vunpack.c.l.b16 %v214
  %v875 = vunpack.c.l.b16 %v215
  %v876 = vunpack.c.l.b16 %v216
  %v877 = vunpack.c.l.b16 %v217
  %v878 = vunpack.c.l.b16 %v218
  %v879 = vunpack.c.l.b16 %v219
  %v880 = vunpack.c.l.b16 %v220
  %v881 = vunpack.c.l.b16 %v221
  %v882 = vunpack.c.l.b16 %v222
  %v883 = vunpack.c.l.b16 %v223
  %v884 = vunpack.c.l.b16 %v224
  %v885 = vunpack.c.l.b16 %v225
  %v886 = vunpack.c.l.b16 %v226
  %v887 = vunpack.c.l.b16 %v227
  %v888 = vunpack.c.l.b16 %v228
  %v889 = vunpack.c.l.b16 %v229
  %v890 = vunpack.c.l.b16 %v230
  %v891 = vunpack.c.l.b16 %v231
  %v892 = vunpack.c.l.b16 %v232
  %v893 = vunpack.c.l.b16 %v233
  %v894 = vunpack.c.l.b16 %v234
  %v895 = vunpack.c.l.b16 %v235
  %v896 = vunpack.c.l.b16 %v236
  %v897 = vunpack.c.l.b16 %v237
  %v898 = vpack.c.b16 %v755, %v754
  %v899 = vpack.c.b16 %v757, %v756
  %v900 = vpack.c.b16 %v759, %v758
  %v901 = vpack.c.b16 %v761, %v760
  %v902 = vpack.c.b16 %v763, %v762
  %v903 = vpack.c.b16 %v765, %v764
  %v904 = vpack.c.b16 %v767, %v766
  %v905 = vpack.c.b16 %v769, %v768
  %v906 = vpack.c.b16 %v771, %v770
  %v907 = vpack.c.b16 %v773, %v772
  %v908 = vpack.c.b16 %v775, %v774
  %v909 = vpack.c.b16 %v777, %v776
  %v910 = vpack.c.b16 %v779, %v778
  %v911 = vpack.c.b16 %v781, %v780
  %v912 = vpack.c.b16 %v783, %v782
  %v913 = vpack.c.b16 %v785, %v784
  %v914 = vpack.c.b16 %v787, %v786
  %v915 = vpack.c.b16 %v789, %v788
  %v916 = vpack.c.b16 %v791, %v790
  %v917 = vpack.c.b16 %v793, %v792
  %v918 = vpack.c.b16 %v795, %v794
  %v919 = vpack.c.b16 %v797, %v796
  %v920 = vpack.c.b16 %v799, %v798
  %v921 = vpack.c.b16 %v801, %v800
  %v922 = vpack.c.b16 %v803, %v802
  %v923 = vpack.c.b16 %v805, %v804
  %v924 = vpack.c.b16 %v807, %v806
  %v925 = vpack.c.b16 %v809, %v808
  %v926 = vpack.c.b16 %v811, %v810
  %v927 = vpack.c.b16 %v813, %v812
  %v928 = vpack.c.b16 %v815, %v814
  %v929 = vpack.c.b16 %v817, %v816
  %v930 = vpack.c.b16 %v819, %v818
  %v931 = vpack.c.b16 %v821, %v820
  %v932 = vpack.c.b16 %v823, %v822
  %v933 = vpack.c.b16 %v825, %v824
  %v934 = vpack.c.b16 %v827, %v826
  %v935 = vpack.c.b16 %v829, %v828
  %v936 = vpack.c.b16 %v831, %v830
  %v937 = vpack.c.b16 %v833, %v832
  %v938 = vpack.c.b16 %v835, %v834
  %v939 = vpack.c.b16 %v837, %v836
  %v940 = vpack.c.b16 %v839, %v838
  %v941 = vpack.c.b16 %v841, %v840
  %v942 = vpack.c.b16 %v843, %v842
  %v943 = vpack.c.b16 %v845, %v844
  %v944 = vpack.c.b16 %v847, %v846
  %v945 = vpack.c.b16 %v849, %v848
  %v946 = vpack.c.b16 %v851, %v850
  %v947 = vpack.c.b16 %v853, %v852
  %v948 = vpack.c.b16 %v855, %v854
  %v949 = vpack.c.b16 %v857, %v856
  %v950 = vpack.c.b16 %v859, %v858
  %v951 = vpack.c.b16 %v861, %v860
  %v952 = vpack.c.b16 %v863, %v862
  %v953 = vpack.c.b16 %v865, %v864
  %v954 = vpack.c.b16 %v867, %v866
  %v955 = vpack.c.b16 %v869, %v868
  %v956 = vpack.c.b16 %v871, %v870
  %v957 = vpack.c.b16 %v873, %v872
  %v958 = vpack.c.b16 %v875, %v874
  %v959 = vpack.c.b16 %v877, %v876
  %v960 = vpack.c.b16 %v879, %v878
  %v961 = vpack.c.b16 %v881, %v880
  %v962 = vpack.c.b16 %v883, %v882
  %v963 = vpack.c.b16 %v885, %v884
  %v964 = vpack.c.b16 %v887, %v886
  %v965 = vpack.c.b16 %v889, %v888
  %v966 = vpack.c.b16 %v891, %v890
  %v967 = vpack.c.b16 %v893, %v892
  %v968 = vpack.c.b16 %v895, %v894
  %v969 = vpack.c.b16 %v897, %v896
  %1042 = vmatpush.bf16.msra.mxu0 %v905
  %1043 = vmatpush.bf16.msra.mxu0 %v904
  %1044 = vmatpush.bf16.msra.mxu0 %v903
  %1045 = vmatpush.bf16.msra.mxu0 %v902
  %1046 = vmatpush.bf16.msra.mxu0 %v901
  %1047 = vmatpush.bf16.msra.mxu0 %v900
  %1048 = vmatpush.bf16.msra.mxu0 %v899
  %1049 = vmatpush.bf16.msra.mxu0 %v898
  %1050 = vmatmul.bf16.gmra.mxu0 %v466
  %v1051 = vpop.f32.mrf.mxu0
  %v1052 = vadd.f32 %v240, %v1051
  %v1053 = vpop.f32.mrf.mxu0
  %v1054 = vadd.f32 %v240, %v1053
  %1055 = vmatmul.bf16.gmra.mxu0 %v475
  %v1056 = vpop.f32.mrf.mxu0
  %v1057 = vadd.f32 %v240, %v1056
  %v1058 = vpop.f32.mrf.mxu0
  %v1059 = vadd.f32 %v240, %v1058
  %1060 = vmatmul.bf16.gmra.mxu0 %v484
  %v1061 = vpop.f32.mrf.mxu0
  %v1062 = vadd.f32 %v240, %v1061
  %v1063 = vpop.f32.mrf.mxu0
  %v1064 = vadd.f32 %v240, %v1063
  %1065 = vmatmul.bf16.gmra.mxu0 %v493
  %v1066 = vpop.f32.mrf.mxu0
  %v1067 = vadd.f32 %v240, %v1066
  %v1068 = vpop.f32.mrf.mxu0
  %v1069 = vadd.f32 %v240, %v1068
  %1070 = vmatmul.bf16.gmra.mxu0 %v502
  %v1071 = vpop.f32.mrf.mxu0
  %v1072 = vadd.f32 %v240, %v1071
  %v1073 = vpop.f32.mrf.mxu0
  %v1074 = vadd.f32 %v240, %v1073
  %1075 = vmatmul.bf16.gmra.mxu0 %v511
  %v1076 = vpop.f32.mrf.mxu0
  %v1077 = vadd.f32 %v240, %v1076
  %v1078 = vpop.f32.mrf.mxu0
  %v1079 = vadd.f32 %v240, %v1078
  %1080 = vmatmul.bf16.gmra.mxu0 %v520
  %v1081 = vpop.f32.mrf.mxu0
  %v1082 = vadd.f32 %v240, %v1081
  %v1083 = vpop.f32.mrf.mxu0
  %v1084 = vadd.f32 %v240, %v1083
  %1085 = vmatmul.bf16.gmra.mxu0 %v529
  %v1086 = vpop.f32.mrf.mxu0
  %v1087 = vadd.f32 %v240, %v1086
  %v1088 = vpop.f32.mrf.mxu0
  %v1089 = vadd.f32 %v240, %v1088
  %1090 = vdwg.mxu0
  %1091 = vmatpush.bf16.msra.mxu0 %v913
  %1092 = vmatpush.bf16.msra.mxu0 %v912
  %1093 = vmatpush.bf16.msra.mxu0 %v911
  %1094 = vmatpush.bf16.msra.mxu0 %v910
  %1095 = vmatpush.bf16.msra.mxu0 %v909
  %1096 = vmatpush.bf16.msra.mxu0 %v908
  %1097 = vmatpush.bf16.msra.mxu0 %v907
  %1098 = vmatpush.bf16.msra.mxu0 %v906
  %1099 = vmatmul.bf16.gmra.mxu0 %v467
  %v1100 = vpop.f32.mrf.mxu0
  %v1101 = vadd.f32 %v1052, %v1100
  %v1102 = vpop.f32.mrf.mxu0
  %v1103 = vadd.f32 %v1054, %v1102
  %1104 = vmatmul.bf16.gmra.mxu0 %v476
  %v1105 = vpop.f32.mrf.mxu0
  %v1106 = vadd.f32 %v1057, %v1105
  %v1107 = vpop.f32.mrf.mxu0
  %v1108 = vadd.f32 %v1059, %v1107
  %1109 = vmatmul.bf16.gmra.mxu0 %v485
  %v1110 = vpop.f32.mrf.mxu0
  %v1111 = vadd.f32 %v1062, %v1110
  %v1112 = vpop.f32.mrf.mxu0
  %v1113 = vadd.f32 %v1064, %v1112
  %1114 = vmatmul.bf16.gmra.mxu0 %v494
  %v1115 = vpop.f32.mrf.mxu0
  %v1116 = vadd.f32 %v1067, %v1115
  %v1117 = vpop.f32.mrf.mxu0
  %v1118 = vadd.f32 %v1069, %v1117
  %1119 = vmatmul.bf16.gmra.mxu0 %v503
  %v1120 = vpop.f32.mrf.mxu0
  %v1121 = vadd.f32 %v1072, %v1120
  %v1122 = vpop.f32.mrf.mxu0
  %v1123 = vadd.f32 %v1074, %v1122
  %1124 = vmatmul.bf16.gmra.mxu0 %v512
  %v1125 = vpop.f32.mrf.mxu0
  %v1126 = vadd.f32 %v1077, %v1125
  %v1127 = vpop.f32.mrf.mxu0
  %v1128 = vadd.f32 %v1079, %v1127
  %1129 = vmatmul.bf16.gmra.mxu0 %v521
  %v1130 = vpop.f32.mrf.mxu0
  %v1131 = vadd.f32 %v1082, %v1130
  %v1132 = vpop.f32.mrf.mxu0
  %v1133 = vadd.f32 %v1084, %v1132
  %1134 = vmatmul.bf16.gmra.mxu0 %v530
  %v1135 = vpop.f32.mrf.mxu0
  %v1136 = vadd.f32 %v1087, %v1135
  %v1137 = vpop.f32.mrf.mxu0
  %v1138 = vadd.f32 %v1089, %v1137
  %1139 = vdwg.mxu0
  %1140 = vmatpush.bf16.msra.mxu0 %v921
  %1141 = vmatpush.bf16.msra.mxu0 %v920
  %1142 = vmatpush.bf16.msra.mxu0 %v919
  %1143 = vmatpush.bf16.msra.mxu0 %v918
  %1144 = vmatpush.bf16.msra.mxu0 %v917
  %1145 = vmatpush.bf16.msra.mxu0 %v916
  %1146 = vmatpush.bf16.msra.mxu0 %v915
  %1147 = vmatpush.bf16.msra.mxu0 %v914
  %1148 = vmatmul.bf16.gmra.mxu0 %v468
  %v1149 = vpop.f32.mrf.mxu0
  %v1150 = vadd.f32 %v1101, %v1149
  %v1151 = vpop.f32.mrf.mxu0
  %v1152 = vadd.f32 %v1103, %v1151
  %1153 = vmatmul.bf16.gmra.mxu0 %v477
  %v1154 = vpop.f32.mrf.mxu0
  %v1155 = vadd.f32 %v1106, %v1154
  %v1156 = vpop.f32.mrf.mxu0
  %v1157 = vadd.f32 %v1108, %v1156
  %1158 = vmatmul.bf16.gmra.mxu0 %v486
  %v1159 = vpop.f32.mrf.mxu0
  %v1160 = vadd.f32 %v1111, %v1159
  %v1161 = vpop.f32.mrf.mxu0
  %v1162 = vadd.f32 %v1113, %v1161
  %1163 = vmatmul.bf16.gmra.mxu0 %v495
  %v1164 = vpop.f32.mrf.mxu0
  %v1165 = vadd.f32 %v1116, %v1164
  %v1166 = vpop.f32.mrf.mxu0
  %v1167 = vadd.f32 %v1118, %v1166
  %1168 = vmatmul.bf16.gmra.mxu0 %v504
  %v1169 = vpop.f32.mrf.mxu0
  %v1170 = vadd.f32 %v1121, %v1169
  %v1171 = vpop.f32.mrf.mxu0
  %v1172 = vadd.f32 %v1123, %v1171
  %1173 = vmatmul.bf16.gmra.mxu0 %v513
  %v1174 = vpop.f32.mrf.mxu0
  %v1175 = vadd.f32 %v1126, %v1174
  %v1176 = vpop.f32.mrf.mxu0
  %v1177 = vadd.f32 %v1128, %v1176
  %1178 = vmatmul.bf16.gmra.mxu0 %v522
  %v1179 = vpop.f32.mrf.mxu0
  %v1180 = vadd.f32 %v1131, %v1179
  %v1181 = vpop.f32.mrf.mxu0
  %v1182 = vadd.f32 %v1133, %v1181
  %1183 = vmatmul.bf16.gmra.mxu0 %v531
  %v1184 = vpop.f32.mrf.mxu0
  %v1185 = vadd.f32 %v1136, %v1184
  %v1186 = vpop.f32.mrf.mxu0
  %v1187 = vadd.f32 %v1138, %v1186
  %1188 = vdwg.mxu0
  %1189 = vmatpush.bf16.msra.mxu0 %v929
  %1190 = vmatpush.bf16.msra.mxu0 %v928
  %1191 = vmatpush.bf16.msra.mxu0 %v927
  %1192 = vmatpush.bf16.msra.mxu0 %v926
  %1193 = vmatpush.bf16.msra.mxu0 %v925
  %1194 = vmatpush.bf16.msra.mxu0 %v924
  %1195 = vmatpush.bf16.msra.mxu0 %v923
  %1196 = vmatpush.bf16.msra.mxu0 %v922
  %1197 = vmatmul.bf16.gmra.mxu0 %v469
  %v1198 = vpop.f32.mrf.mxu0
  %v1199 = vadd.f32 %v1150, %v1198
  %v1200 = vpop.f32.mrf.mxu0
  %v1201 = vadd.f32 %v1152, %v1200
  %1202 = vmatmul.bf16.gmra.mxu0 %v478
  %v1203 = vpop.f32.mrf.mxu0
  %v1204 = vadd.f32 %v1155, %v1203
  %v1205 = vpop.f32.mrf.mxu0
  %v1206 = vadd.f32 %v1157, %v1205
  %1207 = vmatmul.bf16.gmra.mxu0 %v487
  %v1208 = vpop.f32.mrf.mxu0
  %v1209 = vadd.f32 %v1160, %v1208
  %v1210 = vpop.f32.mrf.mxu0
  %v1211 = vadd.f32 %v1162, %v1210
  %1212 = vmatmul.bf16.gmra.mxu0 %v496
  %v1213 = vpop.f32.mrf.mxu0
  %v1214 = vadd.f32 %v1165, %v1213
  %v1215 = vpop.f32.mrf.mxu0
  %v1216 = vadd.f32 %v1167, %v1215
  %1217 = vmatmul.bf16.gmra.mxu0 %v505
  %v1218 = vpop.f32.mrf.mxu0
  %v1219 = vadd.f32 %v1170, %v1218
  %v1220 = vpop.f32.mrf.mxu0
  %v1221 = vadd.f32 %v1172, %v1220
  %1222 = vmatmul.bf16.gmra.mxu0 %v514
  %v1223 = vpop.f32.mrf.mxu0
  %v1224 = vadd.f32 %v1175, %v1223
  %v1225 = vpop.f32.mrf.mxu0
  %v1226 = vadd.f32 %v1177, %v1225
  %1227 = vmatmul.bf16.gmra.mxu0 %v523
  %v1228 = vpop.f32.mrf.mxu0
  %v1229 = vadd.f32 %v1180, %v1228
  %v1230 = vpop.f32.mrf.mxu0
  %v1231 = vadd.f32 %v1182, %v1230
  %1232 = vmatmul.bf16.gmra.mxu0 %v532
  %v1233 = vpop.f32.mrf.mxu0
  %v1234 = vadd.f32 %v1185, %v1233
  %v1235 = vpop.f32.mrf.mxu0
  %v1236 = vadd.f32 %v1187, %v1235
  %1237 = vdwg.mxu0
  %1238 = vmatpush.bf16.msra.mxu0 %v937
  %1239 = vmatpush.bf16.msra.mxu0 %v936
  %1240 = vmatpush.bf16.msra.mxu0 %v935
  %1241 = vmatpush.bf16.msra.mxu0 %v934
  %1242 = vmatpush.bf16.msra.mxu0 %v933
  %1243 = vmatpush.bf16.msra.mxu0 %v932
  %1244 = vmatpush.bf16.msra.mxu0 %v931
  %1245 = vmatpush.bf16.msra.mxu0 %v930
  %1246 = vmatmul.bf16.gmra.mxu0 %v470
  %v1247 = vpop.f32.mrf.mxu0
  %v1248 = vadd.f32 %v1199, %v1247
  %v1249 = vpop.f32.mrf.mxu0
  %v1250 = vadd.f32 %v1201, %v1249
  %1251 = vmatmul.bf16.gmra.mxu0 %v479
  %v1252 = vpop.f32.mrf.mxu0
  %v1253 = vadd.f32 %v1204, %v1252
  %v1254 = vpop.f32.mrf.mxu0
  %v1255 = vadd.f32 %v1206, %v1254
  %1256 = vmatmul.bf16.gmra.mxu0 %v488
  %v1257 = vpop.f32.mrf.mxu0
  %v1258 = vadd.f32 %v1209, %v1257
  %v1259 = vpop.f32.mrf.mxu0
  %v1260 = vadd.f32 %v1211, %v1259
  %1261 = vmatmul.bf16.gmra.mxu0 %v497
  %v1262 = vpop.f32.mrf.mxu0
  %v1263 = vadd.f32 %v1214, %v1262
  %v1264 = vpop.f32.mrf.mxu0
  %v1265 = vadd.f32 %v1216, %v1264
  %1266 = vmatmul.bf16.gmra.mxu0 %v506
  %v1267 = vpop.f32.mrf.mxu0
  %v1268 = vadd.f32 %v1219, %v1267
  %v1269 = vpop.f32.mrf.mxu0
  %v1270 = vadd.f32 %v1221, %v1269
  %1271 = vmatmul.bf16.gmra.mxu0 %v515
  %v1272 = vpop.f32.mrf.mxu0
  %v1273 = vadd.f32 %v1224, %v1272
  %v1274 = vpop.f32.mrf.mxu0
  %v1275 = vadd.f32 %v1226, %v1274
  %1276 = vmatmul.bf16.gmra.mxu0 %v524
  %v1277 = vpop.f32.mrf.mxu0
  %v1278 = vadd.f32 %v1229, %v1277
  %v1279 = vpop.f32.mrf.mxu0
  %v1280 = vadd.f32 %v1231, %v1279
  %1281 = vmatmul.bf16.gmra.mxu0 %v533
  %v1282 = vpop.f32.mrf.mxu0
  %v1283 = vadd.f32 %v1234, %v1282
  %v1284 = vpop.f32.mrf.mxu0
  %v1285 = vadd.f32 %v1236, %v1284
  %1286 = vdwg.mxu0
  %1287 = vmatpush.bf16.msra.mxu0 %v945
  %1288 = vmatpush.bf16.msra.mxu0 %v944
  %1289 = vmatpush.bf16.msra.mxu0 %v943
  %1290 = vmatpush.bf16.msra.mxu0 %v942
  %1291 = vmatpush.bf16.msra.mxu0 %v941
  %1292 = vmatpush.bf16.msra.mxu0 %v940
  %1293 = vmatpush.bf16.msra.mxu0 %v939
  %1294 = vmatpush.bf16.msra.mxu0 %v938
  %1295 = vmatmul.bf16.gmra.mxu0 %v471
  %v1296 = vpop.f32.mrf.mxu0
  %v1297 = vadd.f32 %v1248, %v1296
  %v1298 = vpop.f32.mrf.mxu0
  %v1299 = vadd.f32 %v1250, %v1298
  %1300 = vmatmul.bf16.gmra.mxu0 %v480
  %v1301 = vpop.f32.mrf.mxu0
  %v1302 = vadd.f32 %v1253, %v1301
  %v1303 = vpop.f32.mrf.mxu0
  %v1304 = vadd.f32 %v1255, %v1303
  %1305 = vmatmul.bf16.gmra.mxu0 %v489
  %v1306 = vpop.f32.mrf.mxu0
  %v1307 = vadd.f32 %v1258, %v1306
  %v1308 = vpop.f32.mrf.mxu0
  %v1309 = vadd.f32 %v1260, %v1308
  %1310 = vmatmul.bf16.gmra.mxu0 %v498
  %v1311 = vpop.f32.mrf.mxu0
  %v1312 = vadd.f32 %v1263, %v1311
  %v1313 = vpop.f32.mrf.mxu0
  %v1314 = vadd.f32 %v1265, %v1313
  %1315 = vmatmul.bf16.gmra.mxu0 %v507
  %v1316 = vpop.f32.mrf.mxu0
  %v1317 = vadd.f32 %v1268, %v1316
  %v1318 = vpop.f32.mrf.mxu0
  %v1319 = vadd.f32 %v1270, %v1318
  %1320 = vmatmul.bf16.gmra.mxu0 %v516
  %v1321 = vpop.f32.mrf.mxu0
  %v1322 = vadd.f32 %v1273, %v1321
  %v1323 = vpop.f32.mrf.mxu0
  %v1324 = vadd.f32 %v1275, %v1323
  %1325 = vmatmul.bf16.gmra.mxu0 %v525
  %v1326 = vpop.f32.mrf.mxu0
  %v1327 = vadd.f32 %v1278, %v1326
  %v1328 = vpop.f32.mrf.mxu0
  %v1329 = vadd.f32 %v1280, %v1328
  %1330 = vmatmul.bf16.gmra.mxu0 %v534
  %v1331 = vpop.f32.mrf.mxu0
  %v1332 = vadd.f32 %v1283, %v1331
  %v1333 = vpop.f32.mrf.mxu0
  %v1334 = vadd.f32 %v1285, %v1333
  %1335 = vdwg.mxu0
  %1336 = vmatpush.bf16.msra.mxu0 %v953
  %1337 = vmatpush.bf16.msra.mxu0 %v952
  %1338 = vmatpush.bf16.msra.mxu0 %v951
  %1339 = vmatpush.bf16.msra.mxu0 %v950
  %1340 = vmatpush.bf16.msra.mxu0 %v949
  %1341 = vmatpush.bf16.msra.mxu0 %v948
  %1342 = vmatpush.bf16.msra.mxu0 %v947
  %1343 = vmatpush.bf16.msra.mxu0 %v946
  %1344 = vmatmul.bf16.gmra.mxu0 %v472
  %v1345 = vpop.f32.mrf.mxu0
  %v1346 = vadd.f32 %v1297, %v1345
  %v1347 = vpop.f32.mrf.mxu0
  %v1348 = vadd.f32 %v1299, %v1347
  %1349 = vmatmul.bf16.gmra.mxu0 %v481
  %v1350 = vpop.f32.mrf.mxu0
  %v1351 = vadd.f32 %v1302, %v1350
  %v1352 = vpop.f32.mrf.mxu0
  %v1353 = vadd.f32 %v1304, %v1352
  %1354 = vmatmul.bf16.gmra.mxu0 %v490
  %v1355 = vpop.f32.mrf.mxu0
  %v1356 = vadd.f32 %v1307, %v1355
  %v1357 = vpop.f32.mrf.mxu0
  %v1358 = vadd.f32 %v1309, %v1357
  %1359 = vmatmul.bf16.gmra.mxu0 %v499
  %v1360 = vpop.f32.mrf.mxu0
  %v1361 = vadd.f32 %v1312, %v1360
  %v1362 = vpop.f32.mrf.mxu0
  %v1363 = vadd.f32 %v1314, %v1362
  %1364 = vmatmul.bf16.gmra.mxu0 %v508
  %v1365 = vpop.f32.mrf.mxu0
  %v1366 = vadd.f32 %v1317, %v1365
  %v1367 = vpop.f32.mrf.mxu0
  %v1368 = vadd.f32 %v1319, %v1367
  %1369 = vmatmul.bf16.gmra.mxu0 %v517
  %v1370 = vpop.f32.mrf.mxu0
  %v1371 = vadd.f32 %v1322, %v1370
  %v1372 = vpop.f32.mrf.mxu0
  %v1373 = vadd.f32 %v1324, %v1372
  %1374 = vmatmul.bf16.gmra.mxu0 %v526
  %v1375 = vpop.f32.mrf.mxu0
  %v1376 = vadd.f32 %v1327, %v1375
  %v1377 = vpop.f32.mrf.mxu0
  %v1378 = vadd.f32 %v1329, %v1377
  %1379 = vmatmul.bf16.gmra.mxu0 %v535
  %v1380 = vpop.f32.mrf.mxu0
  %v1381 = vadd.f32 %v1332, %v1380
  %v1382 = vpop.f32.mrf.mxu0
  %v1383 = vadd.f32 %v1334, %v1382
  %1384 = vdwg.mxu0
  %1385 = vmatpush.bf16.msra.mxu0 %v961
  %1386 = vmatpush.bf16.msra.mxu0 %v960
  %1387 = vmatpush.bf16.msra.mxu0 %v959
  %1388 = vmatpush.bf16.msra.mxu0 %v958
  %1389 = vmatpush.bf16.msra.mxu0 %v957
  %1390 = vmatpush.bf16.msra.mxu0 %v956
  %1391 = vmatpush.bf16.msra.mxu0 %v955
  %1392 = vmatpush.bf16.msra.mxu0 %v954
  %1393 = vmatmul.bf16.gmra.mxu0 %v473
  %v1394 = vpop.f32.mrf.mxu0
  %v1395 = vadd.f32 %v1346, %v1394
  %v1396 = vpop.f32.mrf.mxu0
  %v1397 = vadd.f32 %v1348, %v1396
  %1398 = vmatmul.bf16.gmra.mxu0 %v482
  %v1399 = vpop.f32.mrf.mxu0
  %v1400 = vadd.f32 %v1351, %v1399
  %v1401 = vpop.f32.mrf.mxu0
  %v1402 = vadd.f32 %v1353, %v1401
  %1403 = vmatmul.bf16.gmra.mxu0 %v491
  %v1404 = vpop.f32.mrf.mxu0
  %v1405 = vadd.f32 %v1356, %v1404
  %v1406 = vpop.f32.mrf.mxu0
  %v1407 = vadd.f32 %v1358, %v1406
  %1408 = vmatmul.bf16.gmra.mxu0 %v500
  %v1409 = vpop.f32.mrf.mxu0
  %v1410 = vadd.f32 %v1361, %v1409
  %v1411 = vpop.f32.mrf.mxu0
  %v1412 = vadd.f32 %v1363, %v1411
  %1413 = vmatmul.bf16.gmra.mxu0 %v509
  %v1414 = vpop.f32.mrf.mxu0
  %v1415 = vadd.f32 %v1366, %v1414
  %v1416 = vpop.f32.mrf.mxu0
  %v1417 = vadd.f32 %v1368, %v1416
  %1418 = vmatmul.bf16.gmra.mxu0 %v518
  %v1419 = vpop.f32.mrf.mxu0
  %v1420 = vadd.f32 %v1371, %v1419
  %v1421 = vpop.f32.mrf.mxu0
  %v1422 = vadd.f32 %v1373, %v1421
  %1423 = vmatmul.bf16.gmra.mxu0 %v527
  %v1424 = vpop.f32.mrf.mxu0
  %v1425 = vadd.f32 %v1376, %v1424
  %v1426 = vpop.f32.mrf.mxu0
  %v1427 = vadd.f32 %v1378, %v1426
  %1428 = vmatmul.bf16.gmra.mxu0 %v536
  %v1429 = vpop.f32.mrf.mxu0
  %v1430 = vadd.f32 %v1381, %v1429
  %v1431 = vpop.f32.mrf.mxu0
  %v1432 = vadd.f32 %v1383, %v1431
  %1433 = vdwg.mxu0
  %1434 = vmatpush.bf16.msra.mxu0 %v969
  %1435 = vmatpush.bf16.msra.mxu0 %v968
  %1436 = vmatpush.bf16.msra.mxu0 %v967
  %1437 = vmatpush.bf16.msra.mxu0 %v966
  %1438 = vmatpush.bf16.msra.mxu0 %v965
  %1439 = vmatpush.bf16.msra.mxu0 %v964
  %1440 = vmatpush.bf16.msra.mxu0 %v963
  %1441 = vmatpush.bf16.msra.mxu0 %v962
  %1442 = vmatmul.bf16.gmra.mxu0 %v474
  %v1443 = vpop.f32.mrf.mxu0
  %v1444 = vadd.f32 %v1395, %v1443
  %v1445 = vpop.f32.mrf.mxu0
  %v1446 = vadd.f32 %v1397, %v1445
  %1447 = vmatmul.bf16.gmra.mxu0 %v483
  %v1448 = vpop.f32.mrf.mxu0
  %v1449 = vadd.f32 %v1400, %v1448
  %v1450 = vpop.f32.mrf.mxu0
  %v1451 = vadd.f32 %v1402, %v1450
  %1452 = vmatmul.bf16.gmra.mxu0 %v492
  %v1453 = vpop.f32.mrf.mxu0
  %v1454 = vadd.f32 %v1405, %v1453
  %v1455 = vpop.f32.mrf.mxu0
  %v1456 = vadd.f32 %v1407, %v1455
  %1457 = vmatmul.bf16.gmra.mxu0 %v501
  %v1458 = vpop.f32.mrf.mxu0
  %v1459 = vadd.f32 %v1410, %v1458
  %v1460 = vpop.f32.mrf.mxu0
  %v1461 = vadd.f32 %v1412, %v1460
  %1462 = vmatmul.bf16.gmra.mxu0 %v510
  %v1463 = vpop.f32.mrf.mxu0
  %v1464 = vadd.f32 %v1415, %v1463
  %v1465 = vpop.f32.mrf.mxu0
  %v1466 = vadd.f32 %v1417, %v1465
  %1467 = vmatmul.bf16.gmra.mxu0 %v519
  %v1468 = vpop.f32.mrf.mxu0
  %v1469 = vadd.f32 %v1420, %v1468
  %v1470 = vpop.f32.mrf.mxu0
  %v1471 = vadd.f32 %v1422, %v1470
  %1472 = vmatmul.bf16.gmra.mxu0 %v528
  %v1473 = vpop.f32.mrf.mxu0
  %v1474 = vadd.f32 %v1425, %v1473
  %v1475 = vpop.f32.mrf.mxu0
  %v1476 = vadd.f32 %v1427, %v1475
  %1477 = vmatmul.bf16.gmra.mxu0 %v537
  %v1478 = vpop.f32.mrf.mxu0
  %v1479 = vadd.f32 %v1430, %v1478
  %v1480 = vpop.f32.mrf.mxu0
  %v1481 = vadd.f32 %v1432, %v1480
  %1482 = vdwg.mxu0
  %v1483 = vmax.f32 %v1444, 0.0
  %v1484 = vmax.f32 %v1446, 0.0
  %v1485 = vmax.f32 %v1449, 0.0
  %v1486 = vmax.f32 %v1451, 0.0
  %v1487 = vmax.f32 %v1454, 0.0
  %v1488 = vmax.f32 %v1456, 0.0
  %v1489 = vmax.f32 %v1459, 0.0
  %v1490 = vmax.f32 %v1461, 0.0
  %v1491 = vmax.f32 %v1464, 0.0
  %v1492 = vmax.f32 %v1466, 0.0
  %v1493 = vmax.f32 %v1469, 0.0
  %v1494 = vmax.f32 %v1471, 0.0
  %v1495 = vmax.f32 %v1474, 0.0
  %v1496 = vmax.f32 %v1476, 0.0
  %v1497 = vmax.f32 %v1479, 0.0
  %v1498 = vmax.f32 %v1481, 0.0
  %v1499 = vpack.c.bf16 %v1483, %v1483
  %v1500 = vpack.c.bf16 %v1484, %v1484
  %v1501 = vpack.c.bf16 %v1485, %v1485
  %v1502 = vpack.c.bf16 %v1486, %v1486
  %v1503 = vpack.c.bf16 %v1487, %v1487
  %v1504 = vpack.c.bf16 %v1488, %v1488
  %v1505 = vpack.c.bf16 %v1489, %v1489
  %v1506 = vpack.c.bf16 %v1490, %v1490
  %v1507 = vpack.c.bf16 %v1491, %v1491
  %v1508 = vpack.c.bf16 %v1492, %v1492
  %v1509 = vpack.c.bf16 %v1493, %v1493
  %v1510 = vpack.c.bf16 %v1494, %v1494
  %v1511 = vpack.c.bf16 %v1495, %v1495
  %v1512 = vpack.c.bf16 %v1496, %v1496
  %v1513 = vpack.c.bf16 %v1497, %v1497
  %v1514 = vpack.c.bf16 %v1498, %v1498
  %1515 = vst [vmem:[%s3] sm:$0xf] %v1499
  %1516 = vst [vmem:[%s3 + $0x4] sm:$0xf] %v1500
  %1517 = vst [vmem:[%s3 + $0x8] sm:$0xf] %v1501
  %1518 = vst [vmem:[%s3 + $0xc] sm:$0xf] %v1502
  %1519 = vst [vmem:[%s3 + $0x10] sm:$0xf] %v1503
  %1520 = vst [vmem:[%s3 + $0x14] sm:$0xf] %v1504
  %1521 = vst [vmem:[%s3 + $0x18] sm:$0xf] %v1505
  %1522 = vst [vmem:[%s3 + $0x1c] sm:$0xf] %v1506
  %1523 = vst [vmem:[%s3 + $0x20] sm:$0xf] %v1507
  %1524 = vst [vmem:[%s3 + $0x24] sm:$0xf] %v1508
  %1525 = vst [vmem:[%s3 + $0x28] sm:$0xf] %v1509
  %1526 = vst [vmem:[%s3 + $0x2c] sm:$0xf] %v1510
  %1527 = vst [vmem:[%s3 + $0x30] sm:$0xf] %v1511
  %1528 = vst [vmem:[%s3 + $0x34] sm:$0xf] %v1512
  %1529 = vst [vmem:[%s3 + $0x38] sm:$0xf] %v1513
  %1530 = vst [vmem:[%s3 + $0x3c] sm:$0xf] %v1514
  // Predicated region
  $region14: #{residual_block_forward.2} parent=0 // pred_check
    _
  $region15: #{residual_block_forward.2} parent=0 // pred_check_branch
    %1532 = sbr.rel (0) target = $region17
  $region16: #{residual_block_forward.2} parent=0 // pred_region
    _
  $region17: #{residual_block_forward.2} parent=0 // pred_fallthru
    _
  // Predicated region
  $region18: #{residual_block_forward.2} parent=0 // pred_check
    _
  $region19: #{residual_block_forward.2} parent=0 // pred_check_branch
    %1534 = sbr.rel (0) target = $region21
  $region20: #{residual_block_forward.2} parent=0 // pred_region
    _
  $region21: #{residual_block_forward.2} parent=0 // pred_fallthru
    _

// kernel: residual_block_forward.3
$region0: #{residual_block_forward.3}
  #allocation0 [shape = 'u32[]', space=smem, size = 0x4, offset = 0x4, fixed_abs, tag = 'smem constant byte address 0x4 - core index']
  #allocation1 [shape = 'u32[72,128]{1,0:T(1,128)}', space=vmem, size = 0x9000, scoped, tag = 'internal scratch']
  %s0 = inlined_call_operand.vmem [shape: bf16[288,128], index: 0, kind: input, shape index: {}]
  %s1 = inlined_call_operand.vmem [shape: bf16[9,128,128], index: 1, kind: input, shape index: {}]
  %s2 = inlined_call_operand.vmem [shape: f32[1,128], index: 2, kind: input, shape index: {}]
  %s3 = inlined_call_operand.vmem [shape: bf16[256,128], index: 3, kind: input, shape index: {}]
  %s4 = inlined_call_operand.vmem [shape: bf16[128,128], index: 4, kind: input, shape index: {}]
  %s5 = inlined_call_operand.vmem [shape: f32[256,128], index: 5, kind: output, shape index: {}]
  %s6 = sld [smem:[#allocation0]]
  $region53: #{residual_block_forward.3} parent=0
    _
  %s8 = ssub.s32 1, %s6
  %s9 = scalar_select 0, %s8, %s6
  loop: start=0, step=1, limit=4
  $region2: #{residual_block_forward.3} parent=0 // loop_pre_header
    _
  $region3: #{residual_block_forward.3} parent=0 // loop_header
    %s11 = sphi 0, %s15
    %p12 = scmp.ge.s32.totalorder %s11, 4
    %s19 = sphi 0, %s19
    %s21 = sphi 0, %s19
    %s22 = sphi 0, %s21
    %s36 = sphi 0, %s22
    %s40 = sphi 0, %s40
    %s42 = sphi 0, %s40
    %s43 = sphi 0, %s42
    %s57 = sphi 0, %s43
    %s61 = sphi 0, %s61
    %s63 = sphi 0, %s61
    %s64 = sphi 0, %s63
    %s78 = sphi 0, %s64
    %s84 = sphi 0, %s86
    %s87 = sphi 0, %s84
    %s88 = sphi 0, %s87
    %s104 = sphi 0, %s88
    %s108 = sphi 0, %s108
    %s110 = sphi 0, %s108
    %s111 = sphi 0, %s110
    %s125 = sphi 0, %s111
    %s131 = sphi 0, %s133
    %s134 = sphi 0, %s131
    %s135 = sphi 0, %s134
    %s151 = sphi 0, %s135
  $region4: #{residual_block_forward.3} parent=0 // loop_header_branch
    %14 = sbr.rel (%p12) target = $region8
  $region5: #{residual_block_forward.3} parent=0 // loop_body
    %s16 = ssub.s32 %s11, 1
    %s17 = ssub.s32 %s11, 2
    %s18 = sadd.s32 %s11, 1
    %s20 = sadd.s32 %s19, 1
    %p23 = scmp.eq.s32.totalorder %s11, 1
    %p24 = scmp.ne.s32.totalorder %s19, %s21
    %p25 = scmp.eq.s32.totalorder %s11, 0
    %p26 = por %p24, %p25
    %p27 = scmp.ne.s32.totalorder %s19, %s21
    %p28 = scmp.eq.s32.totalorder %s16, 1
    %p29 = por %p27, %p28
    %p30 = scmp.ne.s32.totalorder %s21, %s22
    %p31 = scmp.eq.s32.totalorder %s16, 0
    %p32 = por %p30, %p31
    %p33 = scmp.ne.s32.totalorder %s21, %s22
    %p34 = scmp.eq.s32.totalorder %s17, 1
    %p35 = por %p33, %p34
    %p37 = scmp.ne.s32.totalorder %s22, %s36
    %p38 = scmp.eq.s32.totalorder %s17, 0
    %p39 = por %p37, %p38
    %s41 = sadd.s32 %s40, 1
    %p44 = scmp.eq.s32.totalorder %s11, 1
    %p45 = scmp.ne.s32.totalorder %s40, %s42
    %p46 = scmp.eq.s32.totalorder %s11, 0
    %p47 = por %p45, %p46
    %p48 = scmp.ne.s32.totalorder %s40, %s42
    %p49 = scmp.eq.s32.totalorder %s16, 1
    %p50 = por %p48, %p49
    %p51 = scmp.ne.s32.totalorder %s42, %s43
    %p52 = scmp.eq.s32.totalorder %s16, 0
    %p53 = por %p51, %p52
    %p54 = scmp.ne.s32.totalorder %s42, %s43
    %p55 = scmp.eq.s32.totalorder %s17, 1
    %p56 = por %p54, %p55
    %p58 = scmp.ne.s32.totalorder %s43, %s57
    %p59 = scmp.eq.s32.totalorder %s17, 0
    %p60 = por %p58, %p59
    %s62 = sadd.s32 %s61, 1
    %p65 = scmp.eq.s32.totalorder %s11, 1
    %p66 = scmp.ne.s32.totalorder %s61, %s63
    %p67 = scmp.eq.s32.totalorder %s11, 0
    %p68 = por %p66, %p67
    %p69 = scmp.ne.s32.totalorder %s61, %s63
    %p70 = scmp.eq.s32.totalorder %s16, 1
    %p71 = por %p69, %p70
    %p72 = scmp.ne.s32.totalorder %s63, %s64
    %p73 = scmp.eq.s32.totalorder %s16, 0
    %p74 = por %p72, %p73
    %p75 = scmp.ne.s32.totalorder %s63, %s64
    %p76 = scmp.eq.s32.totalorder %s17, 1
    %p77 = por %p75, %p76
    %p79 = scmp.ne.s32.totalorder %s64, %s78
    %p80 = scmp.eq.s32.totalorder %s17, 0
    %p81 = por %p79, %p80
    %s82 = ssub.s32 %s11, %s18
    %p83 = scmp.eq.s32.totalorder %s82, 0
    %s85 = sadd.s32 %s84, 1
    %s86 = scalar_select %p83, %s84, %s85
    %p89 = pneg %p83
    %p90 = scmp.eq.s32.totalorder %s11, 1
    %p91 = por %p89, %p90
    %p92 = scmp.ne.s32.totalorder %s84, %s87
    %p93 = scmp.eq.s32.totalorder %s11, 0
    %p94 = por %p92, %p93
    %p95 = scmp.ne.s32.totalorder %s84, %s87
    %p96 = scmp.eq.s32.totalorder %s16, 1
    %p97 = por %p95, %p96
    %p98 = scmp.ne.s32.totalorder %s87, %s88
    %p99 = scmp.eq.s32.totalorder %s16, 0
    %p100 = por %p98, %p99
    %p101 = scmp.ne.s32.totalorder %s87, %s88
    %p102 = scmp.eq.s32.totalorder %s17, 1
    %p103 = por %p101, %p102
    %p105 = scmp.ne.s32.totalorder %s88, %s104
    %p106 = scmp.eq.s32.totalorder %s17, 0
    %p107 = por %p105, %p106
    %s109 = sadd.s32 %s108, 1
    %p112 = scmp.eq.s32.totalorder %s11, 1
    %p113 = scmp.ne.s32.totalorder %s108, %s110
    %p114 = scmp.eq.s32.totalorder %s11, 0
    %p115 = por %p113, %p114
    %p116 = scmp.ne.s32.totalorder %s108, %s110
    %p117 = scmp.eq.s32.totalorder %s16, 1
    %p118 = por %p116, %p117
    %p119 = scmp.ne.s32.totalorder %s110, %s111
    %p120 = scmp.eq.s32.totalorder %s16, 0
    %p121 = por %p119, %p120
    %p122 = scmp.ne.s32.totalorder %s110, %s111
    %p123 = scmp.eq.s32.totalorder %s17, 1
    %p124 = por %p122, %p123
    %p126 = scmp.ne.s32.totalorder %s111, %s125
    %p127 = scmp.eq.s32.totalorder %s17, 0
    %p128 = por %p126, %p127
    %s129 = ssub.s32 %s11, %s18
    %p130 = scmp.eq.s32.totalorder %s129, 0
    %s132 = sadd.s32 %s131, 1
    %s133 = scalar_select %p130, %s131, %s132
    %p136 = pneg %p130
    %p137 = scmp.eq.s32.totalorder %s11, 1
    %p138 = por %p136, %p137
    %p139 = scmp.ne.s32.totalorder %s131, %s134
    %p140 = scmp.eq.s32.totalorder %s11, 0
    %p141 = por %p139, %p140
    %p142 = scmp.ne.s32.totalorder %s131, %s134
    %p143 = scmp.eq.s32.totalorder %s16, 1
    %p144 = por %p142, %p143
    %p145 = scmp.ne.s32.totalorder %s134, %s135
    %p146 = scmp.eq.s32.totalorder %s16, 0
    %p147 = por %p145, %p146
    %p148 = scmp.ne.s32.totalorder %s134, %s135
    %p149 = scmp.eq.s32.totalorder %s17, 1
    %p150 = por %p148, %p149
    %p152 = scmp.ne.s32.totalorder %s135, %s151
    %p153 = scmp.eq.s32.totalorder %s17, 0
    %p154 = por %p152, %p153
    %p155 = scmp.le.s32.totalorder 1, %s11
    %p156 = scmp.lt.s32.totalorder %s11, 3
    %p157 = pnand %p155, %p156
    %p158 = pneg %p157
    // Predicated region
    $region9: #{residual_block_forward.3} parent=5 // pred_check
      _
    $region10: #{residual_block_forward.3} parent=5 // pred_check_branch
      %160 = sbr.rel (%p157) target = $region12
    $region11: #{residual_block_forward.3} parent=5 // pred_region
      %s161 = ssub.s32 %s11, 1
      // Predicated region
      $region13: #{residual_block_forward.3} parent=11 // pred_check
        %p162 = pneg %p32
      $region14: #{residual_block_forward.3} parent=11 // pred_check_branch
        %164 = sbr.rel (%p162) target = $region16
      $region15: #{residual_block_forward.3} parent=11 // pred_region
        _
      $region16: #{residual_block_forward.3} parent=11 // pred_fallthru
        _
      // Predicated region
      $region17: #{residual_block_forward.3} parent=11 // pred_check
        %p165 = pneg %p53
      $region18: #{residual_block_forward.3} parent=11 // pred_check_branch
        %167 = sbr.rel (%p165) target = $region20
      $region19: #{residual_block_forward.3} parent=11 // pred_region
        _
      $region20: #{residual_block_forward.3} parent=11 // pred_fallthru
        _
      // Predicated region
      $region21: #{residual_block_forward.3} parent=11 // pred_check
        %p168 = pneg %p74
      $region22: #{residual_block_forward.3} parent=11 // pred_check_branch
        %170 = sbr.rel (%p168) target = $region24
      $region23: #{residual_block_forward.3} parent=11 // pred_region
        _
      $region24: #{residual_block_forward.3} parent=11 // pred_fallthru
        _
      // Predicated region
      $region25: #{residual_block_forward.3} parent=11 // pred_check
        %p171 = pneg %p121
      $region26: #{residual_block_forward.3} parent=11 // pred_check_branch
        %173 = sbr.rel (%p171) target = $region28
      $region27: #{residual_block_forward.3} parent=11 // pred_region
        _
      $region28: #{residual_block_forward.3} parent=11 // pred_fallthru
        _
    $region12: #{residual_block_forward.3} parent=5 // pred_fallthru
      _
    %p174 = scmp.lt.s32.totalorder %s11, 2
    // Predicated region
    $region29: #{residual_block_forward.3} parent=5 // pred_check
      %p175 = pneg %p174
    $region30: #{residual_block_forward.3} parent=5 // pred_check_branch
      %177 = sbr.rel (%p175) target = $region32
    $region31: #{residual_block_forward.3} parent=5 // pred_region
      // Predicated region
      $region33: #{residual_block_forward.3} parent=31 // pred_check
        %p178 = pneg %p94
      $region34: #{residual_block_forward.3} parent=31 // pred_check_branch
        %180 = sbr.rel (%p178) target = $region36
      $region35: #{residual_block_forward.3} parent=31 // pred_region
        %s181 = smul.u32 16, %s11
        %p182 = scmp.lt.s32.totalorder %s181, 31
        %s183 = scalar_select %p182, %s181, 31
        %s184 = smul.addr %s183, 4
        %s185 = scalar_lea.vmem %s3, %s184
        %s186 = smul.u32 16, %s11
      $region36: #{residual_block_forward.3} parent=31 // pred_fallthru
        _
    $region32: #{residual_block_forward.3} parent=5 // pred_fallthru
      _
    %p187 = scmp.le.s32.totalorder 1, %s11
    %p188 = scmp.lt.s32.totalorder %s11, 3
    %p189 = pnand %p187, %p188
    %p190 = pneg %p189
    // Predicated region
    $region37: #{residual_block_forward.3} parent=5 // pred_check
      _
    $region38: #{residual_block_forward.3} parent=5 // pred_check_branch
      %192 = sbr.rel (%p189) target = $region40
    $region39: #{residual_block_forward.3} parent=5 // pred_region
      %s193 = ssub.s32 %s11, 1
      %p194 = pneg %p32
      %p195 = pneg %p29
      %p196 = pneg %p53
      %p197 = pneg %p50
      %p198 = pneg %p74
      %p199 = pneg %p71
      %s200 = smul.u32 16, %s16
      %p201 = scmp.lt.s32.totalorder %s200, 31
      %s202 = scalar_select %p201, %s200, 31
      %s203 = smul.addr %s202, 4
      %s204 = scalar_lea.vmem %s3, %s203
      %p205 = pneg %p100
      %p206 = pneg %p97
      %p207 = pneg %p121
      %p208 = pneg %p118
      %p209 = pneg %p147
      %p210 = pneg %p144
      %s211 = smul.u32 16, %s16
      %p212 = scmp.lt.s32.totalorder %s211, 31
      %s213 = scalar_select %p212, %s211, 31
      %s214 = smul.addr %s213, 8
      %s215 = scalar_lea.vmem %s5, %s214
      %s216 = smul.u32 16, %s16
      %p217 = scmp.lt.s32.totalorder %s216, 31
      %s218 = scalar_select %p217, %s216, 31
      %s219 = smul.addr %s218, 4
      %s220 = scalar_lea.vmem %s3, %s219
      %s221 = smul.u32 16, %s16
      %s222 = smul.u32 16, %s16
      %p223 = scmp.lt.s32.totalorder %s222, 31
      %s224 = scalar_select %p223, %s222, 31
      %s225 = smul.addr %s224, 8
      %s226 = scalar_lea.vmem %s5, %s225
      %s227 = smul.u32 16, %s16
      %s228 = smul.u32 %s16, 128
      %s229 = sshra.s32 %s228, 3
      %s230 = sand.u32 %s228, 7
      %s231 = smul.addr %s229, 4
      %s232 = scalar_lea.vmem %s0, %s231
      %v233 = vld [vmem:[%s232] sm:$0xf]
      %v234 = vld [vmem:[%s232 + $0x4] sm:$0xf]
      %v235 = vld [vmem:[%s232 + $0x8] sm:$0xf]
      %v236 = vld [vmem:[%s232 + $0xc] sm:$0xf]
      %v237 = vld [vmem:[%s232 + $0x10] sm:$0xf]
      %v238 = vld [vmem:[%s232 + $0x14] sm:$0xf]
      %v239 = vld [vmem:[%s232 + $0x18] sm:$0xf]
      %v240 = vld [vmem:[%s232 + $0x1c] sm:$0xf]
      %v241 = vld [vmem:[%s232 + $0x20] sm:$0xf]
      %v242 = vld [vmem:[%s232 + $0x24] sm:$0xf]
      %v243 = vld [vmem:[%s232 + $0x28] sm:$0xf]
      %v244 = vld [vmem:[%s232 + $0x2c] sm:$0xf]
      %v245 = vld [vmem:[%s232 + $0x30] sm:$0xf]
      %v246 = vld [vmem:[%s232 + $0x34] sm:$0xf]
      %v247 = vld [vmem:[%s232 + $0x38] sm:$0xf]
      %v248 = vld [vmem:[%s232 + $0x3c] sm:$0xf]
      %v249 = vld [vmem:[%s232 + $0x40] sm:$0xf]
      %v250 = vld [vmem:[%s232 + $0x44] sm:$0xf]
      %v251 = vld [vmem:[%s232 + $0x48] sm:$0xf]
      %v252 = vld [vmem:[%s1] sm:$0xf]
      %v253 = vld [vmem:[%s1 + $0x4] sm:$0xf]
      %v254 = vld [vmem:[%s1 + $0x8] sm:$0xf]
      %v255 = vld [vmem:[%s1 + $0xc] sm:$0xf]
      %v256 = vld [vmem:[%s1 + $0x10] sm:$0xf]
      %v257 = vld [vmem:[%s1 + $0x14] sm:$0xf]
      %v258 = vld [vmem:[%s1 + $0x18] sm:$0xf]
      %v259 = vld [vmem:[%s1 + $0x1c] sm:$0xf]
      %v260 = vld [vmem:[%s1 + $0x20] sm:$0xf]
      %v261 = vld [vmem:[%s1 + $0x24] sm:$0xf]
      %v262 = vld [vmem:[%s1 + $0x28] sm:$0xf]
      %v263 = vld [vmem:[%s1 + $0x2c] sm:$0xf]
      %v264 = vld [vmem:[%s1 + $0x30] sm:$0xf]
      %v265 = vld [vmem:[%s1 + $0x34] sm:$0xf]
      %v266 = vld [vmem:[%s1 + $0x38] sm:$0xf]
      %v267 = vld [vmem:[%s1 + $0x3c] sm:$0xf]
      %s268 = scalar_lea.vmem %s1, 64
      %v269 = vld [vmem:[%s268] sm:$0xf]
      %v270 = vld [vmem:[%s268 + $0x4] sm:$0xf]
      %v271 = vld [vmem:[%s268 + $0x8] sm:$0xf]
      %v272 = vld [vmem:[%s268 + $0xc] sm:$0xf]
      %v273 = vld [vmem:[%s268 + $0x10] sm:$0xf]
      %v274 = vld [vmem:[%s268 + $0x14] sm:$0xf]
      %v275 = vld [vmem:[%s268 + $0x18] sm:$0xf]
      %v276 = vld [vmem:[%s268 + $0x1c] sm:$0xf]
      %v277 = vld [vmem:[%s268 + $0x20] sm:$0xf]
      %v278 = vld [vmem:[%s268 + $0x24] sm:$0xf]
      %v279 = vld [vmem:[%s268 + $0x28] sm:$0xf]
      %v280 = vld [vmem:[%s268 + $0x2c] sm:$0xf]
      %v281 = vld [vmem:[%s268 + $0x30] sm:$0xf]
      %v282 = vld [vmem:[%s268 + $0x34] sm:$0xf]
      %v283 = vld [vmem:[%s268 + $0x38] sm:$0xf]
      %v284 = vld [vmem:[%s268 + $0x3c] sm:$0xf]
      %v302 = vunpack.c.l.b16 %v233
      %v303 = vunpack.c.l.b16 %v234
      %v304 = vunpack.c.l.b16 %v235
      %v305 = vunpack.c.l.b16 %v236
      %v306 = vunpack.c.l.b16 %v237
      %v307 = vunpack.c.l.b16 %v238
      %v308 = vunpack.c.l.b16 %v239
      %v309 = vunpack.c.l.b16 %v240
      %v310 = vunpack.c.l.b16 %v241
      %v311 = vunpack.c.l.b16 %v242
      %v312 = vunpack.c.l.b16 %v243
      %v313 = vunpack.c.l.b16 %v244
      %v314 = vunpack.c.l.b16 %v245
      %v315 = vunpack.c.l.b16 %v246
      %v316 = vunpack.c.l.b16 %v247
      %v317 = vunpack.c.l.b16 %v248
      %v318 = vunpack.c.l.b16 %v249
      %v319 = vpack.c.b16 %v303, %v302
      %v320 = vpack.c.b16 %v305, %v304
      %v321 = vpack.c.b16 %v307, %v306
      %v322 = vpack.c.b16 %v309, %v308
      %v323 = vpack.c.b16 %v311, %v310
      %v324 = vpack.c.b16 %v313, %v312
      %v325 = vpack.c.b16 %v315, %v314
      %v326 = vpack.c.b16 %v317, %v316
      %v327 = vpack.c.b16 %v318, %v318
      %vm328 = vsmask.f32 7424
      %v330 = vshrl.u32 %v319, 16
      %v332 = vshll.u32 %v319, 16
      %v334 = vrot.slane %v332, 1
      %v335 = vor.u32 %v330, %v334
      %v337 = vshll.u32 %v320, 16
      %v339 = vrot.slane %v337, 1
      %v340 = vsel %vm328, %v335, %v339
      %v341 = vshrl.u32 %v320, 16
      %v343 = vor.u32 %v341, %v339
      %v345 = vshll.u32 %v321, 16
      %v347 = vrot.slane %v345, 1
      %v348 = vsel %vm328, %v343, %v347
      %v349 = vshrl.u32 %v321, 16
      %v351 = vor.u32 %v349, %v347
      %v353 = vshll.u32 %v322, 16
      %v355 = vrot.slane %v353, 1
      %v356 = vsel %vm328, %v351, %v355
      %v357 = vshrl.u32 %v322, 16
      %v359 = vor.u32 %v357, %v355
      %v361 = vshll.u32 %v323, 16
      %v363 = vrot.slane %v361, 1
      %v364 = vsel %vm328, %v359, %v363
      %v365 = vshrl.u32 %v323, 16
      %v367 = vor.u32 %v365, %v363
      %v369 = vshll.u32 %v324, 16
      %v371 = vrot.slane %v369, 1
      %v372 = vsel %vm328, %v367, %v371
      %v373 = vshrl.u32 %v324, 16
      %v375 = vor.u32 %v373, %v371
      %v377 = vshll.u32 %v325, 16
      %v379 = vrot.slane %v377, 1
      %v380 = vsel %vm328, %v375, %v379
      %v381 = vshrl.u32 %v325, 16
      %v383 = vor.u32 %v381, %v379
      %v385 = vshll.u32 %v326, 16
      %v387 = vrot.slane %v385, 1
      %v388 = vsel %vm328, %v383, %v387
      %v389 = vshrl.u32 %v326, 16
      %v391 = vor.u32 %v389, %v387
      %v393 = vshll.u32 %v327, 16
      %v395 = vrot.slane %v393, 1
      %v396 = vsel %vm328, %v391, %v395
      %v421 = vunpack.c.l.b16 %v269
      %v422 = vunpack.c.l.b16 %v270
      %v423 = vunpack.c.l.b16 %v271
      %v424 = vunpack.c.l.b16 %v272
      %v425 = vunpack.c.l.b16 %v273
      %v426 = vunpack.c.l.b16 %v274
      %v427 = vunpack.c.l.b16 %v275
      %v428 = vunpack.c.l.b16 %v276
      %v429 = vunpack.c.l.b16 %v277
      %v430 = vunpack.c.l.b16 %v278
      %v431 = vunpack.c.l.b16 %v279
      %v432 = vunpack.c.l.b16 %v280
      %v433 = vunpack.c.l.b16 %v281
      %v434 = vunpack.c.l.b16 %v282
      %v435 = vunpack.c.l.b16 %v283
      %v436 = vunpack.c.l.b16 %v284
      %v437 = vpack.c.b16 %v422, %v421
      %v438 = vpack.c.b16 %v424, %v423
      %v439 = vpack.c.b16 %v426, %v425
      %v440 = vpack.c.b16 %v428, %v427
      %v441 = vpack.c.b16 %v430, %v429
      %v442 = vpack.c.b16 %v432, %v431
      %v443 = vpack.c.b16 %v434, %v433
      %v444 = vpack.c.b16 %v436, %v435
      %453 = vmatpush.bf16.msra.mxu0 %v444
      %454 = vmatpush.bf16.msra.mxu0 %v443
      %455 = vmatpush.bf16.msra.mxu0 %v442
      %456 = vmatpush.bf16.msra.mxu0 %v441
      %457 = vmatpush.bf16.msra.mxu0 %v440
      %458 = vmatpush.bf16.msra.mxu0 %v439
      %459 = vmatpush.bf16.msra.mxu0 %v438
      %460 = vmatpush.bf16.msra.mxu0 %v437
      %461 = vmatmul.bf16.gmra.mxu0 %v340
      %v462 = vpop.f32.mrf.mxu0
      %v463 = vadd.f32 0.0, %v462
      %v464 = vpop.f32.mrf.mxu0
      %v465 = vadd.f32 0.0, %v464
      %466 = vmatmul.bf16.gmra.mxu0 %v348
      %v467 = vpop.f32.mrf.mxu0
      %v468 = vadd.f32 0.0, %v467
      %v469 = vpop.f32.mrf.mxu0
      %v470 = vadd.f32 0.0, %v469
      %471 = vmatmul.bf16.gmra.mxu0 %v356
      %v472 = vpop.f32.mrf.mxu0
      %v473 = vadd.f32 0.0, %v472
      %v474 = vpop.f32.mrf.mxu0
      %v475 = vadd.f32 0.0, %v474
      %476 = vmatmul.bf16.gmra.mxu0 %v364
      %v477 = vpop.f32.mrf.mxu0
      %v478 = vadd.f32 0.0, %v477
      %v479 = vpop.f32.mrf.mxu0
      %v480 = vadd.f32 0.0, %v479
      %481 = vmatmul.bf16.gmra.mxu0 %v372
      %v482 = vpop.f32.mrf.mxu0
      %v483 = vadd.f32 0.0, %v482
      %v484 = vpop.f32.mrf.mxu0
      %v485 = vadd.f32 0.0, %v484
      %486 = vmatmul.bf16.gmra.mxu0 %v380
      %v487 = vpop.f32.mrf.mxu0
      %v488 = vadd.f32 0.0, %v487
      %v489 = vpop.f32.mrf.mxu0
      %v490 = vadd.f32 0.0, %v489
      %491 = vmatmul.bf16.gmra.mxu0 %v388
      %v492 = vpop.f32.mrf.mxu0
      %v493 = vadd.f32 0.0, %v492
      %v494 = vpop.f32.mrf.mxu0
      %v495 = vadd.f32 0.0, %v494
      %496 = vmatmul.bf16.gmra.mxu0 %v396
      %v497 = vpop.f32.mrf.mxu0
      %v498 = vadd.f32 0.0, %v497
      %v499 = vpop.f32.mrf.mxu0
      %v500 = vadd.f32 0.0, %v499
      %501 = vdwg.mxu0
      %v526 = vunpack.c.l.b16 %v252
      %v527 = vunpack.c.l.b16 %v253
      %v528 = vunpack.c.l.b16 %v254
      %v529 = vunpack.c.l.b16 %v255
      %v530 = vunpack.c.l.b16 %v256
      %v531 = vunpack.c.l.b16 %v257
      %v532 = vunpack.c.l.b16 %v258
      %v533 = vunpack.c.l.b16 %v259
      %v534 = vunpack.c.l.b16 %v260
      %v535 = vunpack.c.l.b16 %v261
      %v536 = vunpack.c.l.b16 %v262
      %v537 = vunpack.c.l.b16 %v263
      %v538 = vunpack.c.l.b16 %v264
      %v539 = vunpack.c.l.b16 %v265
      %v540 = vunpack.c.l.b16 %v266
      %v541 = vunpack.c.l.b16 %v267
      %v542 = vpack.c.b16 %v527, %v526
      %v543 = vpack.c.b16 %v529, %v528
      %v544 = vpack.c.b16 %v531, %v530
      %v545 = vpack.c.b16 %v533, %v532
      %v546 = vpack.c.b16 %v535, %v534
      %v547 = vpack.c.b16 %v537, %v536
      %v548 = vpack.c.b16 %v539, %v538
      %v549 = vpack.c.b16 %v541, %v540
      %558 = vmatpush.bf16.msra.mxu0 %v549
      %559 = vmatpush.bf16.msra.mxu0 %v548
      %560 = vmatpush.bf16.msra.mxu0 %v547
      %561 = vmatpush.bf16.msra.mxu0 %v546
      %562 = vmatpush.bf16.msra.mxu0 %v545
      %563 = vmatpush.bf16.msra.mxu0 %v544
      %564 = vmatpush.bf16.msra.mxu0 %v543
      %565 = vmatpush.bf16.msra.mxu0 %v542
      %566 = vmatmul.bf16.gmra.mxu0 %v319
      %v567 = vpop.f32.mrf.mxu0
      %v568 = vadd.f32 %v463, %v567
      %v569 = vpop.f32.mrf.mxu0
      %v570 = vadd.f32 %v465, %v569
      %571 = vmatmul.bf16.gmra.mxu0 %v320
      %v572 = vpop.f32.mrf.mxu0
      %v573 = vadd.f32 %v468, %v572
      %v574 = vpop.f32.mrf.mxu0
      %v575 = vadd.f32 %v470, %v574
      %576 = vmatmul.bf16.gmra.mxu0 %v321
      %v577 = vpop.f32.mrf.mxu0
      %v578 = vadd.f32 %v473, %v577
      %v579 = vpop.f32.mrf.mxu0
      %v580 = vadd.f32 %v475, %v579
      %581 = vmatmul.bf16.gmra.mxu0 %v322
      %v582 = vpop.f32.mrf.mxu0
      %v583 = vadd.f32 %v478, %v582
      %v584 = vpop.f32.mrf.mxu0
      %v585 = vadd.f32 %v480, %v584
      %586 = vmatmul.bf16.gmra.mxu0 %v323
      %v587 = vpop.f32.mrf.mxu0
      %v588 = vadd.f32 %v483, %v587
      %v589 = vpop.f32.mrf.mxu0
      %v590 = vadd.f32 %v485, %v589
      %591 = vmatmul.bf16.gmra.mxu0 %v324
      %v592 = vpop.f32.mrf.mxu0
      %v593 = vadd.f32 %v488, %v592
      %v594 = vpop.f32.mrf.mxu0
      %v595 = vadd.f32 %v490, %v594
      %596 = vmatmul.bf16.gmra.mxu0 %v325
      %v597 = vpop.f32.mrf.mxu0
      %v598 = vadd.f32 %v493, %v597
      %v599 = vpop.f32.mrf.mxu0
      %v600 = vadd.f32 %v495, %v599
      %601 = vmatmul.bf16.gmra.mxu0 %v326
      %v602 = vpop.f32.mrf.mxu0
      %v603 = vadd.f32 %v498, %v602
      %v604 = vpop.f32.mrf.mxu0
      %v605 = vadd.f32 %v500, %v604
      %606 = vdwg.mxu0
      %s607 = scalar_lea.vmem %s1, 128
      %v608 = vld [vmem:[%s607] sm:$0xf]
      %v609 = vld [vmem:[%s607 + $0x4] sm:$0xf]
      %v610 = vld [vmem:[%s607 + $0x8] sm:$0xf]
      %v611 = vld [vmem:[%s607 + $0xc] sm:$0xf]
      %v612 = vld [vmem:[%s607 + $0x10] sm:$0xf]
      %v613 = vld [vmem:[%s607 + $0x14] sm:$0xf]
      %v614 = vld [vmem:[%s607 + $0x18] sm:$0xf]
      %v615 = vld [vmem:[%s607 + $0x1c] sm:$0xf]
      %v616 = vld [vmem:[%s607 + $0x20] sm:$0xf]
      %v617 = vld [vmem:[%s607 + $0x24] sm:$0xf]
      %v618 = vld [vmem:[%s607 + $0x28] sm:$0xf]
      %v619 = vld [vmem:[%s607 + $0x2c] sm:$0xf]
      %v620 = vld [vmem:[%s607 + $0x30] sm:$0xf]
      %v621 = vld [vmem:[%s607 + $0x34] sm:$0xf]
      %v622 = vld [vmem:[%s607 + $0x38] sm:$0xf]
      %v623 = vld [vmem:[%s607 + $0x3c] sm:$0xf]
      %vm624 = vcmask 1046528
      %v625 = vrot.slane %v319, 1
      %v626 = vrot.slane %v320, 1
      %v627 = vsel %vm624, %v625, %v626
      %v628 = vrot.slane %v321, 1
      %v629 = vsel %vm624, %v626, %v628
      %v630 = vrot.slane %v322, 1
      %v631 = vsel %vm624, %v628, %v630
      %v632 = vrot.slane %v323, 1
      %v633 = vsel %vm624, %v630, %v632
      %v634 = vrot.slane %v324, 1
      %v635 = vsel %vm624, %v632, %v634
      %v636 = vrot.slane %v325, 1
      %v637 = vsel %vm624, %v634, %v636
      %v638 = vrot.slane %v326, 1
      %v639 = vsel %vm624, %v636, %v638
      %v640 = vrot.slane %v327, 1
      %v641 = vsel %vm624, %v638, %v640
      %v666 = vunpack.c.l.b16 %v608
      %v667 = vunpack.c.l.b16 %v609
      %v668 = vunpack.c.l.b16 %v610
      %v669 = vunpack.c.l.b16 %v611
      %v670 = vunpack.c.l.b16 %v612
      %v671 = vunpack.c.l.b16 %v613
      %v672 = vunpack.c.l.b16 %v614
      %v673 = vunpack.c.l.b16 %v615
      %v674 = vunpack.c.l.b16 %v616
      %v675 = vunpack.c.l.b16 %v617
      %v676 = vunpack.c.l.b16 %v618
      %v677 = vunpack.c.l.b16 %v619
      %v678 = vunpack.c.l.b16 %v620
      %v679 = vunpack.c.l.b16 %v621
      %v680 = vunpack.c.l.b16 %v622
      %v681 = vunpack.c.l.b16 %v623
      %v682 = vpack.c.b16 %v667, %v666
      %v683 = vpack.c.b16 %v669, %v668
      %v684 = vpack.c.b16 %v671, %v670
      %v685 = vpack.c.b16 %v673, %v672
      %v686 = vpack.c.b16 %v675, %v674
      %v687 = vpack.c.b16 %v677, %v676
      %v688 = vpack.c.b16 %v679, %v678
      %v689 = vpack.c.b16 %v681, %v680
      %698 = vmatpush.bf16.msra.mxu0 %v689
      %699 = vmatpush.bf16.msra.mxu0 %v688
      %700 = vmatpush.bf16.msra.mxu0 %v687
      %701 = vmatpush.bf16.msra.mxu0 %v686
      %702 = vmatpush.bf16.msra.mxu0 %v685
      %703 = vmatpush.bf16.msra.mxu0 %v684
      %704 = vmatpush.bf16.msra.mxu0 %v683
      %705 = vmatpush.bf16.msra.mxu0 %v682
      %706 = vmatmul.bf16.gmra.mxu0 %v627
      %v707 = vpop.f32.mrf.mxu0
      %v708 = vadd.f32 0.0, %v707
      %v709 = vpop.f32.mrf.mxu0
      %v710 = vadd.f32 0.0, %v709
      %711 = vmatmul.bf16.gmra.mxu0 %v629
      %v712 = vpop.f32.mrf.mxu0
      %v713 = vadd.f32 0.0, %v712
      %v714 = vpop.f32.mrf.mxu0
      %v715 = vadd.f32 0.0, %v714
      %716 = vmatmul.bf16.gmra.mxu0 %v631
      %v717 = vpop.f32.mrf.mxu0
      %v718 = vadd.f32 0.0, %v717
      %v719 = vpop.f32.mrf.mxu0
      %v720 = vadd.f32 0.0, %v719
      %721 = vmatmul.bf16.gmra.mxu0 %v633
      %v722 = vpop.f32.mrf.mxu0
      %v723 = vadd.f32 0.0, %v722
      %v724 = vpop.f32.mrf.mxu0
      %v725 = vadd.f32 0.0, %v724
      %726 = vmatmul.bf16.gmra.mxu0 %v635
      %v727 = vpop.f32.mrf.mxu0
      %v728 = vadd.f32 0.0, %v727
      %v729 = vpop.f32.mrf.mxu0
      %v730 = vadd.f32 0.0, %v729
      %731 = vmatmul.bf16.gmra.mxu0 %v637
      %v732 = vpop.f32.mrf.mxu0
      %v733 = vadd.f32 0.0, %v732
      %v734 = vpop.f32.mrf.mxu0
      %v735 = vadd.f32 0.0, %v734
      %736 = vmatmul.bf16.gmra.mxu0 %v639
      %v737 = vpop.f32.mrf.mxu0
      %v738 = vadd.f32 0.0, %v737
      %v739 = vpop.f32.mrf.mxu0
      %v740 = vadd.f32 0.0, %v739
      %741 = vmatmul.bf16.gmra.mxu0 %v641
      %v742 = vpop.f32.mrf.mxu0
      %v743 = vadd.f32 0.0, %v742
      %v744 = vpop.f32.mrf.mxu0
      %v745 = vadd.f32 0.0, %v744
      %746 = vdwg.mxu0
      %v747 = vadd.f32 %v568, %v708
      %v748 = vadd.f32 %v570, %v710
      %v749 = vadd.f32 %v573, %v713
      %v750 = vadd.f32 %v575, %v715
      %v751 = vadd.f32 %v578, %v718
      %v752 = vadd.f32 %v580, %v720
      %v753 = vadd.f32 %v583, %v723
      %v754 = vadd.f32 %v585, %v725
      %v755 = vadd.f32 %v588, %v728
      %v756 = vadd.f32 %v590, %v730
      %v757 = vadd.f32 %v593, %v733
      %v758 = vadd.f32 %v595, %v735
      %v759 = vadd.f32 %v598, %v738
      %v760 = vadd.f32 %v600, %v740
      %v761 = vadd.f32 %v603, %v743
      %v762 = vadd.f32 %v605, %v745
      %s763 = scalar_lea.vmem %s1, 192
      %v764 = vld [vmem:[%s763] sm:$0xf]
      %v765 = vld [vmem:[%s763 + $0x4] sm:$0xf]
      %v766 = vld [vmem:[%s763 + $0x8] sm:$0xf]
      %v767 = vld [vmem:[%s763 + $0xc] sm:$0xf]
      %v768 = vld [vmem:[%s763 + $0x10] sm:$0xf]
      %v769 = vld [vmem:[%s763 + $0x14] sm:$0xf]
      %v770 = vld [vmem:[%s763 + $0x18] sm:$0xf]
      %v771 = vld [vmem:[%s763 + $0x1c] sm:$0xf]
      %v772 = vld [vmem:[%s763 + $0x20] sm:$0xf]
      %v773 = vld [vmem:[%s763 + $0x24] sm:$0xf]
      %v774 = vld [vmem:[%s763 + $0x28] sm:$0xf]
      %v775 = vld [vmem:[%s763 + $0x2c] sm:$0xf]
      %v776 = vld [vmem:[%s763 + $0x30] sm:$0xf]
      %v777 = vld [vmem:[%s763 + $0x34] sm:$0xf]
      %v778 = vld [vmem:[%s763 + $0x38] sm:$0xf]
      %v779 = vld [vmem:[%s763 + $0x3c] sm:$0xf]
      %v781 = vunpack.c.l.b16 %v250
      %v782 = vpack.c.b16 %v304, %v303
      %v783 = vpack.c.b16 %v306, %v305
      %v784 = vpack.c.b16 %v308, %v307
      %v785 = vpack.c.b16 %v310, %v309
      %v786 = vpack.c.b16 %v312, %v311
      %v787 = vpack.c.b16 %v314, %v313
      %v788 = vpack.c.b16 %v316, %v315
      %v789 = vpack.c.b16 %v318, %v317
      %v790 = vpack.c.b16 %v781, %v781
      %v791 = vrot.slane %v782, 1
      %v792 = vrot.slane %v783, 1
      %v793 = vsel %vm624, %v791, %v792
      %v794 = vrot.slane %v784, 1
      %v795 = vsel %vm624, %v792, %v794
      %v796 = vrot.slane %v785, 1
      %v797 = vsel %vm624, %v794, %v796
      %v798 = vrot.slane %v786, 1
      %v799 = vsel %vm624, %v796, %v798
      %v800 = vrot.slane %v787, 1
      %v801 = vsel %vm624, %v798, %v800
      %v802 = vrot.slane %v788, 1
      %v803 = vsel %vm624, %v800, %v802
      %v804 = vrot.slane %v789, 1
      %v805 = vsel %vm624, %v802, %v804
      %v806 = vrot.slane %v790, 1
      %v807 = vsel %vm624, %v804, %v806
      %v832 = vunpack.c.l.b16 %v764
      %v833 = vunpack.c.l.b16 %v765
      %v834 = vunpack.c.l.b16 %v766
      %v835 = vunpack.c.l.b16 %v767
      %v836 = vunpack.c.l.b16 %v768
      %v837 = vunpack.c.l.b16 %v769
      %v838 = vunpack.c.l.b16 %v770
      %v839 = vunpack.c.l.b16 %v771
      %v840 = vunpack.c.l.b16 %v772
      %v841 = vunpack.c.l.b16 %v773
      %v842 = vunpack.c.l.b16 %v774
      %v843 = vunpack.c.l.b16 %v775
      %v844 = vunpack.c.l.b16 %v776
      %v845 = vunpack.c.l.b16 %v777
      %v846 = vunpack.c.l.b16 %v778
      %v847 = vunpack.c.l.b16 %v779
      %v848 = vpack.c.b16 %v833, %v832
      %v849 = vpack.c.b16 %v835, %v834
      %v850 = vpack.c.b16 %v837, %v836
      %v851 = vpack.c.b16 %v839, %v838
      %v852 = vpack.c.b16 %v841, %v840
      %v853 = vpack.c.b16 %v843, %v842
      %v854 = vpack.c.b16 %v845, %v844
      %v855 = vpack.c.b16 %v847, %v846
      %864 = vmatpush.bf16.msra.mxu0 %v855
      %865 = vmatpush.bf16.msra.mxu0 %v854
      %866 = vmatpush.bf16.msra.mxu0 %v853
      %867 = vmatpush.bf16.msra.mxu0 %v852
      %868 = vmatpush.bf16.msra.mxu0 %v851
      %869 = vmatpush.bf16.msra.mxu0 %v850
      %870 = vmatpush.bf16.msra.mxu0 %v849
      %871 = vmatpush.bf16.msra.mxu0 %v848
      %872 = vmatmul.bf16.gmra.mxu0 %v793
      %v873 = vpop.f32.mrf.mxu0
      %v874 = vadd.f32 0.0, %v873
      %v875 = vpop.f32.mrf.mxu0
      %v876 = vadd.f32 0.0, %v875
      %877 = vmatmul.bf16.gmra.mxu0 %v795
      %v878 = vpop.f32.mrf.mxu0
      %v879 = vadd.f32 0.0, %v878
      %v880 = vpop.f32.mrf.mxu0
      %v881 = vadd.f32 0.0, %v880
      %882 = vmatmul.bf16.gmra.mxu0 %v797
      %v883 = vpop.f32.mrf.mxu0
      %v884 = vadd.f32 0.0, %v883
      %v885 = vpop.f32.mrf.mxu0
      %v886 = vadd.f32 0.0, %v885
      %887 = vmatmul.bf16.gmra.mxu0 %v799
      %v888 = vpop.f32.mrf.mxu0
      %v889 = vadd.f32 0.0, %v888
      %v890 = vpop.f32.mrf.mxu0
      %v891 = vadd.f32 0.0, %v890
      %892 = vmatmul.bf16.gmra.mxu0 %v801
      %v893 = vpop.f32.mrf.mxu0
      %v894 = vadd.f32 0.0, %v893
      %v895 = vpop.f32.mrf.mxu0
      %v896 = vadd.f32 0.0, %v895
      %897 = vmatmul.bf16.gmra.mxu0 %v803
      %v898 = vpop.f32.mrf.mxu0
      %v899 = vadd.f32 0.0, %v898
      %v900 = vpop.f32.mrf.mxu0
      %v901 = vadd.f32 0.0, %v900
      %902 = vmatmul.bf16.gmra.mxu0 %v805
      %v903 = vpop.f32.mrf.mxu0
      %v904 = vadd.f32 0.0, %v903
      %v905 = vpop.f32.mrf.mxu0
      %v906 = vadd.f32 0.0, %v905
      %907 = vmatmul.bf16.gmra.mxu0 %v807
      %v908 = vpop.f32.mrf.mxu0
      %v909 = vadd.f32 0.0, %v908
      %v910 = vpop.f32.mrf.mxu0
      %v911 = vadd.f32 0.0, %v910
      %912 = vdwg.mxu0
      %v913 = vadd.f32 %v747, %v874
      %v914 = vadd.f32 %v748, %v876
      %v915 = vadd.f32 %v749, %v879
      %v916 = vadd.f32 %v750, %v881
      %v917 = vadd.f32 %v751, %v884
      %v918 = vadd.f32 %v752, %v886
      %v919 = vadd.f32 %v753, %v889
      %v920 = vadd.f32 %v754, %v891
      %v921 = vadd.f32 %v755, %v894
      %v922 = vadd.f32 %v756, %v896
      %v923 = vadd.f32 %v757, %v899
      %v924 = vadd.f32 %v758, %v901
      %v925 = vadd.f32 %v759, %v904
      %v926 = vadd.f32 %v760, %v906
      %v927 = vadd.f32 %v761, %v909
      %v928 = vadd.f32 %v762, %v911
      %s929 = scalar_lea.vmem %s1, 256
      %v930 = vld [vmem:[%s929] sm:$0xf]
      %v931 = vld [vmem:[%s929 + $0x4] sm:$0xf]
      %v932 = vld [vmem:[%s929 + $0x8] sm:$0xf]
      %v933 = vld [vmem:[%s929 + $0xc] sm:$0xf]
      %v934 = vld [vmem:[%s929 + $0x10] sm:$0xf]
      %v935 = vld [vmem:[%s929 + $0x14] sm:$0xf]
      %v936 = vld [vmem:[%s929 + $0x18] sm:$0xf]
      %v937 = vld [vmem:[%s929 + $0x1c] sm:$0xf]
      %v938 = vld [vmem:[%s929 + $0x20] sm:$0xf]
      %v939 = vld [vmem:[%s929 + $0x24] sm:$0xf]
      %v940 = vld [vmem:[%s929 + $0x28] sm:$0xf]
      %v941 = vld [vmem:[%s929 + $0x2c] sm:$0xf]
      %v942 = vld [vmem:[%s929 + $0x30] sm:$0xf]
      %v943 = vld [vmem:[%s929 + $0x34] sm:$0xf]
      %v944 = vld [vmem:[%s929 + $0x38] sm:$0xf]
      %v945 = vld [vmem:[%s929 + $0x3c] sm:$0xf]
      %vm946 = vsmask.f32 6400
      %v948 = vshrl.u32 %v782, 16
      %v950 = vrot.slane %v948, 1
      %v951 = vshll.u32 %v782, 16
      %v953 = vrot.slane %v951, 2
      %v954 = vor.u32 %v950, %v953
      %v956 = vshrl.u32 %v783, 16
      %v958 = vrot.slane %v956, 1
      %v959 = vshll.u32 %v783, 16
      %v961 = vrot.slane %v959, 2
      %v962 = vor.u32 %v958, %v961
      %v963 = vsel %vm946, %v954, %v962
      %v965 = vshrl.u32 %v784, 16
      %v967 = vrot.slane %v965, 1
      %v968 = vshll.u32 %v784, 16
      %v970 = vrot.slane %v968, 2
      %v971 = vor.u32 %v967, %v970
      %v972 = vsel %vm946, %v962, %v971
      %v974 = vshrl.u32 %v785, 16
      %v976 = vrot.slane %v974, 1
      %v977 = vshll.u32 %v785, 16
      %v979 = vrot.slane %v977, 2
      %v980 = vor.u32 %v976, %v979
      %v981 = vsel %vm946, %v971, %v980
      %v983 = vshrl.u32 %v786, 16
      %v985 = vrot.slane %v983, 1
      %v986 = vshll.u32 %v786, 16
      %v988 = vrot.slane %v986, 2
      %v989 = vor.u32 %v985, %v988
      %v990 = vsel %vm946, %v980, %v989
      %v992 = vshrl.u32 %v787, 16
      %v994 = vrot.slane %v992, 1
      %v995 = vshll.u32 %v787, 16
      %v997 = vrot.slane %v995, 2
      %v998 = vor.u32 %v994, %v997
      %v999 = vsel %vm946, %v989, %v998
      %v1001 = vshrl.u32 %v788, 16
      %v1003 = vrot.slane %v1001, 1
      %v1004 = vshll.u32 %v788, 16
      %v1006 = vrot.slane %v1004, 2
      %v1007 = vor.u32 %v1003, %v1006
      %v1008 = vsel %vm946, %v998, %v1007
      %v1010 = vshrl.u32 %v789, 16
      %v1012 = vrot.slane %v1010, 1
      %v1013 = vshll.u32 %v789, 16
      %v1015 = vrot.slane %v1013, 2
      %v1016 = vor.u32 %v1012, %v1015
      %v1017 = vsel %vm946, %v1007, %v1016
      %v1019 = vshrl.u32 %v790, 16
      %v1021 = vrot.slane %v1019, 1
      %v1022 = vshll.u32 %v790, 16
      %v1024 = vrot.slane %v1022, 2
      %v1025 = vor.u32 %v1021, %v1024
      %v1026 = vsel %vm946, %v1016, %v1025
      %v1051 = vunpack.c.l.b16 %v930
      %v1052 = vunpack.c.l.b16 %v931
      %v1053 = vunpack.c.l.b16 %v932
      %v1054 = vunpack.c.l.b16 %v933
      %v1055 = vunpack.c.l.b16 %v934
      %v1056 = vunpack.c.l.b16 %v935
      %v1057 = vunpack.c.l.b16 %v936
      %v1058 = vunpack.c.l.b16 %v937
      %v1059 = vunpack.c.l.b16 %v938
      %v1060 = vunpack.c.l.b16 %v939
      %v1061 = vunpack.c.l.b16 %v940
      %v1062 = vunpack.c.l.b16 %v941
      %v1063 = vunpack.c.l.b16 %v942
      %v1064 = vunpack.c.l.b16 %v943
      %v1065 = vunpack.c.l.b16 %v944
      %v1066 = vunpack.c.l.b16 %v945
      %v1067 = vpack.c.b16 %v1052, %v1051
      %v1068 = vpack.c.b16 %v1054, %v1053
      %v1069 = vpack.c.b16 %v1056, %v1055
      %v1070 = vpack.c.b16 %v1058, %v1057
      %v1071 = vpack.c.b16 %v1060, %v1059
      %v1072 = vpack.c.b16 %v1062, %v1061
      %v1073 = vpack.c.b16 %v1064, %v1063
      %v1074 = vpack.c.b16 %v1066, %v1065
      %1083 = vmatpush.bf16.msra.mxu0 %v1074
      %1084 = vmatpush.bf16.msra.mxu0 %v1073
      %1085 = vmatpush.bf16.msra.mxu0 %v1072
      %1086 = vmatpush.bf16.msra.mxu0 %v1071
      %1087 = vmatpush.bf16.msra.mxu0 %v1070
      %1088 = vmatpush.bf16.msra.mxu0 %v1069
      %1089 = vmatpush.bf16.msra.mxu0 %v1068
      %1090 = vmatpush.bf16.msra.mxu0 %v1067
      %1091 = vmatmul.bf16.gmra.mxu0 %v963
      %v1092 = vpop.f32.mrf.mxu0
      %v1093 = vadd.f32 0.0, %v1092
      %v1094 = vpop.f32.mrf.mxu0
      %v1095 = vadd.f32 0.0, %v1094
      %1096 = vmatmul.bf16.gmra.mxu0 %v972
      %v1097 = vpop.f32.mrf.mxu0
      %v1098 = vadd.f32 0.0, %v1097
      %v1099 = vpop.f32.mrf.mxu0
      %v1100 = vadd.f32 0.0, %v1099
      %1101 = vmatmul.bf16.gmra.mxu0 %v981
      %v1102 = vpop.f32.mrf.mxu0
      %v1103 = vadd.f32 0.0, %v1102
      %v1104 = vpop.f32.mrf.mxu0
      %v1105 = vadd.f32 0.0, %v1104
      %1106 = vmatmul.bf16.gmra.mxu0 %v990
      %v1107 = vpop.f32.mrf.mxu0
      %v1108 = vadd.f32 0.0, %v1107
      %v1109 = vpop.f32.mrf.mxu0
      %v1110 = vadd.f32 0.0, %v1109
      %1111 = vmatmul.bf16.gmra.mxu0 %v999
      %v1112 = vpop.f32.mrf.mxu0
      %v1113 = vadd.f32 0.0, %v1112
      %v1114 = vpop.f32.mrf.mxu0
      %v1115 = vadd.f32 0.0, %v1114
      %1116 = vmatmul.bf16.gmra.mxu0 %v1008
      %v1117 = vpop.f32.mrf.mxu0
      %v1118 = vadd.f32 0.0, %v1117
      %v1119 = vpop.f32.mrf.mxu0
      %v1120 = vadd.f32 0.0, %v1119
      %1121 = vmatmul.bf16.gmra.mxu0 %v1017
      %v1122 = vpop.f32.mrf.mxu0
      %v1123 = vadd.f32 0.0, %v1122
      %v1124 = vpop.f32.mrf.mxu0
      %v1125 = vadd.f32 0.0, %v1124
      %1126 = vmatmul.bf16.gmra.mxu0 %v1026
      %v1127 = vpop.f32.mrf.mxu0
      %v1128 = vadd.f32 0.0, %v1127
      %v1129 = vpop.f32.mrf.mxu0
      %v1130 = vadd.f32 0.0, %v1129
      %1131 = vdwg.mxu0
      %v1132 = vadd.f32 %v913, %v1093
      %v1133 = vadd.f32 %v914, %v1095
      %v1134 = vadd.f32 %v915, %v1098
      %v1135 = vadd.f32 %v916, %v1100
      %v1136 = vadd.f32 %v917, %v1103
      %v1137 = vadd.f32 %v918, %v1105
      %v1138 = vadd.f32 %v919, %v1108
      %v1139 = vadd.f32 %v920, %v1110
      %v1140 = vadd.f32 %v921, %v1113
      %v1141 = vadd.f32 %v922, %v1115
      %v1142 = vadd.f32 %v923, %v1118
      %v1143 = vadd.f32 %v924, %v1120
      %v1144 = vadd.f32 %v925, %v1123
      %v1145 = vadd.f32 %v926, %v1125
      %v1146 = vadd.f32 %v927, %v1128
      %v1147 = vadd.f32 %v928, %v1130
      %s1148 = scalar_lea.vmem %s1, 320
      %v1149 = vld [vmem:[%s1148] sm:$0xf]
      %v1150 = vld [vmem:[%s1148 + $0x4] sm:$0xf]
      %v1151 = vld [vmem:[%s1148 + $0x8] sm:$0xf]
      %v1152 = vld [vmem:[%s1148 + $0xc] sm:$0xf]
      %v1153 = vld [vmem:[%s1148 + $0x10] sm:$0xf]
      %v1154 = vld [vmem:[%s1148 + $0x14] sm:$0xf]
      %v1155 = vld [vmem:[%s1148 + $0x18] sm:$0xf]
      %v1156 = vld [vmem:[%s1148 + $0x1c] sm:$0xf]
      %v1157 = vld [vmem:[%s1148 + $0x20] sm:$0xf]
      %v1158 = vld [vmem:[%s1148 + $0x24] sm:$0xf]
      %v1159 = vld [vmem:[%s1148 + $0x28] sm:$0xf]
      %v1160 = vld [vmem:[%s1148 + $0x2c] sm:$0xf]
      %v1161 = vld [vmem:[%s1148 + $0x30] sm:$0xf]
      %v1162 = vld [vmem:[%s1148 + $0x34] sm:$0xf]
      %v1163 = vld [vmem:[%s1148 + $0x38] sm:$0xf]
      %v1164 = vld [vmem:[%s1148 + $0x3c] sm:$0xf]
      %vm1165 = vcmask 1045504
      %v1166 = vrot.slane %v782, 2
      %v1167 = vrot.slane %v783, 2
      %v1168 = vsel %vm1165, %v1166, %v1167
      %v1169 = vrot.slane %v784, 2
      %v1170 = vsel %vm1165, %v1167, %v1169
      %v1171 = vrot.slane %v785, 2
      %v1172 = vsel %vm1165, %v1169, %v1171
      %v1173 = vrot.slane %v786, 2
      %v1174 = vsel %vm1165, %v1171, %v1173
      %v1175 = vrot.slane %v787, 2
      %v1176 = vsel %vm1165, %v1173, %v1175
      %v1177 = vrot.slane %v788, 2
      %v1178 = vsel %vm1165, %v1175, %v1177
      %v1179 = vrot.slane %v789, 2
      %v1180 = vsel %vm1165, %v1177, %v1179
      %v1181 = vrot.slane %v790, 2
      %v1182 = vsel %vm1165, %v1179, %v1181
      %v1207 = vunpack.c.l.b16 %v1149
      %v1208 = vunpack.c.l.b16 %v1150
      %v1209 = vunpack.c.l.b16 %v1151
      %v1210 = vunpack.c.l.b16 %v1152
      %v1211 = vunpack.c.l.b16 %v1153
      %v1212 = vunpack.c.l.b16 %v1154
      %v1213 = vunpack.c.l.b16 %v1155
      %v1214 = vunpack.c.l.b16 %v1156
      %v1215 = vunpack.c.l.b16 %v1157
      %v1216 = vunpack.c.l.b16 %v1158
      %v1217 = vunpack.c.l.b16 %v1159
      %v1218 = vunpack.c.l.b16 %v1160
      %v1219 = vunpack.c.l.b16 %v1161
      %v1220 = vunpack.c.l.b16 %v1162
      %v1221 = vunpack.c.l.b16 %v1163
      %v1222 = vunpack.c.l.b16 %v1164
      %v1223 = vpack.c.b16 %v1208, %v1207
      %v1224 = vpack.c.b16 %v1210, %v1209
      %v1225 = vpack.c.b16 %v1212, %v1211
      %v1226 = vpack.c.b16 %v1214, %v1213
      %v1227 = vpack.c.b16 %v1216, %v1215
      %v1228 = vpack.c.b16 %v1218, %v1217
      %v1229 = vpack.c.b16 %v1220, %v1219
      %v1230 = vpack.c.b16 %v1222, %v1221
      %1239 = vmatpush.bf16.msra.mxu0 %v1230
      %1240 = vmatpush.bf16.msra.mxu0 %v1229
      %1241 = vmatpush.bf16.msra.mxu0 %v1228
      %1242 = vmatpush.bf16.msra.mxu0 %v1227
      %1243 = vmatpush.bf16.msra.mxu0 %v1226
      %1244 = vmatpush.bf16.msra.mxu0 %v1225
      %1245 = vmatpush.bf16.msra.mxu0 %v1224
      %1246 = vmatpush.bf16.msra.mxu0 %v1223
      %1247 = vmatmul.bf16.gmra.mxu0 %v1168
      %v1248 = vpop.f32.mrf.mxu0
      %v1249 = vadd.f32 0.0, %v1248
      %v1250 = vpop.f32.mrf.mxu0
      %v1251 = vadd.f32 0.0, %v1250
      %1252 = vmatmul.bf16.gmra.mxu0 %v1170
      %v1253 = vpop.f32.mrf.mxu0
      %v1254 = vadd.f32 0.0, %v1253
      %v1255 = vpop.f32.mrf.mxu0
      %v1256 = vadd.f32 0.0, %v1255
      %1257 = vmatmul.bf16.gmra.mxu0 %v1172
      %v1258 = vpop.f32.mrf.mxu0
      %v1259 = vadd.f32 0.0, %v1258
      %v1260 = vpop.f32.mrf.mxu0
      %v1261 = vadd.f32 0.0, %v1260
      %1262 = vmatmul.bf16.gmra.mxu0 %v1174
      %v1263 = vpop.f32.mrf.mxu0
      %v1264 = vadd.f32 0.0, %v1263
      %v1265 = vpop.f32.mrf.mxu0
      %v1266 = vadd.f32 0.0, %v1265
      %1267 = vmatmul.bf16.gmra.mxu0 %v1176
      %v1268 = vpop.f32.mrf.mxu0
      %v1269 = vadd.f32 0.0, %v1268
      %v1270 = vpop.f32.mrf.mxu0
      %v1271 = vadd.f32 0.0, %v1270
      %1272 = vmatmul.bf16.gmra.mxu0 %v1178
      %v1273 = vpop.f32.mrf.mxu0
      %v1274 = vadd.f32 0.0, %v1273
      %v1275 = vpop.f32.mrf.mxu0
      %v1276 = vadd.f32 0.0, %v1275
      %1277 = vmatmul.bf16.gmra.mxu0 %v1180
      %v1278 = vpop.f32.mrf.mxu0
      %v1279 = vadd.f32 0.0, %v1278
      %v1280 = vpop.f32.mrf.mxu0
      %v1281 = vadd.f32 0.0, %v1280
      %1282 = vmatmul.bf16.gmra.mxu0 %v1182
      %v1283 = vpop.f32.mrf.mxu0
      %v1284 = vadd.f32 0.0, %v1283
      %v1285 = vpop.f32.mrf.mxu0
      %v1286 = vadd.f32 0.0, %v1285
      %1287 = vdwg.mxu0
      %v1288 = vadd.f32 %v1132, %v1249
      %v1289 = vadd.f32 %v1133, %v1251
      %v1290 = vadd.f32 %v1134, %v1254
      %v1291 = vadd.f32 %v1135, %v1256
      %v1292 = vadd.f32 %v1136, %v1259
      %v1293 = vadd.f32 %v1137, %v1261
      %v1294 = vadd.f32 %v1138, %v1264
      %v1295 = vadd.f32 %v1139, %v1266
      %v1296 = vadd.f32 %v1140, %v1269
      %v1297 = vadd.f32 %v1141, %v1271
      %v1298 = vadd.f32 %v1142, %v1274
      %v1299 = vadd.f32 %v1143, %v1276
      %v1300 = vadd.f32 %v1144, %v1279
      %v1301 = vadd.f32 %v1145, %v1281
      %v1302 = vadd.f32 %v1146, %v1284
      %v1303 = vadd.f32 %v1147, %v1286
      %s1304 = scalar_lea.vmem %s1, 384
      %v1305 = vld [vmem:[%s1304] sm:$0xf]
      %v1306 = vld [vmem:[%s1304 + $0x4] sm:$0xf]
      %v1307 = vld [vmem:[%s1304 + $0x8] sm:$0xf]
      %v1308 = vld [vmem:[%s1304 + $0xc] sm:$0xf]
      %v1309 = vld [vmem:[%s1304 + $0x10] sm:$0xf]
      %v1310 = vld [vmem:[%s1304 + $0x14] sm:$0xf]
      %v1311 = vld [vmem:[%s1304 + $0x18] sm:$0xf]
      %v1312 = vld [vmem:[%s1304 + $0x1c] sm:$0xf]
      %v1313 = vld [vmem:[%s1304 + $0x20] sm:$0xf]
      %v1314 = vld [vmem:[%s1304 + $0x24] sm:$0xf]
      %v1315 = vld [vmem:[%s1304 + $0x28] sm:$0xf]
      %v1316 = vld [vmem:[%s1304 + $0x2c] sm:$0xf]
      %v1317 = vld [vmem:[%s1304 + $0x30] sm:$0xf]
      %v1318 = vld [vmem:[%s1304 + $0x34] sm:$0xf]
      %v1319 = vld [vmem:[%s1304 + $0x38] sm:$0xf]
      %v1320 = vld [vmem:[%s1304 + $0x3c] sm:$0xf]
      %v1322 = vunpack.c.l.b16 %v251
      %v1323 = vpack.c.b16 %v781, %v318
      %v1324 = vpack.c.b16 %v1322, %v1322
      %v1325 = vrot.slane %v320, 2
      %v1326 = vrot.slane %v321, 2
      %v1327 = vsel %vm1165, %v1325, %v1326
      %v1328 = vrot.slane %v322, 2
      %v1329 = vsel %vm1165, %v1326, %v1328
      %v1330 = vrot.slane %v323, 2
      %v1331 = vsel %vm1165, %v1328, %v1330
      %v1332 = vrot.slane %v324, 2
      %v1333 = vsel %vm1165, %v1330, %v1332
      %v1334 = vrot.slane %v325, 2
      %v1335 = vsel %vm1165, %v1332, %v1334
      %v1336 = vrot.slane %v326, 2
      %v1337 = vsel %vm1165, %v1334, %v1336
      %v1338 = vrot.slane %v1323, 2
      %v1339 = vsel %vm1165, %v1336, %v1338
      %v1340 = vrot.slane %v1324, 2
      %v1341 = vsel %vm1165, %v1338, %v1340
      %v1366 = vunpack.c.l.b16 %v1305
      %v1367 = vunpack.c.l.b16 %v1306
      %v1368 = vunpack.c.l.b16 %v1307
      %v1369 = vunpack.c.l.b16 %v1308
      %v1370 = vunpack.c.l.b16 %v1309
      %v1371 = vunpack.c.l.b16 %v1310
      %v1372 = vunpack.c.l.b16 %v1311
      %v1373 = vunpack.c.l.b16 %v1312
      %v1374 = vunpack.c.l.b16 %v1313
      %v1375 = vunpack.c.l.b16 %v1314
      %v1376 = vunpack.c.l.b16 %v1315
      %v1377 = vunpack.c.l.b16 %v1316
      %v1378 = vunpack.c.l.b16 %v1317
      %v1379 = vunpack.c.l.b16 %v1318
      %v1380 = vunpack.c.l.b16 %v1319
      %v1381 = vunpack.c.l.b16 %v1320
      %v1382 = vpack.c.b16 %v1367, %v1366
      %v1383 = vpack.c.b16 %v1369, %v1368
      %v1384 = vpack.c.b16 %v1371, %v1370
      %v1385 = vpack.c.b16 %v1373, %v1372
      %v1386 = vpack.c.b16 %v1375, %v1374
      %v1387 = vpack.c.b16 %v1377, %v1376
      %v1388 = vpack.c.b16 %v1379, %v1378
      %v1389 = vpack.c.b16 %v1381, %v1380
      %1398 = vmatpush.bf16.msra.mxu0 %v1389
      %1399 = vmatpush.bf16.msra.mxu0 %v1388
      %1400 = vmatpush.bf16.msra.mxu0 %v1387
      %1401 = vmatpush.bf16.msra.mxu0 %v1386
      %1402 = vmatpush.bf16.msra.mxu0 %v1385
      %1403 = vmatpush.bf16.msra.mxu0 %v1384
      %1404 = vmatpush.bf16.msra.mxu0 %v1383
      %1405 = vmatpush.bf16.msra.mxu0 %v1382
      %1406 = vmatmul.bf16.gmra.mxu0 %v1327
      %v1407 = vpop.f32.mrf.mxu0
      %v1408 = vadd.f32 0.0, %v1407
      %v1409 = vpop.f32.mrf.mxu0
      %v1410 = vadd.f32 0.0, %v1409
      %1411 = vmatmul.bf16.gmra.mxu0 %v1329
      %v1412 = vpop.f32.mrf.mxu0
      %v1413 = vadd.f32 0.0, %v1412
      %v1414 = vpop.f32.mrf.mxu0
      %v1415 = vadd.f32 0.0, %v1414
      %1416 = vmatmul.bf16.gmra.mxu0 %v1331
      %v1417 = vpop.f32.mrf.mxu0
      %v1418 = vadd.f32 0.0, %v1417
      %v1419 = vpop.f32.mrf.mxu0
      %v1420 = vadd.f32 0.0, %v1419
      %1421 = vmatmul.bf16.gmra.mxu0 %v1333
      %v1422 = vpop.f32.mrf.mxu0
      %v1423 = vadd.f32 0.0, %v1422
      %v1424 = vpop.f32.mrf.mxu0
      %v1425 = vadd.f32 0.0, %v1424
      %1426 = vmatmul.bf16.gmra.mxu0 %v1335
      %v1427 = vpop.f32.mrf.mxu0
      %v1428 = vadd.f32 0.0, %v1427
      %v1429 = vpop.f32.mrf.mxu0
      %v1430 = vadd.f32 0.0, %v1429
      %1431 = vmatmul.bf16.gmra.mxu0 %v1337
      %v1432 = vpop.f32.mrf.mxu0
      %v1433 = vadd.f32 0.0, %v1432
      %v1434 = vpop.f32.mrf.mxu0
      %v1435 = vadd.f32 0.0, %v1434
      %1436 = vmatmul.bf16.gmra.mxu0 %v1339
      %v1437 = vpop.f32.mrf.mxu0
      %v1438 = vadd.f32 0.0, %v1437
      %v1439 = vpop.f32.mrf.mxu0
      %v1440 = vadd.f32 0.0, %v1439
      %1441 = vmatmul.bf16.gmra.mxu0 %v1341
      %v1442 = vpop.f32.mrf.mxu0
      %v1443 = vadd.f32 0.0, %v1442
      %v1444 = vpop.f32.mrf.mxu0
      %v1445 = vadd.f32 0.0, %v1444
      %1446 = vdwg.mxu0
      %v1447 = vadd.f32 %v1288, %v1408
      %v1448 = vadd.f32 %v1289, %v1410
      %v1449 = vadd.f32 %v1290, %v1413
      %v1450 = vadd.f32 %v1291, %v1415
      %v1451 = vadd.f32 %v1292, %v1418
      %v1452 = vadd.f32 %v1293, %v1420
      %v1453 = vadd.f32 %v1294, %v1423
      %v1454 = vadd.f32 %v1295, %v1425
      %v1455 = vadd.f32 %v1296, %v1428
      %v1456 = vadd.f32 %v1297, %v1430
      %v1457 = vadd.f32 %v1298, %v1433
      %v1458 = vadd.f32 %v1299, %v1435
      %v1459 = vadd.f32 %v1300, %v1438
      %v1460 = vadd.f32 %v1301, %v1440
      %v1461 = vadd.f32 %v1302, %v1443
      %v1462 = vadd.f32 %v1303, %v1445
      %s1463 = scalar_lea.vmem %s1, 448
      %v1464 = vld [vmem:[%s1463] sm:$0xf]
      %v1465 = vld [vmem:[%s1463 + $0x4] sm:$0xf]
      %v1466 = vld [vmem:[%s1463 + $0x8] sm:$0xf]
      %v1467 = vld [vmem:[%s1463 + $0xc] sm:$0xf]
      %v1468 = vld [vmem:[%s1463 + $0x10] sm:$0xf]
      %v1469 = vld [vmem:[%s1463 + $0x14] sm:$0xf]
      %v1470 = vld [vmem:[%s1463 + $0x18] sm:$0xf]
      %v1471 = vld [vmem:[%s1463 + $0x1c] sm:$0xf]
      %v1472 = vld [vmem:[%s1463 + $0x20] sm:$0xf]
      %v1473 = vld [vmem:[%s1463 + $0x24] sm:$0xf]
      %v1474 = vld [vmem:[%s1463 + $0x28] sm:$0xf]
      %v1475 = vld [vmem:[%s1463 + $0x2c] sm:$0xf]
      %v1476 = vld [vmem:[%s1463 + $0x30] sm:$0xf]
      %v1477 = vld [vmem:[%s1463 + $0x34] sm:$0xf]
      %v1478 = vld [vmem:[%s1463 + $0x38] sm:$0xf]
      %v1479 = vld [vmem:[%s1463 + $0x3c] sm:$0xf]
      %vm1480 = vsmask.f32 5376
      %v1481 = vrot.slane %v341, 2
      %v1482 = vrot.slane %v337, 3
      %v1483 = vor.u32 %v1481, %v1482
      %v1484 = vrot.slane %v349, 2
      %v1485 = vrot.slane %v345, 3
      %v1486 = vor.u32 %v1484, %v1485
      %v1487 = vsel %vm1480, %v1483, %v1486
      %v1488 = vrot.slane %v357, 2
      %v1489 = vrot.slane %v353, 3
      %v1490 = vor.u32 %v1488, %v1489
      %v1491 = vsel %vm1480, %v1486, %v1490
      %v1492 = vrot.slane %v365, 2
      %v1493 = vrot.slane %v361, 3
      %v1494 = vor.u32 %v1492, %v1493
      %v1495 = vsel %vm1480, %v1490, %v1494
      %v1496 = vrot.slane %v373, 2
      %v1497 = vrot.slane %v369, 3
      %v1498 = vor.u32 %v1496, %v1497
      %v1499 = vsel %vm1480, %v1494, %v1498
      %v1500 = vrot.slane %v381, 2
      %v1501 = vrot.slane %v377, 3
      %v1502 = vor.u32 %v1500, %v1501
      %v1503 = vsel %vm1480, %v1498, %v1502
      %v1504 = vrot.slane %v389, 2
      %v1505 = vrot.slane %v385, 3
      %v1506 = vor.u32 %v1504, %v1505
      %v1507 = vsel %vm1480, %v1502, %v1506
      %v1509 = vshrl.u32 %v1323, 16
      %v1511 = vrot.slane %v1509, 2
      %v1512 = vshll.u32 %v1323, 16
      %v1514 = vrot.slane %v1512, 3
      %v1515 = vor.u32 %v1511, %v1514
      %v1516 = vsel %vm1480, %v1506, %v1515
      %v1518 = vshrl.u32 %v1324, 16
      %v1520 = vrot.slane %v1518, 2
      %v1521 = vshll.u32 %v1324, 16
      %v1523 = vrot.slane %v1521, 3
      %v1524 = vor.u32 %v1520, %v1523
      %v1525 = vsel %vm1480, %v1515, %v1524
      %v1550 = vunpack.c.l.b16 %v1464
      %v1551 = vunpack.c.l.b16 %v1465
      %v1552 = vunpack.c.l.b16 %v1466
      %v1553 = vunpack.c.l.b16 %v1467
      %v1554 = vunpack.c.l.b16 %v1468
      %v1555 = vunpack.c.l.b16 %v1469
      %v1556 = vunpack.c.l.b16 %v1470
      %v1557 = vunpack.c.l.b16 %v1471
      %v1558 = vunpack.c.l.b16 %v1472
      %v1559 = vunpack.c.l.b16 %v1473
      %v1560 = vunpack.c.l.b16 %v1474
      %v1561 = vunpack.c.l.b16 %v1475
      %v1562 = vunpack.c.l.b16 %v1476
      %v1563 = vunpack.c.l.b16 %v1477
      %v1564 = vunpack.c.l.b16 %v1478
      %v1565 = vunpack.c.l.b16 %v1479
      %v1566 = vpack.c.b16 %v1551, %v1550
      %v1567 = vpack.c.b16 %v1553, %v1552
      %v1568 = vpack.c.b16 %v1555, %v1554
      %v1569 = vpack.c.b16 %v1557, %v1556
      %v1570 = vpack.c.b16 %v1559, %v1558
      %v1571 = vpack.c.b16 %v1561, %v1560
      %v1572 = vpack.c.b16 %v1563, %v1562
      %v1573 = vpack.c.b16 %v1565, %v1564
      %1582 = vmatpush.bf16.msra.mxu0 %v1573
      %1583 = vmatpush.bf16.msra.mxu0 %v1572
      %1584 = vmatpush.bf16.msra.mxu0 %v1571
      %1585 = vmatpush.bf16.msra.mxu0 %v1570
      %1586 = vmatpush.bf16.msra.mxu0 %v1569
      %1587 = vmatpush.bf16.msra.mxu0 %v1568
      %1588 = vmatpush.bf16.msra.mxu0 %v1567
      %1589 = vmatpush.bf16.msra.mxu0 %v1566
      %1590 = vmatmul.bf16.gmra.mxu0 %v1487
      %v1591 = vpop.f32.mrf.mxu0
      %v1592 = vadd.f32 0.0, %v1591
      %v1593 = vpop.f32.mrf.mxu0
      %v1594 = vadd.f32 0.0, %v1593
      %1595 = vmatmul.bf16.gmra.mxu0 %v1491
      %v1596 = vpop.f32.mrf.mxu0
      %v1597 = vadd.f32 0.0, %v1596
      %v1598 = vpop.f32.mrf.mxu0
      %v1599 = vadd.f32 0.0, %v1598
      %1600 = vmatmul.bf16.gmra.mxu0 %v1495
      %v1601 = vpop.f32.mrf.mxu0
      %v1602 = vadd.f32 0.0, %v1601
      %v1603 = vpop.f32.mrf.mxu0
      %v1604 = vadd.f32 0.0, %v1603
      %1605 = vmatmul.bf16.gmra.mxu0 %v1499
      %v1606 = vpop.f32.mrf.mxu0
      %v1607 = vadd.f32 0.0, %v1606
      %v1608 = vpop.f32.mrf.mxu0
      %v1609 = vadd.f32 0.0, %v1608
      %1610 = vmatmul.bf16.gmra.mxu0 %v1503
      %v1611 = vpop.f32.mrf.mxu0
      %v1612 = vadd.f32 0.0, %v1611
      %v1613 = vpop.f32.mrf.mxu0
      %v1614 = vadd.f32 0.0, %v1613
      %1615 = vmatmul.bf16.gmra.mxu0 %v1507
      %v1616 = vpop.f32.mrf.mxu0
      %v1617 = vadd.f32 0.0, %v1616
      %v1618 = vpop.f32.mrf.mxu0
      %v1619 = vadd.f32 0.0, %v1618
      %1620 = vmatmul.bf16.gmra.mxu0 %v1516
      %v1621 = vpop.f32.mrf.mxu0
      %v1622 = vadd.f32 0.0, %v1621
      %v1623 = vpop.f32.mrf.mxu0
      %v1624 = vadd.f32 0.0, %v1623
      %1625 = vmatmul.bf16.gmra.mxu0 %v1525
      %v1626 = vpop.f32.mrf.mxu0
      %v1627 = vadd.f32 0.0, %v1626
      %v1628 = vpop.f32.mrf.mxu0
      %v1629 = vadd.f32 0.0, %v1628
      %1630 = vdwg.mxu0
      %v1631 = vadd.f32 %v1447, %v1592
      %v1632 = vadd.f32 %v1448, %v1594
      %v1633 = vadd.f32 %v1449, %v1597
      %v1634 = vadd.f32 %v1450, %v1599
      %v1635 = vadd.f32 %v1451, %v1602
      %v1636 = vadd.f32 %v1452, %v1604
      %v1637 = vadd.f32 %v1453, %v1607
      %v1638 = vadd.f32 %v1454, %v1609
      %v1639 = vadd.f32 %v1455, %v1612
      %v1640 = vadd.f32 %v1456, %v1614
      %v1641 = vadd.f32 %v1457, %v1617
      %v1642 = vadd.f32 %v1458, %v1619
      %v1643 = vadd.f32 %v1459, %v1622
      %v1644 = vadd.f32 %v1460, %v1624
      %v1645 = vadd.f32 %v1461, %v1627
      %v1646 = vadd.f32 %v1462, %v1629
      %s1647 = scalar_lea.vmem %s1, 512
      %v1648 = vld [vmem:[%s1647] sm:$0xf]
      %v1649 = vld [vmem:[%s1647 + $0x4] sm:$0xf]
      %v1650 = vld [vmem:[%s1647 + $0x8] sm:$0xf]
      %v1651 = vld [vmem:[%s1647 + $0xc] sm:$0xf]
      %v1652 = vld [vmem:[%s1647 + $0x10] sm:$0xf]
      %v1653 = vld [vmem:[%s1647 + $0x14] sm:$0xf]
      %v1654 = vld [vmem:[%s1647 + $0x18] sm:$0xf]
      %v1655 = vld [vmem:[%s1647 + $0x1c] sm:$0xf]
      %v1656 = vld [vmem:[%s1647 + $0x20] sm:$0xf]
      %v1657 = vld [vmem:[%s1647 + $0x24] sm:$0xf]
      %v1658 = vld [vmem:[%s1647 + $0x28] sm:$0xf]
      %v1659 = vld [vmem:[%s1647 + $0x2c] sm:$0xf]
      %v1660 = vld [vmem:[%s1647 + $0x30] sm:$0xf]
      %v1661 = vld [vmem:[%s1647 + $0x34] sm:$0xf]
      %v1662 = vld [vmem:[%s1647 + $0x38] sm:$0xf]
      %v1663 = vld [vmem:[%s1647 + $0x3c] sm:$0xf]
      %vm1664 = vcmask 1044480
      %v1665 = vrot.slane %v320, 3
      %v1666 = vrot.slane %v321, 3
      %v1667 = vsel %vm1664, %v1665, %v1666
      %v1668 = vrot.slane %v322, 3
      %v1669 = vsel %vm1664, %v1666, %v1668
      %v1670 = vrot.slane %v323, 3
      %v1671 = vsel %vm1664, %v1668, %v1670
      %v1672 = vrot.slane %v324, 3
      %v1673 = vsel %vm1664, %v1670, %v1672
      %v1674 = vrot.slane %v325, 3
      %v1675 = vsel %vm1664, %v1672, %v1674
      %v1676 = vrot.slane %v326, 3
      %v1677 = vsel %vm1664, %v1674, %v1676
      %v1678 = vrot.slane %v1323, 3
      %v1679 = vsel %vm1664, %v1676, %v1678
      %v1680 = vrot.slane %v1324, 3
      %v1681 = vsel %vm1664, %v1678, %v1680
      %v1706 = vunpack.c.l.b16 %v1648
      %v1707 = vunpack.c.l.b16 %v1649
      %v1708 = vunpack.c.l.b16 %v1650
      %v1709 = vunpack.c.l.b16 %v1651
      %v1710 = vunpack.c.l.b16 %v1652
      %v1711 = vunpack.c.l.b16 %v1653
      %v1712 = vunpack.c.l.b16 %v1654
      %v1713 = vunpack.c.l.b16 %v1655
      %v1714 = vunpack.c.l.b16 %v1656
      %v1715 = vunpack.c.l.b16 %v1657
      %v1716 = vunpack.c.l.b16 %v1658
      %v1717 = vunpack.c.l.b16 %v1659
      %v1718 = vunpack.c.l.b16 %v1660
      %v1719 = vunpack.c.l.b16 %v1661
      %v1720 = vunpack.c.l.b16 %v1662
      %v1721 = vunpack.c.l.b16 %v1663
      %v1722 = vpack.c.b16 %v1707, %v1706
      %v1723 = vpack.c.b16 %v1709, %v1708
      %v1724 = vpack.c.b16 %v1711, %v1710
      %v1725 = vpack.c.b16 %v1713, %v1712
      %v1726 = vpack.c.b16 %v1715, %v1714
      %v1727 = vpack.c.b16 %v1717, %v1716
      %v1728 = vpack.c.b16 %v1719, %v1718
      %v1729 = vpack.c.b16 %v1721, %v1720
      %1738 = vmatpush.bf16.msra.mxu0 %v1729
      %1739 = vmatpush.bf16.msra.mxu0 %v1728
      %1740 = vmatpush.bf16.msra.mxu0 %v1727
      %1741 = vmatpush.bf16.msra.mxu0 %v1726
      %1742 = vmatpush.bf16.msra.mxu0 %v1725
      %1743 = vmatpush.bf16.msra.mxu0 %v1724
      %1744 = vmatpush.bf16.msra.mxu0 %v1723
      %1745 = vmatpush.bf16.msra.mxu0 %v1722
      %1746 = vmatmul.bf16.gmra.mxu0 %v1667
      %v1747 = vpop.f32.mrf.mxu0
      %v1748 = vadd.f32 0.0, %v1747
      %v1749 = vpop.f32.mrf.mxu0
      %v1750 = vadd.f32 0.0, %v1749
      %1751 = vmatmul.bf16.gmra.mxu0 %v1669
      %v1752 = vpop.f32.mrf.mxu0
      %v1753 = vadd.f32 0.0, %v1752
      %v1754 = vpop.f32.mrf.mxu0
      %v1755 = vadd.f32 0.0, %v1754
      %1756 = vmatmul.bf16.gmra.mxu0 %v1671
      %v1757 = vpop.f32.mrf.mxu0
      %v1758 = vadd.f32 0.0, %v1757
      %v1759 = vpop.f32.mrf.mxu0
      %v1760 = vadd.f32 0.0, %v1759
      %1761 = vmatmul.bf16.gmra.mxu0 %v1673
      %v1762 = vpop.f32.mrf.mxu0
      %v1763 = vadd.f32 0.0, %v1762
      %v1764 = vpop.f32.mrf.mxu0
      %v1765 = vadd.f32 0.0, %v1764
      %1766 = vmatmul.bf16.gmra.mxu0 %v1675
      %v1767 = vpop.f32.mrf.mxu0
      %v1768 = vadd.f32 0.0, %v1767
      %v1769 = vpop.f32.mrf.mxu0
      %v1770 = vadd.f32 0.0, %v1769
      %1771 = vmatmul.bf16.gmra.mxu0 %v1677
      %v1772 = vpop.f32.mrf.mxu0
      %v1773 = vadd.f32 0.0, %v1772
      %v1774 = vpop.f32.mrf.mxu0
      %v1775 = vadd.f32 0.0, %v1774
      %1776 = vmatmul.bf16.gmra.mxu0 %v1679
      %v1777 = vpop.f32.mrf.mxu0
      %v1778 = vadd.f32 0.0, %v1777
      %v1779 = vpop.f32.mrf.mxu0
      %v1780 = vadd.f32 0.0, %v1779
      %1781 = vmatmul.bf16.gmra.mxu0 %v1681
      %v1782 = vpop.f32.mrf.mxu0
      %v1783 = vadd.f32 0.0, %v1782
      %v1784 = vpop.f32.mrf.mxu0
      %v1785 = vadd.f32 0.0, %v1784
      %1786 = vdwg.mxu0
      %v1787 = vadd.f32 %v1631, %v1748
      %v1788 = vadd.f32 %v1632, %v1750
      %v1789 = vadd.f32 %v1633, %v1753
      %v1790 = vadd.f32 %v1634, %v1755
      %v1791 = vadd.f32 %v1635, %v1758
      %v1792 = vadd.f32 %v1636, %v1760
      %v1793 = vadd.f32 %v1637, %v1763
      %v1794 = vadd.f32 %v1638, %v1765
      %v1795 = vadd.f32 %v1639, %v1768
      %v1796 = vadd.f32 %v1640, %v1770
      %v1797 = vadd.f32 %v1641, %v1773
      %v1798 = vadd.f32 %v1642, %v1775
      %v1799 = vadd.f32 %v1643, %v1778
      %v1800 = vadd.f32 %v1644, %v1780
      %v1801 = vadd.f32 %v1645, %v1783
      %v1802 = vadd.f32 %v1646, %v1785
      %v1803 = vld [vmem:[%s2] sm:$0x1]
      %v1805 = vperm.slane %v1803, 0
      %v1807 = vadd.f32 %v1787, %v1805
      %v1808 = vadd.f32 %v1788, %v1805
      %v1809 = vadd.f32 %v1789, %v1805
      %v1810 = vadd.f32 %v1790, %v1805
      %v1811 = vadd.f32 %v1791, %v1805
      %v1812 = vadd.f32 %v1792, %v1805
      %v1813 = vadd.f32 %v1793, %v1805
      %v1814 = vadd.f32 %v1794, %v1805
      %v1815 = vadd.f32 %v1795, %v1805
      %v1816 = vadd.f32 %v1796, %v1805
      %v1817 = vadd.f32 %v1797, %v1805
      %v1818 = vadd.f32 %v1798, %v1805
      %v1819 = vadd.f32 %v1799, %v1805
      %v1820 = vadd.f32 %v1800, %v1805
      %v1821 = vadd.f32 %v1801, %v1805
      %v1822 = vadd.f32 %v1802, %v1805
      %v1823 = vld [vmem:[%s220] sm:$0xf]
      %v1824 = vld [vmem:[%s220 + $0x4] sm:$0xf]
      %v1825 = vld [vmem:[%s220 + $0x8] sm:$0xf]
      %v1826 = vld [vmem:[%s220 + $0xc] sm:$0xf]
      %v1827 = vld [vmem:[%s220 + $0x10] sm:$0xf]
      %v1828 = vld [vmem:[%s220 + $0x14] sm:$0xf]
      %v1829 = vld [vmem:[%s220 + $0x18] sm:$0xf]
      %v1830 = vld [vmem:[%s220 + $0x1c] sm:$0xf]
      %v1831 = vld [vmem:[%s220 + $0x20] sm:$0xf]
      %v1832 = vld [vmem:[%s220 + $0x24] sm:$0xf]
      %v1833 = vld [vmem:[%s220 + $0x28] sm:$0xf]
      %v1834 = vld [vmem:[%s220 + $0x2c] sm:$0xf]
      %v1835 = vld [vmem:[%s220 + $0x30] sm:$0xf]
      %v1836 = vld [vmem:[%s220 + $0x34] sm:$0xf]
      %v1837 = vld [vmem:[%s220 + $0x38] sm:$0xf]
      %v1838 = vld [vmem:[%s220 + $0x3c] sm:$0xf]
      %v1839 = vld [vmem:[%s4] sm:$0xf]
      %v1840 = vld [vmem:[%s4 + $0x4] sm:$0xf]
      %v1841 = vld [vmem:[%s4 + $0x8] sm:$0xf]
      %v1842 = vld [vmem:[%s4 + $0xc] sm:$0xf]
      %v1843 = vld [vmem:[%s4 + $0x10] sm:$0xf]
      %v1844 = vld [vmem:[%s4 + $0x14] sm:$0xf]
      %v1845 = vld [vmem:[%s4 + $0x18] sm:$0xf]
      %v1846 = vld [vmem:[%s4 + $0x1c] sm:$0xf]
      %v1847 = vld [vmem:[%s4 + $0x20] sm:$0xf]
      %v1848 = vld [vmem:[%s4 + $0x24] sm:$0xf]
      %v1849 = vld [vmem:[%s4 + $0x28] sm:$0xf]
      %v1850 = vld [vmem:[%s4 + $0x2c] sm:$0xf]
      %v1851 = vld [vmem:[%s4 + $0x30] sm:$0xf]
      %v1852 = vld [vmem:[%s4 + $0x34] sm:$0xf]
      %v1853 = vld [vmem:[%s4 + $0x38] sm:$0xf]
      %v1854 = vld [vmem:[%s4 + $0x3c] sm:$0xf]
      %v1871 = vunpack.c.l.b16 %v1823
      %v1872 = vunpack.c.l.b16 %v1824
      %v1873 = vunpack.c.l.b16 %v1825
      %v1874 = vunpack.c.l.b16 %v1826
      %v1875 = vunpack.c.l.b16 %v1827
      %v1876 = vunpack.c.l.b16 %v1828
      %v1877 = vunpack.c.l.b16 %v1829
      %v1878 = vunpack.c.l.b16 %v1830
      %v1879 = vunpack.c.l.b16 %v1831
      %v1880 = vunpack.c.l.b16 %v1832
      %v1881 = vunpack.c.l.b16 %v1833
      %v1882 = vunpack.c.l.b16 %v1834
      %v1883 = vunpack.c.l.b16 %v1835
      %v1884 = vunpack.c.l.b16 %v1836
      %v1885 = vunpack.c.l.b16 %v1837
      %v1886 = vunpack.c.l.b16 %v1838
      %v1887 = vpack.c.b16 %v1872, %v1871
      %v1888 = vpack.c.b16 %v1874, %v1873
      %v1889 = vpack.c.b16 %v1876, %v1875
      %v1890 = vpack.c.b16 %v1878, %v1877
      %v1891 = vpack.c.b16 %v1880, %v1879
      %v1892 = vpack.c.b16 %v1882, %v1881
      %v1893 = vpack.c.b16 %v1884, %v1883
      %v1894 = vpack.c.b16 %v1886, %v1885
      %v1919 = vunpack.c.l.b16 %v1839
      %v1920 = vunpack.c.l.b16 %v1840
      %v1921 = vunpack.c.l.b16 %v1841
      %v1922 = vunpack.c.l.b16 %v1842
      %v1923 = vunpack.c.l.b16 %v1843
      %v1924 = vunpack.c.l.b16 %v1844
      %v1925 = vunpack.c.l.b16 %v1845
      %v1926 = vunpack.c.l.b16 %v1846
      %v1927 = vunpack.c.l.b16 %v1847
      %v1928 = vunpack.c.l.b16 %v1848
      %v1929 = vunpack.c.l.b16 %v1849
      %v1930 = vunpack.c.l.b16 %v1850
      %v1931 = vunpack.c.l.b16 %v1851
      %v1932 = vunpack.c.l.b16 %v1852
      %v1933 = vunpack.c.l.b16 %v1853
      %v1934 = vunpack.c.l.b16 %v1854
      %v1935 = vpack.c.b16 %v1920, %v1919
      %v1936 = vpack.c.b16 %v1922, %v1921
      %v1937 = vpack.c.b16 %v1924, %v1923
      %v1938 = vpack.c.b16 %v1926, %v1925
      %v1939 = vpack.c.b16 %v1928, %v1927
      %v1940 = vpack.c.b16 %v1930, %v1929
      %v1941 = vpack.c.b16 %v1932, %v1931
      %v1942 = vpack.c.b16 %v1934, %v1933
      %1951 = vmatpush.bf16.msra.mxu0 %v1942
      %1952 = vmatpush.bf16.msra.mxu0 %v1941
      %1953 = vmatpush.bf16.msra.mxu0 %v1940
      %1954 = vmatpush.bf16.msra.mxu0 %v1939
      %1955 = vmatpush.bf16.msra.mxu0 %v1938
      %1956 = vmatpush.bf16.msra.mxu0 %v1937
      %1957 = vmatpush.bf16.msra.mxu0 %v1936
      %1958 = vmatpush.bf16.msra.mxu0 %v1935
      %1959 = vmatmul.bf16.gmra.mxu0 %v1887
      %v1960 = vpop.f32.mrf.mxu0
      %v1961 = vadd.f32 0.0, %v1960
      %v1962 = vpop.f32.mrf.mxu0
      %v1963 = vadd.f32 0.0, %v1962
      %1964 = vmatmul.bf16.gmra.mxu0 %v1888
      %v1965 = vpop.f32.mrf.mxu0
      %v1966 = vadd.f32 0.0, %v1965
      %v1967 = vpop.f32.mrf.mxu0
      %v1968 = vadd.f32 0.0, %v1967
      %1969 = vmatmul.bf16.gmra.mxu0 %v1889
      %v1970 = vpop.f32.mrf.mxu0
      %v1971 = vadd.f32 0.0, %v1970
      %v1972 = vpop.f32.mrf.mxu0
      %v1973 = vadd.f32 0.0, %v1972
      %1974 = vmatmul.bf16.gmra.mxu0 %v1890
      %v1975 = vpop.f32.mrf.mxu0
      %v1976 = vadd.f32 0.0, %v1975
      %v1977 = vpop.f32.mrf.mxu0
      %v1978 = vadd.f32 0.0, %v1977
      %1979 = vmatmul.bf16.gmra.mxu0 %v1891
      %v1980 = vpop.f32.mrf.mxu0
      %v1981 = vadd.f32 0.0, %v1980
      %v1982 = vpop.f32.mrf.mxu0
      %v1983 = vadd.f32 0.0, %v1982
      %1984 = vmatmul.bf16.gmra.mxu0 %v1892
      %v1985 = vpop.f32.mrf.mxu0
      %v1986 = vadd.f32 0.0, %v1985
      %v1987 = vpop.f32.mrf.mxu0
      %v1988 = vadd.f32 0.0, %v1987
      %1989 = vmatmul.bf16.gmra.mxu0 %v1893
      %v1990 = vpop.f32.mrf.mxu0
      %v1991 = vadd.f32 0.0, %v1990
      %v1992 = vpop.f32.mrf.mxu0
      %v1993 = vadd.f32 0.0, %v1992
      %1994 = vmatmul.bf16.gmra.mxu0 %v1894
      %v1995 = vpop.f32.mrf.mxu0
      %v1996 = vadd.f32 0.0, %v1995
      %v1997 = vpop.f32.mrf.mxu0
      %v1998 = vadd.f32 0.0, %v1997
      %1999 = vdwg.mxu0
      %v2000 = vadd.f32 %v1807, %v1961
      %v2001 = vadd.f32 %v1808, %v1963
      %v2002 = vadd.f32 %v1809, %v1966
      %v2003 = vadd.f32 %v1810, %v1968
      %v2004 = vadd.f32 %v1811, %v1971
      %v2005 = vadd.f32 %v1812, %v1973
      %v2006 = vadd.f32 %v1813, %v1976
      %v2007 = vadd.f32 %v1814, %v1978
      %v2008 = vadd.f32 %v1815, %v1981
      %v2009 = vadd.f32 %v1816, %v1983
      %v2010 = vadd.f32 %v1817, %v1986
      %v2011 = vadd.f32 %v1818, %v1988
      %v2012 = vadd.f32 %v1819, %v1991
      %v2013 = vadd.f32 %v1820, %v1993
      %v2014 = vadd.f32 %v1821, %v1996
      %v2015 = vadd.f32 %v1822, %v1998
      %v2016 = vmax.f32 %v2000, 0.0
      %v2017 = vmax.f32 %v2001, 0.0
      %v2018 = vmax.f32 %v2002, 0.0
      %v2019 = vmax.f32 %v2003, 0.0
      %v2020 = vmax.f32 %v2004, 0.0
      %v2021 = vmax.f32 %v2005, 0.0
      %v2022 = vmax.f32 %v2006, 0.0
      %v2023 = vmax.f32 %v2007, 0.0
      %v2024 = vmax.f32 %v2008, 0.0
      %v2025 = vmax.f32 %v2009, 0.0
      %v2026 = vmax.f32 %v2010, 0.0
      %v2027 = vmax.f32 %v2011, 0.0
      %v2028 = vmax.f32 %v2012, 0.0
      %v2029 = vmax.f32 %v2013, 0.0
      %v2030 = vmax.f32 %v2014, 0.0
      %v2031 = vmax.f32 %v2015, 0.0
      %2032 = vst [vmem:[%s226] sm:$0xff] %v2016
      %2033 = vst [vmem:[%s226 + $0x8] sm:$0xff] %v2017
      %2034 = vst [vmem:[%s226 + $0x10] sm:$0xff] %v2018
      %2035 = vst [vmem:[%s226 + $0x18] sm:$0xff] %v2019
      %2036 = vst [vmem:[%s226 + $0x20] sm:$0xff] %v2020
      %2037 = vst [vmem:[%s226 + $0x28] sm:$0xff] %v2021
      %2038 = vst [vmem:[%s226 + $0x30] sm:$0xff] %v2022
      %2039 = vst [vmem:[%s226 + $0x38] sm:$0xff] %v2023
      %2040 = vst [vmem:[%s226 + $0x40] sm:$0xff] %v2024
      %2041 = vst [vmem:[%s226 + $0x48] sm:$0xff] %v2025
      %2042 = vst [vmem:[%s226 + $0x50] sm:$0xff] %v2026
      %2043 = vst [vmem:[%s226 + $0x58] sm:$0xff] %v2027
      %2044 = vst [vmem:[%s226 + $0x60] sm:$0xff] %v2028
      %2045 = vst [vmem:[%s226 + $0x68] sm:$0xff] %v2029
      %2046 = vst [vmem:[%s226 + $0x70] sm:$0xff] %v2030
      %2047 = vst [vmem:[%s226 + $0x78] sm:$0xff] %v2031
      %s2048 = smul.u32 16, %s16
      %p2049 = scmp.lt.s32.totalorder %s2048, 31
      %s2050 = scalar_select %p2049, %s2048, 31
      %s2051 = smul.addr %s2050, 8
      %s2052 = scalar_lea.vmem %s5, %s2051
      // Predicated region
      $region41: #{residual_block_forward.3} parent=39 // pred_check
        %p2053 = pneg %p144
      $region42: #{residual_block_forward.3} parent=39 // pred_check_branch
        %2055 = sbr.rel (%p2053) target = $region44
      $region43: #{residual_block_forward.3} parent=39 // pred_region
        %s2056 = smul.u32 16, %s16
      $region44: #{residual_block_forward.3} parent=39 // pred_fallthru
        _
    $region40: #{residual_block_forward.3} parent=5 // pred_fallthru
      _
    %p2057 = scmp.le.s32.totalorder 2, %s11
    // Predicated region
    $region45: #{residual_block_forward.3} parent=5 // pred_check
      %p2058 = pneg %p2057
    $region46: #{residual_block_forward.3} parent=5 // pred_check_branch
      %2060 = sbr.rel (%p2058) target = $region48
    $region47: #{residual_block_forward.3} parent=5 // pred_region
      %s2061 = ssub.s32 %s11, 2
      // Predicated region
      $region49: #{residual_block_forward.3} parent=47 // pred_check
        %p2062 = pneg %p150
      $region50: #{residual_block_forward.3} parent=47 // pred_check_branch
        %2064 = sbr.rel (%p2062) target = $region52
      $region51: #{residual_block_forward.3} parent=47 // pred_region
        %s2065 = smul.u32 16, %s17
        %p2066 = scmp.lt.s32.totalorder %s2065, 31
        %s2067 = scalar_select %p2066, %s2065, 31
        %s2068 = smul.addr %s2067, 8
        %s2069 = scalar_lea.vmem %s5, %s2068
      $region52: #{residual_block_forward.3} parent=47 // pred_fallthru
        _
    $region48: #{residual_block_forward.3} parent=5 // pred_fallthru
      _
  $region6: #{residual_block_forward.3} parent=0 // loop_footer
    %s15 = sadd.s32 1, %s11
  $region7: #{residual_block_forward.3} parent=0 // loop_footer_branch
    %10 = sbr.rel target = $region3
  $region8: #{residual_block_forward.3} parent=0 // loop_exit
    _

</llo_original>
